<compile_context>
chip_gen: v6e
topology: v6e:2x2x1
jax: 0.10.0
libtpu: 0.0.40
codegen_flags: <defaults>
</compile_context>

<pallas_src>
import jax
import jax.numpy as jnp
from jax import lax
from jax.experimental import pallas as pl
from jax.experimental.pallas import tpu as pltpu


def attn_decoder_kernel(emb_ref,                     # (T, 1, H) pre-gathered embeddings
                        h0_ref, c0_ref,              # (1, H) initial hidden state
                        w_ih_ref, w_hh_ref,          # (H, 4H), (H, 4H)
                        b_lstm_ref,                  # (1, 4H)  (b_ih + b_hh)
                        w_fused_ref,                 # (H, L+H) [attn_sum | comb_lo]
                        b_attn_ref,                  # (1, L)
                        enc_ref,                     # (L, H)
                        w_comb_hi_ref, b_comb_ref,   # (H, H), (1, H)
                        w_out_ref, b_out_ref,        # (H, V), (1, V)
                        out_ref):                    # (T, 1, OUT_W) packed output slab
    H = h0_ref.shape[1]
    L = b_attn_ref.shape[1]
    V = b_out_ref.shape[1]
    T = emb_ref.shape[0]

    # One memset of the resident slab -> deterministic pad lanes, single pass.
    out_ref[...] = jnp.zeros_like(out_ref)

    # Hoist weight loads out of the (unrolled) decode loop.
    w_ih = w_ih_ref[...]
    w_hh = w_hh_ref[...]
    b_lstm = b_lstm_ref[...]
    w_fused = w_fused_ref[...]
    b_attn = b_attn_ref[...]
    enc = enc_ref[...]
    w_comb_hi = w_comb_hi_ref[...]
    b_comb = b_comb_ref[...]
    w_out = w_out_ref[...]
    b_out = b_out_ref[...]

    def step(t, carry):
        h_prev, c_prev = carry

        # TODO(synk): nn.Dropout(p=0.1) after the embedding is treated as
        # eval-mode identity (no PRNG mask in-kernel).
        x = emb_ref[t]                                           # (1, H)

        # ---- LSTM cell (seq_len=1, num_layers=1, batch=1) ----
        gates = (jnp.dot(x, w_ih, preferred_element_type=jnp.float32)
                 + jnp.dot(h_prev, w_hh, preferred_element_type=jnp.float32)
                 + b_lstm)                                       # (1, 4H) [i,f,g,o]
        i_g = jax.nn.sigmoid(gates[:, 0:H])
        f_g = jax.nn.sigmoid(gates[:, H:2 * H])
        g_g = jnp.tanh(gates[:, 2 * H:3 * H])
        o_g = jax.nn.sigmoid(gates[:, 3 * H:4 * H])
        c_new = f_g * c_prev + i_g * g_g
        h_new = o_g * jnp.tanh(c_new)                            # (1, H)

        # ---- fused: attn logits + top half of attn_combine ----
        # output[0] == hidden[0][-1] == h_new, so the (2H->L) attn Linear
        # collapses to one (H, L) matrix; it is packed next to W_comb[:, :H].T
        # so a single dot produces both the attention logits and the h-part
        # of attn_combine.
        fused = jnp.dot(h_new, w_fused,
                        preferred_element_type=jnp.float32)      # (1, L+H)
        attn_logits = fused[:, 0:L] + b_attn                     # (1, L)
        comb_partial = fused[:, L:L + H]                         # (1, H)

        m = jnp.max(attn_logits, axis=-1, keepdims=True)
        e = jnp.exp(attn_logits - m)
        attn_w = e / jnp.sum(e, axis=-1, keepdims=True)          # (1, L)

        # ---- attn_applied = bmm(attn_weights, encoder_outputs) ----
        attn_applied = jnp.dot(attn_w, enc,
                               preferred_element_type=jnp.float32)   # (1, H)

        # ---- attn_combine (bottom half) + ReLU ----
        comb = (comb_partial
                + jnp.dot(attn_applied, w_comb_hi,
                          preferred_element_type=jnp.float32)
                + b_comb)
        comb = jnp.maximum(comb, 0.0)                            # (1, H)

        # ---- out Linear + log_softmax ----
        logits = (jnp.dot(comb, w_out, preferred_element_type=jnp.float32)
                  + b_out)                                       # (1, V)
        lm = jnp.max(logits, axis=-1, keepdims=True)
        shifted = logits - lm
        lse = jnp.log(jnp.sum(jnp.exp(shifted), axis=-1, keepdims=True))
        logp = shifted - lse

        # packed lane-dense row: [logp | h | c | attn | pad]
        out_ref[t, :, 0:V] = logp
        out_ref[t, :, V:V + H] = h_new
        out_ref[t, :, V + H:V + 2 * H] = c_new
        out_ref[t, :, V + 2 * H:V + 2 * H + L] = attn_w
        return (h_new, c_new)

    lax.fori_loop(0, T, step, (h0_ref[...], c0_ref[...]), unroll=True)


def attn_decoder_decode(tokens, hidden, encoder_outputs, p):
    """Runs T teacher-forced decoder steps in ONE pallas_call (no grid).

    tokens: (T,) int32; hidden: ((1,1,H), (1,1,H)); encoder_outputs: (L, H).
    Returns (log_probs (T, V), (h (1,1,H), c (1,1,H)), attn_weights (T, L)).
    With T == 1 this is exactly AttnDecoderRNN_glove.forward().
    """
    h0, c0 = hidden
    T = tokens.shape[0]
    H = h0.shape[-1]
    L = p["b_attn"].shape[1]
    V = p["b_out"].shape[1]
    PACK = V + 2 * H + L
    OUT_W = ((PACK + 127) // 128) * 128

    # Embedding gather in the wrapper: kills the per-step in-kernel DMA.
    emb_seq = p["emb"][tokens].reshape(T, 1, H)

    n_in = 13
    vmem_specs = [pl.BlockSpec(memory_space=pltpu.MemorySpace.VMEM)
                  for _ in range(n_in)]

    slab = pl.pallas_call(
        attn_decoder_kernel,
        out_shape=jax.ShapeDtypeStruct((T, 1, OUT_W), jnp.float32),
        in_specs=vmem_specs,
        out_specs=pl.BlockSpec(memory_space=pltpu.MemorySpace.VMEM),
    )(emb_seq, h0[0], c0[0],
      p["w_ih_t"], p["w_hh_t"], p["b_lstm"],
      p["w_fused"], p["b_attn"], encoder_outputs,
      p["w_comb_hi_t"], p["b_comb"],
      p["w_out_t"], p["b_out"])

    slab = slab[:, 0, :]                                   # (T, OUT_W)
    logp = slab[:, :V]
    h1 = slab[T - 1:T, V:V + H]
    c1 = slab[T - 1:T, V + H:V + 2 * H]
    attn_w = slab[:, V + 2 * H:V + 2 * H + L]
    return logp, (h1[None], c1[None]), attn_w


def init_params(key, vocab, H, V, L):
    ks = jax.random.split(key, 12)
    uni = lambda k, shape, a: jax.random.uniform(k, shape, jnp.float32, -a, a)

    # GloVe embedding: wi + wj, each uniform(-1, 1)
    emb = uni(ks[0], (vocab, H), 1.0) + uni(ks[1], (vocab, H), 1.0)

    s_lstm = 1.0 / float(H) ** 0.5
    w_ih = uni(ks[2], (4 * H, H), s_lstm)      # PyTorch shape (4H, H)
    w_hh = uni(ks[3], (4 * H, H), s_lstm)
    b_ih = uni(ks[4], (4 * H,), s_lstm)
    b_hh = uni(ks[5], (4 * H,), s_lstm)

    s_2h = 1.0 / float(2 * H) ** 0.5
    w_attn = uni(ks[6], (L, 2 * H), s_2h)      # nn.Linear(2H, L)
    b_attn = uni(ks[7], (L,), s_2h)
    w_comb = uni(ks[8], (H, 2 * H), s_2h)      # nn.Linear(2H, H)
    b_comb = uni(ks[9], (H,), s_2h)

    s_h = 1.0 / float(H) ** 0.5
    w_out = uni(ks[10], (V, H), s_h)           # nn.Linear(H, V)
    b_out = uni(ks[11], (V,), s_h)

    raw = {"emb": emb, "w_ih": w_ih, "w_hh": w_hh, "b_ih": b_ih, "b_hh": b_hh,
           "w_attn": w_attn, "b_attn": b_attn, "w_comb": w_comb,
           "b_comb": b_comb, "w_out": w_out, "b_out": b_out}

    # output[0] == hidden[0][-1] == h_new (seq_len=1, num_layers=1), so the
    # two halves of the attn Linear collapse into one (H, L) matrix; it is
    # packed next to the h-half of attn_combine into a single (H, L+H) dot.
    w_attn_sum_t = (w_attn[:, :H] + w_attn[:, H:]).T            # (H, L)
    w_comb_lo_t = w_comb[:, :H].T                               # (H, H)
    w_comb_hi_t = w_comb[:, H:].T                               # (H, H)

    params = {
        "emb": emb,
        "w_ih_t": w_ih.T,                                       # (H, 4H)
        "w_hh_t": w_hh.T,                                       # (H, 4H)
        "b_lstm": (b_ih + b_hh)[None, :],                       # (1, 4H)
        "w_fused": jnp.concatenate([w_attn_sum_t, w_comb_lo_t], axis=1),  # (H, L+H)
        "b_attn": b_attn[None, :],                              # (1, L)
        "w_comb_hi_t": w_comb_hi_t,                             # (H, H)
        "b_comb": b_comb[None, :],                              # (1, H)
        "w_out_t": w_out.T,                                     # (H, V)
        "b_out": b_out[None, :],                                # (1, V)
    }
    return params, raw


def reference_step(tok, h, c, enc, raw):
    """Pure-JAX mirror of AttnDecoderRNN_glove.forward (eval-mode dropout)."""
    H = h.shape[1]
    x = raw["emb"][tok][None, :]
    gates = (x @ raw["w_ih"].T + h @ raw["w_hh"].T
             + raw["b_ih"][None, :] + raw["b_hh"][None, :])
    i = jax.nn.sigmoid(gates[:, :H])
    f = jax.nn.sigmoid(gates[:, H:2 * H])
    g = jnp.tanh(gates[:, 2 * H:3 * H])
    o = jax.nn.sigmoid(gates[:, 3 * H:])
    c = f * c + i * g
    h = o * jnp.tanh(c)
    attn_in = jnp.concatenate([h, h], axis=1)       # cat(output[0], hidden[0][-1])
    aw = jax.nn.softmax(attn_in @ raw["w_attn"].T + raw["b_attn"][None, :], axis=1)
    aa = aw @ enc
    comb = jnp.concatenate([h, aa], axis=1) @ raw["w_comb"].T + raw["b_comb"][None, :]
    comb = jnp.maximum(comb, 0.0)
    logits = comb @ raw["w_out"].T + raw["b_out"][None, :]
    return jax.nn.log_softmax(logits, axis=1), h, c, aw


if __name__ == "__main__":
    H = 32          # hidden_size (== embedding dim)
    V = 64          # output_size (decoder vocab)
    L = 16          # max_length
    VOCAB = 100     # GloVe vocab size
    T = 6           # decode steps folded into one pallas_call

    key = jax.random.PRNGKey(0)
    k_par, k_enc, k_tok = jax.random.split(key, 3)
    params, raw = init_params(k_par, VOCAB, H, V, L)

    tokens = jax.random.randint(k_tok, (T,), 0, VOCAB, dtype=jnp.int32)
    hidden = (jnp.zeros((1, 1, H), jnp.float32),    # initHidden(): (num_layers, 1, H)
              jnp.zeros((1, 1, H), jnp.float32))
    encoder_outputs = jax.random.normal(k_enc, (L, H), jnp.float32)

    logp, (h1, c1), attn_w = attn_decoder_decode(tokens, hidden, encoder_outputs, params)
    jax.block_until_ready((logp, h1, c1, attn_w))

    # correctness check against a pure-JAX per-step reference (raw PyTorch weights)
    rh, rc = hidden[0][0], hidden[1][0]
    r_logps, r_aws = [], []
    for t in range(T):
        r_logp, rh, rc, r_aw = reference_step(tokens[t], rh, rc, encoder_outputs, raw)
        r_logps.append(r_logp)
        r_aws.append(r_aw)
    r_logp = jnp.concatenate(r_logps, axis=0)
    r_aw = jnp.concatenate(r_aws, axis=0)

    assert jnp.allclose(logp, r_logp, atol=1e-5, rtol=1e-5), "log-probs mismatch"
    assert jnp.allclose(attn_w, r_aw, atol=1e-5, rtol=1e-5), "attn weights mismatch"
    assert jnp.allclose(h1[0], rh, atol=1e-5, rtol=1e-5), "h mismatch"
    assert jnp.allclose(c1[0], rc, atol=1e-5, rtol=1e-5), "c mismatch"

    print("KERNEL_OK")
</pallas_src>

<mosaic_0001>
module attributes {stable_mosaic.version = 11 : i64} {
  func.func @attn_decoder_kernel(%arg0: memref<6x1x32xf32, #tpu.memory_space<vmem>>, %arg1: memref<1x32xf32, #tpu.memory_space<vmem>>, %arg2: memref<1x32xf32, #tpu.memory_space<vmem>>, %arg3: memref<32x128xf32, #tpu.memory_space<vmem>>, %arg4: memref<32x128xf32, #tpu.memory_space<vmem>>, %arg5: memref<1x128xf32, #tpu.memory_space<vmem>>, %arg6: memref<32x48xf32, #tpu.memory_space<vmem>>, %arg7: memref<1x16xf32, #tpu.memory_space<vmem>>, %arg8: memref<16x32xf32, #tpu.memory_space<vmem>>, %arg9: memref<32x32xf32, #tpu.memory_space<vmem>>, %arg10: memref<1x32xf32, #tpu.memory_space<vmem>>, %arg11: memref<32x64xf32, #tpu.memory_space<vmem>>, %arg12: memref<1x64xf32, #tpu.memory_space<vmem>>, %arg13: memref<6x1x256xf32, #tpu.memory_space<vmem>>) attributes {dimension_semantics = [], scalar_prefetch = 0 : i64, scratch_operands = 0 : i64, tpu.core_type = #tpu.core_type<tc>} {
    %cst = arith.constant 0.000000e+00 : f32
    %0 = vector.broadcast %cst : f32 to vector<6x1x256xf32>
    %c0 = arith.constant 0 : index
    %c0_0 = arith.constant 0 : index
    %c0_1 = arith.constant 0 : index
    %1 = vector.load %arg13[%c0, %c0_0, %c0_1] : memref<6x1x256xf32, #tpu.memory_space<vmem>>, vector<6x1x256xf32>
    tpu.vector_store %arg13[%c0, %c0_0, %c0_1], %0 {strides = array<i32>} : memref<6x1x256xf32, #tpu.memory_space<vmem>>, vector<6x1x256xf32>,
    %c0_2 = arith.constant 0 : index
    %c0_3 = arith.constant 0 : index
    %2 = vector.load %arg3[%c0_2, %c0_3] : memref<32x128xf32, #tpu.memory_space<vmem>>, vector<32x128xf32>
    %c0_4 = arith.constant 0 : index
    %c0_5 = arith.constant 0 : index
    %3 = vector.load %arg4[%c0_4, %c0_5] : memref<32x128xf32, #tpu.memory_space<vmem>>, vector<32x128xf32>
    %c0_6 = arith.constant 0 : index
    %c0_7 = arith.constant 0 : index
    %4 = vector.load %arg5[%c0_6, %c0_7] : memref<1x128xf32, #tpu.memory_space<vmem>>, vector<1x128xf32>
    %c0_8 = arith.constant 0 : index
    %c0_9 = arith.constant 0 : index
    %5 = vector.load %arg6[%c0_8, %c0_9] : memref<32x48xf32, #tpu.memory_space<vmem>>, vector<32x48xf32>
    %c0_10 = arith.constant 0 : index
    %c0_11 = arith.constant 0 : index
    %6 = vector.load %arg7[%c0_10, %c0_11] : memref<1x16xf32, #tpu.memory_space<vmem>>, vector<1x16xf32>
    %c0_12 = arith.constant 0 : index
    %c0_13 = arith.constant 0 : index
    %7 = vector.load %arg8[%c0_12, %c0_13] : memref<16x32xf32, #tpu.memory_space<vmem>>, vector<16x32xf32>
    %c0_14 = arith.constant 0 : index
    %c0_15 = arith.constant 0 : index
    %8 = vector.load %arg9[%c0_14, %c0_15] : memref<32x32xf32, #tpu.memory_space<vmem>>, vector<32x32xf32>
    %c0_16 = arith.constant 0 : index
    %c0_17 = arith.constant 0 : index
    %9 = vector.load %arg10[%c0_16, %c0_17] : memref<1x32xf32, #tpu.memory_space<vmem>>, vector<1x32xf32>
    %c0_18 = arith.constant 0 : index
    %c0_19 = arith.constant 0 : index
    %10 = vector.load %arg11[%c0_18, %c0_19] : memref<32x64xf32, #tpu.memory_space<vmem>>, vector<32x64xf32>
    %c0_20 = arith.constant 0 : index
    %c0_21 = arith.constant 0 : index
    %11 = vector.load %arg12[%c0_20, %c0_21] : memref<1x64xf32, #tpu.memory_space<vmem>>, vector<1x64xf32>
    %c0_22 = arith.constant 0 : index
    %c0_23 = arith.constant 0 : index
    %12 = vector.load %arg1[%c0_22, %c0_23] : memref<1x32xf32, #tpu.memory_space<vmem>>, vector<1x32xf32>
    %c0_24 = arith.constant 0 : index
    %c0_25 = arith.constant 0 : index
    %13 = vector.load %arg2[%c0_24, %c0_25] : memref<1x32xf32, #tpu.memory_space<vmem>>, vector<1x32xf32>
    %c0_i32 = arith.constant 0 : i32
    %14 = arith.index_cast %c0_i32 : i32 to index
    %c0_26 = arith.constant 0 : index
    %c0_27 = arith.constant 0 : index
    %15 = vector.load %arg0[%14, %c0_26, %c0_27] : memref<6x1x32xf32, #tpu.memory_space<vmem>>, vector<1x1x32xf32>
    %16 = vector.shape_cast %15 : vector<1x1x32xf32> to vector<1x32xf32>
    %cst_28 = arith.constant dense<0.000000e+00> : vector<1x128xf32>
    %17 = tpu.matmul %16, %2, %cst_28 {dimension_numbers = #tpu.dot_dimension_numbers<[1], [0], [0], [1], [0, 0, 1, 1], [], []>} : vector<1x32xf32>, vector<32x128xf32>, vector<1x128xf32> -> vector<1x128xf32>
    %cst_29 = arith.constant dense<0.000000e+00> : vector<1x128xf32>
    %18 = tpu.matmul %12, %3, %cst_29 {dimension_numbers = #tpu.dot_dimension_numbers<[1], [0], [0], [1], [0, 0, 1, 1], [], []>} : vector<1x32xf32>, vector<32x128xf32>, vector<1x128xf32> -> vector<1x128xf32>
    %19 = arith.addf %17, %18 : vector<1x128xf32>
    %20 = arith.addf %19, %4 : vector<1x128xf32>
    %21 = vector.extract_strided_slice %20 {offsets = [0, 0], sizes = [1, 32], strides = [1, 1]} : vector<1x128xf32> to vector<1x32xf32>
    %22 = arith.negf %21 : vector<1x32xf32>
    %23 = math.exp %22 : vector<1x32xf32>
    %cst_30 = arith.constant 1.000000e+00 : f32
    %24 = vector.broadcast %cst_30 : f32 to vector<1x32xf32>
    %25 = arith.addf %24, %23 : vector<1x32xf32>
    %26 = arith.divf %24, %25 : vector<1x32xf32>
    %27 = vector.extract_strided_slice %20 {offsets = [0, 32], sizes = [1, 32], strides = [1, 1]} : vector<1x128xf32> to vector<1x32xf32>
    %28 = arith.negf %27 : vector<1x32xf32>
    %29 = math.exp %28 : vector<1x32xf32>
    %cst_31 = arith.constant 1.000000e+00 : f32
    %30 = vector.broadcast %cst_31 : f32 to vector<1x32xf32>
    %31 = arith.addf %30, %29 : vector<1x32xf32>
    %32 = arith.divf %30, %31 : vector<1x32xf32>
    %33 = vector.extract_strided_slice %20 {offsets = [0, 64], sizes = [1, 32], strides = [1, 1]} : vector<1x128xf32> to vector<1x32xf32>
    %34 = math.tanh %33 : vector<1x32xf32>
    %35 = vector.extract_strided_slice %20 {offsets = [0, 96], sizes = [1, 32], strides = [1, 1]} : vector<1x128xf32> to vector<1x32xf32>
    %36 = arith.negf %35 : vector<1x32xf32>
    %37 = math.exp %36 : vector<1x32xf32>
    %cst_32 = arith.constant 1.000000e+00 : f32
    %38 = vector.broadcast %cst_32 : f32 to vector<1x32xf32>
    %39 = arith.addf %38, %37 : vector<1x32xf32>
    %40 = arith.divf %38, %39 : vector<1x32xf32>
    %41 = arith.mulf %32, %13 : vector<1x32xf32>
    %42 = arith.mulf %26, %34 : vector<1x32xf32>
    %43 = arith.addf %41, %42 : vector<1x32xf32>
    %44 = math.tanh %43 : vector<1x32xf32>
    %45 = arith.mulf %40, %44 : vector<1x32xf32>
    %cst_33 = arith.constant dense<0.000000e+00> : vector<1x48xf32>
    %46 = tpu.matmul %45, %5, %cst_33 {dimension_numbers = #tpu.dot_dimension_numbers<[1], [0], [0], [1], [0, 0, 1, 1], [], []>} : vector<1x32xf32>, vector<32x48xf32>, vector<1x48xf32> -> vector<1x48xf32>
    %47 = vector.extract_strided_slice %46 {offsets = [0, 0], sizes = [1, 16], strides = [1, 1]} : vector<1x48xf32> to vector<1x16xf32>
    %48 = arith.addf %47, %6 : vector<1x16xf32>
    %49 = vector.extract_strided_slice %46 {offsets = [0, 16], sizes = [1, 32], strides = [1, 1]} : vector<1x48xf32> to vector<1x32xf32>
    %cst_34 = arith.constant dense<0xFF800000> : vector<1xf32>
    %50 = vector.multi_reduction <maximumf>, %48, %cst_34 [1] : vector<1x16xf32> to vector<1xf32>
    %51 = vector.shape_cast %50 : vector<1xf32> to vector<1x1xf32>
    %52 = vector.broadcast %51 : vector<1x1xf32> to vector<1x16xf32>
    %53 = arith.subf %48, %52 : vector<1x16xf32>
    %54 = math.exp %53 : vector<1x16xf32>
    %cst_35 = arith.constant dense<0.000000e+00> : vector<1xf32>
    %55 = vector.multi_reduction <add>, %54, %cst_35 [1] : vector<1x16xf32> to vector<1xf32>
    %56 = vector.shape_cast %55 : vector<1xf32> to vector<1x1xf32>
    %57 = vector.broadcast %56 : vector<1x1xf32> to vector<1x16xf32>
    %58 = arith.divf %54, %57 : vector<1x16xf32>
    %cst_36 = arith.constant dense<0.000000e+00> : vector<1x32xf32>
    %59 = tpu.matmul %58, %7, %cst_36 {dimension_numbers = #tpu.dot_dimension_numbers<[1], [0], [0], [1], [0, 0, 1, 1], [], []>} : vector<1x16xf32>, vector<16x32xf32>, vector<1x32xf32> -> vector<1x32xf32>
    %cst_37 = arith.constant dense<0.000000e+00> : vector<1x32xf32>
    %60 = tpu.matmul %59, %8, %cst_37 {dimension_numbers = #tpu.dot_dimension_numbers<[1], [0], [0], [1], [0, 0, 1, 1], [], []>} : vector<1x32xf32>, vector<32x32xf32>, vector<1x32xf32> -> vector<1x32xf32>
    %61 = arith.addf %49, %60 : vector<1x32xf32>
    %62 = arith.addf %61, %9 : vector<1x32xf32>
    %cst_38 = arith.constant 0.000000e+00 : f32
    %63 = vector.broadcast %cst_38 : f32 to vector<1x32xf32>
    %64 = arith.maximumf %62, %63 : vector<1x32xf32>
    %cst_39 = arith.constant dense<0.000000e+00> : vector<1x64xf32>
    %65 = tpu.matmul %64, %10, %cst_39 {dimension_numbers = #tpu.dot_dimension_numbers<[1], [0], [0], [1], [0, 0, 1, 1], [], []>} : vector<1x32xf32>, vector<32x64xf32>, vector<1x64xf32> -> vector<1x64xf32>
    %66 = arith.addf %65, %11 : vector<1x64xf32>
    %cst_40 = arith.constant dense<0xFF800000> : vector<1xf32>
    %67 = vector.multi_reduction <maximumf>, %66, %cst_40 [1] : vector<1x64xf32> to vector<1xf32>
    %68 = vector.shape_cast %67 : vector<1xf32> to vector<1x1xf32>
    %69 = vector.broadcast %68 : vector<1x1xf32> to vector<1x64xf32>
    %70 = arith.subf %66, %69 : vector<1x64xf32>
    %71 = math.exp %70 : vector<1x64xf32>
    %cst_41 = arith.constant dense<0.000000e+00> : vector<1xf32>
    %72 = vector.multi_reduction <add>, %71, %cst_41 [1] : vector<1x64xf32> to vector<1xf32>
    %73 = vector.shape_cast %72 : vector<1xf32> to vector<1x1xf32>
    %74 = math.log %73 : vector<1x1xf32>
    %75 = vector.broadcast %74 : vector<1x1xf32> to vector<1x64xf32>
    %76 = arith.subf %70, %75 : vector<1x64xf32>
    %77 = arith.index_cast %c0_i32 : i32 to index
    %c0_42 = arith.constant 0 : index
    %c0_43 = arith.constant 0 : index
    %78 = vector.load %arg13[%77, %c0_42, %c0_43] : memref<6x1x256xf32, #tpu.memory_space<vmem>>, vector<1x1x64xf32>
    %79 = vector.shape_cast %78 : vector<1x1x64xf32> to vector<1x64xf32>
    %80 = vector.shape_cast %76 : vector<1x64xf32> to vector<1x1x64xf32>
    tpu.vector_store %arg13[%77, %c0_42, %c0_43], %80 {strides = array<i32>} : memref<6x1x256xf32, #tpu.memory_space<vmem>>, vector<1x1x64xf32>,
    %81 = arith.index_cast %c0_i32 : i32 to index
    %c0_44 = arith.constant 0 : index
    %c64 = arith.constant 64 : index
    %82 = vector.load %arg13[%81, %c0_44, %c64] : memref<6x1x256xf32, #tpu.memory_space<vmem>>, vector<1x1x32xf32>
    %83 = vector.shape_cast %82 : vector<1x1x32xf32> to vector<1x32xf32>
    %84 = vector.shape_cast %45 : vector<1x32xf32> to vector<1x1x32xf32>
    tpu.vector_store %arg13[%81, %c0_44, %c64], %84 {strides = array<i32>} : memref<6x1x256xf32, #tpu.memory_space<vmem>>, vector<1x1x32xf32>,
    %85 = arith.index_cast %c0_i32 : i32 to index
    %c0_45 = arith.constant 0 : index
    %c96 = arith.constant 96 : index
    %86 = vector.load %arg13[%85, %c0_45, %c96] : memref<6x1x256xf32, #tpu.memory_space<vmem>>, vector<1x1x32xf32>
    %87 = vector.shape_cast %86 : vector<1x1x32xf32> to vector<1x32xf32>
    %88 = vector.shape_cast %43 : vector<1x32xf32> to vector<1x1x32xf32>
    tpu.vector_store %arg13[%85, %c0_45, %c96], %88 {strides = array<i32>} : memref<6x1x256xf32, #tpu.memory_space<vmem>>, vector<1x1x32xf32>,
    %89 = arith.index_cast %c0_i32 : i32 to index
    %c0_46 = arith.constant 0 : index
    %c128 = arith.constant 128 : index
    %90 = vector.load %arg13[%89, %c0_46, %c128] : memref<6x1x256xf32, #tpu.memory_space<vmem>>, vector<1x1x16xf32>
    %91 = vector.shape_cast %90 : vector<1x1x16xf32> to vector<1x16xf32>
    %92 = vector.shape_cast %58 : vector<1x16xf32> to vector<1x1x16xf32>
    tpu.vector_store %arg13[%89, %c0_46, %c128], %92 {strides = array<i32>} : memref<6x1x256xf32, #tpu.memory_space<vmem>>, vector<1x1x16xf32>,
    %c1_i32 = arith.constant 1 : i32
    %93 = arith.index_cast %c1_i32 : i32 to index
    %c0_47 = arith.constant 0 : index
    %c0_48 = arith.constant 0 : index
    %94 = vector.load %arg0[%93, %c0_47, %c0_48] : memref<6x1x32xf32, #tpu.memory_space<vmem>>, vector<1x1x32xf32>
    %95 = vector.shape_cast %94 : vector<1x1x32xf32> to vector<1x32xf32>
    %cst_49 = arith.constant dense<0.000000e+00> : vector<1x128xf32>
    %96 = tpu.matmul %95, %2, %cst_49 {dimension_numbers = #tpu.dot_dimension_numbers<[1], [0], [0], [1], [0, 0, 1, 1], [], []>} : vector<1x32xf32>, vector<32x128xf32>, vector<1x128xf32> -> vector<1x128xf32>
    %cst_50 = arith.constant dense<0.000000e+00> : vector<1x128xf32>
    %97 = tpu.matmul %45, %3, %cst_50 {dimension_numbers = #tpu.dot_dimension_numbers<[1], [0], [0], [1], [0, 0, 1, 1], [], []>} : vector<1x32xf32>, vector<32x128xf32>, vector<1x128xf32> -> vector<1x128xf32>
    %98 = arith.addf %96, %97 : vector<1x128xf32>
    %99 = arith.addf %98, %4 : vector<1x128xf32>
    %100 = vector.extract_strided_slice %99 {offsets = [0, 0], sizes = [1, 32], strides = [1, 1]} : vector<1x128xf32> to vector<1x32xf32>
    %101 = arith.negf %100 : vector<1x32xf32>
    %102 = math.exp %101 : vector<1x32xf32>
    %cst_51 = arith.constant 1.000000e+00 : f32
    %103 = vector.broadcast %cst_51 : f32 to vector<1x32xf32>
    %104 = arith.addf %103, %102 : vector<1x32xf32>
    %105 = arith.divf %103, %104 : vector<1x32xf32>
    %106 = vector.extract_strided_slice %99 {offsets = [0, 32], sizes = [1, 32], strides = [1, 1]} : vector<1x128xf32> to vector<1x32xf32>
    %107 = arith.negf %106 : vector<1x32xf32>
    %108 = math.exp %107 : vector<1x32xf32>
    %cst_52 = arith.constant 1.000000e+00 : f32
    %109 = vector.broadcast %cst_52 : f32 to vector<1x32xf32>
    %110 = arith.addf %109, %108 : vector<1x32xf32>
    %111 = arith.divf %109, %110 : vector<1x32xf32>
    %112 = vector.extract_strided_slice %99 {offsets = [0, 64], sizes = [1, 32], strides = [1, 1]} : vector<1x128xf32> to vector<1x32xf32>
    %113 = math.tanh %112 : vector<1x32xf32>
    %114 = vector.extract_strided_slice %99 {offsets = [0, 96], sizes = [1, 32], strides = [1, 1]} : vector<1x128xf32> to vector<1x32xf32>
    %115 = arith.negf %114 : vector<1x32xf32>
    %116 = math.exp %115 : vector<1x32xf32>
    %cst_53 = arith.constant 1.000000e+00 : f32
    %117 = vector.broadcast %cst_53 : f32 to vector<1x32xf32>
    %118 = arith.addf %117, %116 : vector<1x32xf32>
    %119 = arith.divf %117, %118 : vector<1x32xf32>
    %120 = arith.mulf %111, %43 : vector<1x32xf32>
    %121 = arith.mulf %105, %113 : vector<1x32xf32>
    %122 = arith.addf %120, %121 : vector<1x32xf32>
    %123 = math.tanh %122 : vector<1x32xf32>
    %124 = arith.mulf %119, %123 : vector<1x32xf32>
    %cst_54 = arith.constant dense<0.000000e+00> : vector<1x48xf32>
    %125 = tpu.matmul %124, %5, %cst_54 {dimension_numbers = #tpu.dot_dimension_numbers<[1], [0], [0], [1], [0, 0, 1, 1], [], []>} : vector<1x32xf32>, vector<32x48xf32>, vector<1x48xf32> -> vector<1x48xf32>
    %126 = vector.extract_strided_slice %125 {offsets = [0, 0], sizes = [1, 16], strides = [1, 1]} : vector<1x48xf32> to vector<1x16xf32>
    %127 = arith.addf %126, %6 : vector<1x16xf32>
    %128 = vector.extract_strided_slice %125 {offsets = [0, 16], sizes = [1, 32], strides = [1, 1]} : vector<1x48xf32> to vector<1x32xf32>
    %cst_55 = arith.constant dense<0xFF800000> : vector<1xf32>
    %129 = vector.multi_reduction <maximumf>, %127, %cst_55 [1] : vector<1x16xf32> to vector<1xf32>
    %130 = vector.shape_cast %129 : vector<1xf32> to vector<1x1xf32>
    %131 = vector.broadcast %130 : vector<1x1xf32> to vector<1x16xf32>
    %132 = arith.subf %127, %131 : vector<1x16xf32>
    %133 = math.exp %132 : vector<1x16xf32>
    %cst_56 = arith.constant dense<0.000000e+00> : vector<1xf32>
    %134 = vector.multi_reduction <add>, %133, %cst_56 [1] : vector<1x16xf32> to vector<1xf32>
    %135 = vector.shape_cast %134 : vector<1xf32> to vector<1x1xf32>
    %136 = vector.broadcast %135 : vector<1x1xf32> to vector<1x16xf32>
    %137 = arith.divf %133, %136 : vector<1x16xf32>
    %cst_57 = arith.constant dense<0.000000e+00> : vector<1x32xf32>
    %138 = tpu.matmul %137, %7, %cst_57 {dimension_numbers = #tpu.dot_dimension_numbers<[1], [0], [0], [1], [0, 0, 1, 1], [], []>} : vector<1x16xf32>, vector<16x32xf32>, vector<1x32xf32> -> vector<1x32xf32>
    %cst_58 = arith.constant dense<0.000000e+00> : vector<1x32xf32>
    %139 = tpu.matmul %138, %8, %cst_58 {dimension_numbers = #tpu.dot_dimension_numbers<[1], [0], [0], [1], [0, 0, 1, 1], [], []>} : vector<1x32xf32>, vector<32x32xf32>, vector<1x32xf32> -> vector<1x32xf32>
    %140 = arith.addf %128, %139 : vector<1x32xf32>
    %141 = arith.addf %140, %9 : vector<1x32xf32>
    %cst_59 = arith.constant 0.000000e+00 : f32
    %142 = vector.broadcast %cst_59 : f32 to vector<1x32xf32>
    %143 = arith.maximumf %141, %142 : vector<1x32xf32>
    %cst_60 = arith.constant dense<0.000000e+00> : vector<1x64xf32>
    %144 = tpu.matmul %143, %10, %cst_60 {dimension_numbers = #tpu.dot_dimension_numbers<[1], [0], [0], [1], [0, 0, 1, 1], [], []>} : vector<1x32xf32>, vector<32x64xf32>, vector<1x64xf32> -> vector<1x64xf32>
    %145 = arith.addf %144, %11 : vector<1x64xf32>
    %cst_61 = arith.constant dense<0xFF800000> : vector<1xf32>
    %146 = vector.multi_reduction <maximumf>, %145, %cst_61 [1] : vector<1x64xf32> to vector<1xf32>
    %147 = vector.shape_cast %146 : vector<1xf32> to vector<1x1xf32>
    %148 = vector.broadcast %147 : vector<1x1xf32> to vector<1x64xf32>
    %149 = arith.subf %145, %148 : vector<1x64xf32>
    %150 = math.exp %149 : vector<1x64xf32>
    %cst_62 = arith.constant dense<0.000000e+00> : vector<1xf32>
    %151 = vector.multi_reduction <add>, %150, %cst_62 [1] : vector<1x64xf32> to vector<1xf32>
    %152 = vector.shape_cast %151 : vector<1xf32> to vector<1x1xf32>
    %153 = math.log %152 : vector<1x1xf32>
    %154 = vector.broadcast %153 : vector<1x1xf32> to vector<1x64xf32>
    %155 = arith.subf %149, %154 : vector<1x64xf32>
    %156 = arith.index_cast %c1_i32 : i32 to index
    %c0_63 = arith.constant 0 : index
    %c0_64 = arith.constant 0 : index
    %157 = vector.load %arg13[%156, %c0_63, %c0_64] : memref<6x1x256xf32, #tpu.memory_space<vmem>>, vector<1x1x64xf32>
    %158 = vector.shape_cast %157 : vector<1x1x64xf32> to vector<1x64xf32>
    %159 = vector.shape_cast %155 : vector<1x64xf32> to vector<1x1x64xf32>
    tpu.vector_store %arg13[%156, %c0_63, %c0_64], %159 {strides = array<i32>} : memref<6x1x256xf32, #tpu.memory_space<vmem>>, vector<1x1x64xf32>,
    %160 = arith.index_cast %c1_i32 : i32 to index
    %c0_65 = arith.constant 0 : index
    %c64_66 = arith.constant 64 : index
    %161 = vector.load %arg13[%160, %c0_65, %c64_66] : memref<6x1x256xf32, #tpu.memory_space<vmem>>, vector<1x1x32xf32>
    %162 = vector.shape_cast %161 : vector<1x1x32xf32> to vector<1x32xf32>
    %163 = vector.shape_cast %124 : vector<1x32xf32> to vector<1x1x32xf32>
    tpu.vector_store %arg13[%160, %c0_65, %c64_66], %163 {strides = array<i32>} : memref<6x1x256xf32, #tpu.memory_space<vmem>>, vector<1x1x32xf32>,
    %164 = arith.index_cast %c1_i32 : i32 to index
    %c0_67 = arith.constant 0 : index
    %c96_68 = arith.constant 96 : index
    %165 = vector.load %arg13[%164, %c0_67, %c96_68] : memref<6x1x256xf32, #tpu.memory_space<vmem>>, vector<1x1x32xf32>
    %166 = vector.shape_cast %165 : vector<1x1x32xf32> to vector<1x32xf32>
    %167 = vector.shape_cast %122 : vector<1x32xf32> to vector<1x1x32xf32>
    tpu.vector_store %arg13[%164, %c0_67, %c96_68], %167 {strides = array<i32>} : memref<6x1x256xf32, #tpu.memory_space<vmem>>, vector<1x1x32xf32>,
    %168 = arith.index_cast %c1_i32 : i32 to index
    %c0_69 = arith.constant 0 : index
    %c128_70 = arith.constant 128 : index
    %169 = vector.load %arg13[%168, %c0_69, %c128_70] : memref<6x1x256xf32, #tpu.memory_space<vmem>>, vector<1x1x16xf32>
    %170 = vector.shape_cast %169 : vector<1x1x16xf32> to vector<1x16xf32>
    %171 = vector.shape_cast %137 : vector<1x16xf32> to vector<1x1x16xf32>
    tpu.vector_store %arg13[%168, %c0_69, %c128_70], %171 {strides = array<i32>} : memref<6x1x256xf32, #tpu.memory_space<vmem>>, vector<1x1x16xf32>,
    %c2_i32 = arith.constant 2 : i32
    %172 = arith.index_cast %c2_i32 : i32 to index
    %c0_71 = arith.constant 0 : index
    %c0_72 = arith.constant 0 : index
    %173 = vector.load %arg0[%172, %c0_71, %c0_72] : memref<6x1x32xf32, #tpu.memory_space<vmem>>, vector<1x1x32xf32>
    %174 = vector.shape_cast %173 : vector<1x1x32xf32> to vector<1x32xf32>
    %cst_73 = arith.constant dense<0.000000e+00> : vector<1x128xf32>
    %175 = tpu.matmul %174, %2, %cst_73 {dimension_numbers = #tpu.dot_dimension_numbers<[1], [0], [0], [1], [0, 0, 1, 1], [], []>} : vector<1x32xf32>, vector<32x128xf32>, vector<1x128xf32> -> vector<1x128xf32>
    %cst_74 = arith.constant dense<0.000000e+00> : vector<1x128xf32>
    %176 = tpu.matmul %124, %3, %cst_74 {dimension_numbers = #tpu.dot_dimension_numbers<[1], [0], [0], [1], [0, 0, 1, 1], [], []>} : vector<1x32xf32>, vector<32x128xf32>, vector<1x128xf32> -> vector<1x128xf32>
    %177 = arith.addf %175, %176 : vector<1x128xf32>
    %178 = arith.addf %177, %4 : vector<1x128xf32>
    %179 = vector.extract_strided_slice %178 {offsets = [0, 0], sizes = [1, 32], strides = [1, 1]} : vector<1x128xf32> to vector<1x32xf32>
    %180 = arith.negf %179 : vector<1x32xf32>
    %181 = math.exp %180 : vector<1x32xf32>
    %cst_75 = arith.constant 1.000000e+00 : f32
    %182 = vector.broadcast %cst_75 : f32 to vector<1x32xf32>
    %183 = arith.addf %182, %181 : vector<1x32xf32>
    %184 = arith.divf %182, %183 : vector<1x32xf32>
    %185 = vector.extract_strided_slice %178 {offsets = [0, 32], sizes = [1, 32], strides = [1, 1]} : vector<1x128xf32> to vector<1x32xf32>
    %186 = arith.negf %185 : vector<1x32xf32>
    %187 = math.exp %186 : vector<1x32xf32>
    %cst_76 = arith.constant 1.000000e+00 : f32
    %188 = vector.broadcast %cst_76 : f32 to vector<1x32xf32>
    %189 = arith.addf %188, %187 : vector<1x32xf32>
    %190 = arith.divf %188, %189 : vector<1x32xf32>
    %191 = vector.extract_strided_slice %178 {offsets = [0, 64], sizes = [1, 32], strides = [1, 1]} : vector<1x128xf32> to vector<1x32xf32>
    %192 = math.tanh %191 : vector<1x32xf32>
    %193 = vector.extract_strided_slice %178 {offsets = [0, 96], sizes = [1, 32], strides = [1, 1]} : vector<1x128xf32> to vector<1x32xf32>
    %194 = arith.negf %193 : vector<1x32xf32>
    %195 = math.exp %194 : vector<1x32xf32>
    %cst_77 = arith.constant 1.000000e+00 : f32
    %196 = vector.broadcast %cst_77 : f32 to vector<1x32xf32>
    %197 = arith.addf %196, %195 : vector<1x32xf32>
    %198 = arith.divf %196, %197 : vector<1x32xf32>
    %199 = arith.mulf %190, %122 : vector<1x32xf32>
    %200 = arith.mulf %184, %192 : vector<1x32xf32>
    %201 = arith.addf %199, %200 : vector<1x32xf32>
    %202 = math.tanh %201 : vector<1x32xf32>
    %203 = arith.mulf %198, %202 : vector<1x32xf32>
    %cst_78 = arith.constant dense<0.000000e+00> : vector<1x48xf32>
    %204 = tpu.matmul %203, %5, %cst_78 {dimension_numbers = #tpu.dot_dimension_numbers<[1], [0], [0], [1], [0, 0, 1, 1], [], []>} : vector<1x32xf32>, vector<32x48xf32>, vector<1x48xf32> -> vector<1x48xf32>
    %205 = vector.extract_strided_slice %204 {offsets = [0, 0], sizes = [1, 16], strides = [1, 1]} : vector<1x48xf32> to vector<1x16xf32>
    %206 = arith.addf %205, %6 : vector<1x16xf32>
    %207 = vector.extract_strided_slice %204 {offsets = [0, 16], sizes = [1, 32], strides = [1, 1]} : vector<1x48xf32> to vector<1x32xf32>
    %cst_79 = arith.constant dense<0xFF800000> : vector<1xf32>
    %208 = vector.multi_reduction <maximumf>, %206, %cst_79 [1] : vector<1x16xf32> to vector<1xf32>
    %209 = vector.shape_cast %208 : vector<1xf32> to vector<1x1xf32>
    %210 = vector.broadcast %209 : vector<1x1xf32> to vector<1x16xf32>
    %211 = arith.subf %206, %210 : vector<1x16xf32>
    %212 = math.exp %211 : vector<1x16xf32>
    %cst_80 = arith.constant dense<0.000000e+00> : vector<1xf32>
    %213 = vector.multi_reduction <add>, %212, %cst_80 [1] : vector<1x16xf32> to vector<1xf32>
    %214 = vector.shape_cast %213 : vector<1xf32> to vector<1x1xf32>
    %215 = vector.broadcast %214 : vector<1x1xf32> to vector<1x16xf32>
    %216 = arith.divf %212, %215 : vector<1x16xf32>
    %cst_81 = arith.constant dense<0.000000e+00> : vector<1x32xf32>
    %217 = tpu.matmul %216, %7, %cst_81 {dimension_numbers = #tpu.dot_dimension_numbers<[1], [0], [0], [1], [0, 0, 1, 1], [], []>} : vector<1x16xf32>, vector<16x32xf32>, vector<1x32xf32> -> vector<1x32xf32>
    %cst_82 = arith.constant dense<0.000000e+00> : vector<1x32xf32>
    %218 = tpu.matmul %217, %8, %cst_82 {dimension_numbers = #tpu.dot_dimension_numbers<[1], [0], [0], [1], [0, 0, 1, 1], [], []>} : vector<1x32xf32>, vector<32x32xf32>, vector<1x32xf32> -> vector<1x32xf32>
    %219 = arith.addf %207, %218 : vector<1x32xf32>
    %220 = arith.addf %219, %9 : vector<1x32xf32>
    %cst_83 = arith.constant 0.000000e+00 : f32
    %221 = vector.broadcast %cst_83 : f32 to vector<1x32xf32>
    %222 = arith.maximumf %220, %221 : vector<1x32xf32>
    %cst_84 = arith.constant dense<0.000000e+00> : vector<1x64xf32>
    %223 = tpu.matmul %222, %10, %cst_84 {dimension_numbers = #tpu.dot_dimension_numbers<[1], [0], [0], [1], [0, 0, 1, 1], [], []>} : vector<1x32xf32>, vector<32x64xf32>, vector<1x64xf32> -> vector<1x64xf32>
    %224 = arith.addf %223, %11 : vector<1x64xf32>
    %cst_85 = arith.constant dense<0xFF800000> : vector<1xf32>
    %225 = vector.multi_reduction <maximumf>, %224, %cst_85 [1] : vector<1x64xf32> to vector<1xf32>
    %226 = vector.shape_cast %225 : vector<1xf32> to vector<1x1xf32>
    %227 = vector.broadcast %226 : vector<1x1xf32> to vector<1x64xf32>
    %228 = arith.subf %224, %227 : vector<1x64xf32>
    %229 = math.exp %228 : vector<1x64xf32>
    %cst_86 = arith.constant dense<0.000000e+00> : vector<1xf32>
    %230 = vector.multi_reduction <add>, %229, %cst_86 [1] : vector<1x64xf32> to vector<1xf32>
    %231 = vector.shape_cast %230 : vector<1xf32> to vector<1x1xf32>
    %232 = math.log %231 : vector<1x1xf32>
    %233 = vector.broadcast %232 : vector<1x1xf32> to vector<1x64xf32>
    %234 = arith.subf %228, %233 : vector<1x64xf32>
    %235 = arith.index_cast %c2_i32 : i32 to index
    %c0_87 = arith.constant 0 : index
    %c0_88 = arith.constant 0 : index
    %236 = vector.load %arg13[%235, %c0_87, %c0_88] : memref<6x1x256xf32, #tpu.memory_space<vmem>>, vector<1x1x64xf32>
    %237 = vector.shape_cast %236 : vector<1x1x64xf32> to vector<1x64xf32>
    %238 = vector.shape_cast %234 : vector<1x64xf32> to vector<1x1x64xf32>
    tpu.vector_store %arg13[%235, %c0_87, %c0_88], %238 {strides = array<i32>} : memref<6x1x256xf32, #tpu.memory_space<vmem>>, vector<1x1x64xf32>,
    %239 = arith.index_cast %c2_i32 : i32 to index
    %c0_89 = arith.constant 0 : index
    %c64_90 = arith.constant 64 : index
    %240 = vector.load %arg13[%239, %c0_89, %c64_90] : memref<6x1x256xf32, #tpu.memory_space<vmem>>, vector<1x1x32xf32>
    %241 = vector.shape_cast %240 : vector<1x1x32xf32> to vector<1x32xf32>
    %242 = vector.shape_cast %203 : vector<1x32xf32> to vector<1x1x32xf32>
    tpu.vector_store %arg13[%239, %c0_89, %c64_90], %242 {strides = array<i32>} : memref<6x1x256xf32, #tpu.memory_space<vmem>>, vector<1x1x32xf32>,
    %243 = arith.index_cast %c2_i32 : i32 to index
    %c0_91 = arith.constant 0 : index
    %c96_92 = arith.constant 96 : index
    %244 = vector.load %arg13[%243, %c0_91, %c96_92] : memref<6x1x256xf32, #tpu.memory_space<vmem>>, vector<1x1x32xf32>
    %245 = vector.shape_cast %244 : vector<1x1x32xf32> to vector<1x32xf32>
    %246 = vector.shape_cast %201 : vector<1x32xf32> to vector<1x1x32xf32>
    tpu.vector_store %arg13[%243, %c0_91, %c96_92], %246 {strides = array<i32>} : memref<6x1x256xf32, #tpu.memory_space<vmem>>, vector<1x1x32xf32>,
    %247 = arith.index_cast %c2_i32 : i32 to index
    %c0_93 = arith.constant 0 : index
    %c128_94 = arith.constant 128 : index
    %248 = vector.load %arg13[%247, %c0_93, %c128_94] : memref<6x1x256xf32, #tpu.memory_space<vmem>>, vector<1x1x16xf32>
    %249 = vector.shape_cast %248 : vector<1x1x16xf32> to vector<1x16xf32>
    %250 = vector.shape_cast %216 : vector<1x16xf32> to vector<1x1x16xf32>
    tpu.vector_store %arg13[%247, %c0_93, %c128_94], %250 {strides = array<i32>} : memref<6x1x256xf32, #tpu.memory_space<vmem>>, vector<1x1x16xf32>,
    %c3_i32 = arith.constant 3 : i32
    %251 = arith.index_cast %c3_i32 : i32 to index
    %c0_95 = arith.constant 0 : index
    %c0_96 = arith.constant 0 : index
    %252 = vector.load %arg0[%251, %c0_95, %c0_96] : memref<6x1x32xf32, #tpu.memory_space<vmem>>, vector<1x1x32xf32>
    %253 = vector.shape_cast %252 : vector<1x1x32xf32> to vector<1x32xf32>
    %cst_97 = arith.constant dense<0.000000e+00> : vector<1x128xf32>
    %254 = tpu.matmul %253, %2, %cst_97 {dimension_numbers = #tpu.dot_dimension_numbers<[1], [0], [0], [1], [0, 0, 1, 1], [], []>} : vector<1x32xf32>, vector<32x128xf32>, vector<1x128xf32> -> vector<1x128xf32>
    %cst_98 = arith.constant dense<0.000000e+00> : vector<1x128xf32>
    %255 = tpu.matmul %203, %3, %cst_98 {dimension_numbers = #tpu.dot_dimension_numbers<[1], [0], [0], [1], [0, 0, 1, 1], [], []>} : vector<1x32xf32>, vector<32x128xf32>, vector<1x128xf32> -> vector<1x128xf32>
    %256 = arith.addf %254, %255 : vector<1x128xf32>
    %257 = arith.addf %256, %4 : vector<1x128xf32>
    %258 = vector.extract_strided_slice %257 {offsets = [0, 0], sizes = [1, 32], strides = [1, 1]} : vector<1x128xf32> to vector<1x32xf32>
    %259 = arith.negf %258 : vector<1x32xf32>
    %260 = math.exp %259 : vector<1x32xf32>
    %cst_99 = arith.constant 1.000000e+00 : f32
    %261 = vector.broadcast %cst_99 : f32 to vector<1x32xf32>
    %262 = arith.addf %261, %260 : vector<1x32xf32>
    %263 = arith.divf %261, %262 : vector<1x32xf32>
    %264 = vector.extract_strided_slice %257 {offsets = [0, 32], sizes = [1, 32], strides = [1, 1]} : vector<1x128xf32> to vector<1x32xf32>
    %265 = arith.negf %264 : vector<1x32xf32>
    %266 = math.exp %265 : vector<1x32xf32>
    %cst_100 = arith.constant 1.000000e+00 : f32
    %267 = vector.broadcast %cst_100 : f32 to vector<1x32xf32>
    %268 = arith.addf %267, %266 : vector<1x32xf32>
    %269 = arith.divf %267, %268 : vector<1x32xf32>
    %270 = vector.extract_strided_slice %257 {offsets = [0, 64], sizes = [1, 32], strides = [1, 1]} : vector<1x128xf32> to vector<1x32xf32>
    %271 = math.tanh %270 : vector<1x32xf32>
    %272 = vector.extract_strided_slice %257 {offsets = [0, 96], sizes = [1, 32], strides = [1, 1]} : vector<1x128xf32> to vector<1x32xf32>
    %273 = arith.negf %272 : vector<1x32xf32>
    %274 = math.exp %273 : vector<1x32xf32>
    %cst_101 = arith.constant 1.000000e+00 : f32
    %275 = vector.broadcast %cst_101 : f32 to vector<1x32xf32>
    %276 = arith.addf %275, %274 : vector<1x32xf32>
    %277 = arith.divf %275, %276 : vector<1x32xf32>
    %278 = arith.mulf %269, %201 : vector<1x32xf32>
    %279 = arith.mulf %263, %271 : vector<1x32xf32>
    %280 = arith.addf %278, %279 : vector<1x32xf32>
    %281 = math.tanh %280 : vector<1x32xf32>
    %282 = arith.mulf %277, %281 : vector<1x32xf32>
    %cst_102 = arith.constant dense<0.000000e+00> : vector<1x48xf32>
    %283 = tpu.matmul %282, %5, %cst_102 {dimension_numbers = #tpu.dot_dimension_numbers<[1], [0], [0], [1], [0, 0, 1, 1], [], []>} : vector<1x32xf32>, vector<32x48xf32>, vector<1x48xf32> -> vector<1x48xf32>
    %284 = vector.extract_strided_slice %283 {offsets = [0, 0], sizes = [1, 16], strides = [1, 1]} : vector<1x48xf32> to vector<1x16xf32>
    %285 = arith.addf %284, %6 : vector<1x16xf32>
    %286 = vector.extract_strided_slice %283 {offsets = [0, 16], sizes = [1, 32], strides = [1, 1]} : vector<1x48xf32> to vector<1x32xf32>
    %cst_103 = arith.constant dense<0xFF800000> : vector<1xf32>
    %287 = vector.multi_reduction <maximumf>, %285, %cst_103 [1] : vector<1x16xf32> to vector<1xf32>
    %288 = vector.shape_cast %287 : vector<1xf32> to vector<1x1xf32>
    %289 = vector.broadcast %288 : vector<1x1xf32> to vector<1x16xf32>
    %290 = arith.subf %285, %289 : vector<1x16xf32>
    %291 = math.exp %290 : vector<1x16xf32>
    %cst_104 = arith.constant dense<0.000000e+00> : vector<1xf32>
    %292 = vector.multi_reduction <add>, %291, %cst_104 [1] : vector<1x16xf32> to vector<1xf32>
    %293 = vector.shape_cast %292 : vector<1xf32> to vector<1x1xf32>
    %294 = vector.broadcast %293 : vector<1x1xf32> to vector<1x16xf32>
    %295 = arith.divf %291, %294 : vector<1x16xf32>
    %cst_105 = arith.constant dense<0.000000e+00> : vector<1x32xf32>
    %296 = tpu.matmul %295, %7, %cst_105 {dimension_numbers = #tpu.dot_dimension_numbers<[1], [0], [0], [1], [0, 0, 1, 1], [], []>} : vector<1x16xf32>, vector<16x32xf32>, vector<1x32xf32> -> vector<1x32xf32>
    %cst_106 = arith.constant dense<0.000000e+00> : vector<1x32xf32>
    %297 = tpu.matmul %296, %8, %cst_106 {dimension_numbers = #tpu.dot_dimension_numbers<[1], [0], [0], [1], [0, 0, 1, 1], [], []>} : vector<1x32xf32>, vector<32x32xf32>, vector<1x32xf32> -> vector<1x32xf32>
    %298 = arith.addf %286, %297 : vector<1x32xf32>
    %299 = arith.addf %298, %9 : vector<1x32xf32>
    %cst_107 = arith.constant 0.000000e+00 : f32
    %300 = vector.broadcast %cst_107 : f32 to vector<1x32xf32>
    %301 = arith.maximumf %299, %300 : vector<1x32xf32>
    %cst_108 = arith.constant dense<0.000000e+00> : vector<1x64xf32>
    %302 = tpu.matmul %301, %10, %cst_108 {dimension_numbers = #tpu.dot_dimension_numbers<[1], [0], [0], [1], [0, 0, 1, 1], [], []>} : vector<1x32xf32>, vector<32x64xf32>, vector<1x64xf32> -> vector<1x64xf32>
    %303 = arith.addf %302, %11 : vector<1x64xf32>
    %cst_109 = arith.constant dense<0xFF800000> : vector<1xf32>
    %304 = vector.multi_reduction <maximumf>, %303, %cst_109 [1] : vector<1x64xf32> to vector<1xf32>
    %305 = vector.shape_cast %304 : vector<1xf32> to vector<1x1xf32>
    %306 = vector.broadcast %305 : vector<1x1xf32> to vector<1x64xf32>
    %307 = arith.subf %303, %306 : vector<1x64xf32>
    %308 = math.exp %307 : vector<1x64xf32>
    %cst_110 = arith.constant dense<0.000000e+00> : vector<1xf32>
    %309 = vector.multi_reduction <add>, %308, %cst_110 [1] : vector<1x64xf32> to vector<1xf32>
    %310 = vector.shape_cast %309 : vector<1xf32> to vector<1x1xf32>
    %311 = math.log %310 : vector<1x1xf32>
    %312 = vector.broadcast %311 : vector<1x1xf32> to vector<1x64xf32>
    %313 = arith.subf %307, %312 : vector<1x64xf32>
    %314 = arith.index_cast %c3_i32 : i32 to index
    %c0_111 = arith.constant 0 : index
    %c0_112 = arith.constant 0 : index
    %315 = vector.load %arg13[%314, %c0_111, %c0_112] : memref<6x1x256xf32, #tpu.memory_space<vmem>>, vector<1x1x64xf32>
    %316 = vector.shape_cast %315 : vector<1x1x64xf32> to vector<1x64xf32>
    %317 = vector.shape_cast %313 : vector<1x64xf32> to vector<1x1x64xf32>
    tpu.vector_store %arg13[%314, %c0_111, %c0_112], %317 {strides = array<i32>} : memref<6x1x256xf32, #tpu.memory_space<vmem>>, vector<1x1x64xf32>,
    %318 = arith.index_cast %c3_i32 : i32 to index
    %c0_113 = arith.constant 0 : index
    %c64_114 = arith.constant 64 : index
    %319 = vector.load %arg13[%318, %c0_113, %c64_114] : memref<6x1x256xf32, #tpu.memory_space<vmem>>, vector<1x1x32xf32>
    %320 = vector.shape_cast %319 : vector<1x1x32xf32> to vector<1x32xf32>
    %321 = vector.shape_cast %282 : vector<1x32xf32> to vector<1x1x32xf32>
    tpu.vector_store %arg13[%318, %c0_113, %c64_114], %321 {strides = array<i32>} : memref<6x1x256xf32, #tpu.memory_space<vmem>>, vector<1x1x32xf32>,
    %322 = arith.index_cast %c3_i32 : i32 to index
    %c0_115 = arith.constant 0 : index
    %c96_116 = arith.constant 96 : index
    %323 = vector.load %arg13[%322, %c0_115, %c96_116] : memref<6x1x256xf32, #tpu.memory_space<vmem>>, vector<1x1x32xf32>
    %324 = vector.shape_cast %323 : vector<1x1x32xf32> to vector<1x32xf32>
    %325 = vector.shape_cast %280 : vector<1x32xf32> to vector<1x1x32xf32>
    tpu.vector_store %arg13[%322, %c0_115, %c96_116], %325 {strides = array<i32>} : memref<6x1x256xf32, #tpu.memory_space<vmem>>, vector<1x1x32xf32>,
    %326 = arith.index_cast %c3_i32 : i32 to index
    %c0_117 = arith.constant 0 : index
    %c128_118 = arith.constant 128 : index
    %327 = vector.load %arg13[%326, %c0_117, %c128_118] : memref<6x1x256xf32, #tpu.memory_space<vmem>>, vector<1x1x16xf32>
    %328 = vector.shape_cast %327 : vector<1x1x16xf32> to vector<1x16xf32>
    %329 = vector.shape_cast %295 : vector<1x16xf32> to vector<1x1x16xf32>
    tpu.vector_store %arg13[%326, %c0_117, %c128_118], %329 {strides = array<i32>} : memref<6x1x256xf32, #tpu.memory_space<vmem>>, vector<1x1x16xf32>,
    %c4_i32 = arith.constant 4 : i32
    %330 = arith.index_cast %c4_i32 : i32 to index
    %c0_119 = arith.constant 0 : index
    %c0_120 = arith.constant 0 : index
    %331 = vector.load %arg0[%330, %c0_119, %c0_120] : memref<6x1x32xf32, #tpu.memory_space<vmem>>, vector<1x1x32xf32>
    %332 = vector.shape_cast %331 : vector<1x1x32xf32> to vector<1x32xf32>
    %cst_121 = arith.constant dense<0.000000e+00> : vector<1x128xf32>
    %333 = tpu.matmul %332, %2, %cst_121 {dimension_numbers = #tpu.dot_dimension_numbers<[1], [0], [0], [1], [0, 0, 1, 1], [], []>} : vector<1x32xf32>, vector<32x128xf32>, vector<1x128xf32> -> vector<1x128xf32>
    %cst_122 = arith.constant dense<0.000000e+00> : vector<1x128xf32>
    %334 = tpu.matmul %282, %3, %cst_122 {dimension_numbers = #tpu.dot_dimension_numbers<[1], [0], [0], [1], [0, 0, 1, 1], [], []>} : vector<1x32xf32>, vector<32x128xf32>, vector<1x128xf32> -> vector<1x128xf32>
    %335 = arith.addf %333, %334 : vector<1x128xf32>
    %336 = arith.addf %335, %4 : vector<1x128xf32>
    %337 = vector.extract_strided_slice %336 {offsets = [0, 0], sizes = [1, 32], strides = [1, 1]} : vector<1x128xf32> to vector<1x32xf32>
    %338 = arith.negf %337 : vector<1x32xf32>
    %339 = math.exp %338 : vector<1x32xf32>
    %cst_123 = arith.constant 1.000000e+00 : f32
    %340 = vector.broadcast %cst_123 : f32 to vector<1x32xf32>
    %341 = arith.addf %340, %339 : vector<1x32xf32>
    %342 = arith.divf %340, %341 : vector<1x32xf32>
    %343 = vector.extract_strided_slice %336 {offsets = [0, 32], sizes = [1, 32], strides = [1, 1]} : vector<1x128xf32> to vector<1x32xf32>
    %344 = arith.negf %343 : vector<1x32xf32>
    %345 = math.exp %344 : vector<1x32xf32>
    %cst_124 = arith.constant 1.000000e+00 : f32
    %346 = vector.broadcast %cst_124 : f32 to vector<1x32xf32>
    %347 = arith.addf %346, %345 : vector<1x32xf32>
    %348 = arith.divf %346, %347 : vector<1x32xf32>
    %349 = vector.extract_strided_slice %336 {offsets = [0, 64], sizes = [1, 32], strides = [1, 1]} : vector<1x128xf32> to vector<1x32xf32>
    %350 = math.tanh %349 : vector<1x32xf32>
    %351 = vector.extract_strided_slice %336 {offsets = [0, 96], sizes = [1, 32], strides = [1, 1]} : vector<1x128xf32> to vector<1x32xf32>
    %352 = arith.negf %351 : vector<1x32xf32>
    %353 = math.exp %352 : vector<1x32xf32>
    %cst_125 = arith.constant 1.000000e+00 : f32
    %354 = vector.broadcast %cst_125 : f32 to vector<1x32xf32>
    %355 = arith.addf %354, %353 : vector<1x32xf32>
    %356 = arith.divf %354, %355 : vector<1x32xf32>
    %357 = arith.mulf %348, %280 : vector<1x32xf32>
    %358 = arith.mulf %342, %350 : vector<1x32xf32>
    %359 = arith.addf %357, %358 : vector<1x32xf32>
    %360 = math.tanh %359 : vector<1x32xf32>
    %361 = arith.mulf %356, %360 : vector<1x32xf32>
    %cst_126 = arith.constant dense<0.000000e+00> : vector<1x48xf32>
    %362 = tpu.matmul %361, %5, %cst_126 {dimension_numbers = #tpu.dot_dimension_numbers<[1], [0], [0], [1], [0, 0, 1, 1], [], []>} : vector<1x32xf32>, vector<32x48xf32>, vector<1x48xf32> -> vector<1x48xf32>
    %363 = vector.extract_strided_slice %362 {offsets = [0, 0], sizes = [1, 16], strides = [1, 1]} : vector<1x48xf32> to vector<1x16xf32>
    %364 = arith.addf %363, %6 : vector<1x16xf32>
    %365 = vector.extract_strided_slice %362 {offsets = [0, 16], sizes = [1, 32], strides = [1, 1]} : vector<1x48xf32> to vector<1x32xf32>
    %cst_127 = arith.constant dense<0xFF800000> : vector<1xf32>
    %366 = vector.multi_reduction <maximumf>, %364, %cst_127 [1] : vector<1x16xf32> to vector<1xf32>
    %367 = vector.shape_cast %366 : vector<1xf32> to vector<1x1xf32>
    %368 = vector.broadcast %367 : vector<1x1xf32> to vector<1x16xf32>
    %369 = arith.subf %364, %368 : vector<1x16xf32>
    %370 = math.exp %369 : vector<1x16xf32>
    %cst_128 = arith.constant dense<0.000000e+00> : vector<1xf32>
    %371 = vector.multi_reduction <add>, %370, %cst_128 [1] : vector<1x16xf32> to vector<1xf32>
    %372 = vector.shape_cast %371 : vector<1xf32> to vector<1x1xf32>
    %373 = vector.broadcast %372 : vector<1x1xf32> to vector<1x16xf32>
    %374 = arith.divf %370, %373 : vector<1x16xf32>
    %cst_129 = arith.constant dense<0.000000e+00> : vector<1x32xf32>
    %375 = tpu.matmul %374, %7, %cst_129 {dimension_numbers = #tpu.dot_dimension_numbers<[1], [0], [0], [1], [0, 0, 1, 1], [], []>} : vector<1x16xf32>, vector<16x32xf32>, vector<1x32xf32> -> vector<1x32xf32>
    %cst_130 = arith.constant dense<0.000000e+00> : vector<1x32xf32>
    %376 = tpu.matmul %375, %8, %cst_130 {dimension_numbers = #tpu.dot_dimension_numbers<[1], [0], [0], [1], [0, 0, 1, 1], [], []>} : vector<1x32xf32>, vector<32x32xf32>, vector<1x32xf32> -> vector<1x32xf32>
    %377 = arith.addf %365, %376 : vector<1x32xf32>
    %378 = arith.addf %377, %9 : vector<1x32xf32>
    %cst_131 = arith.constant 0.000000e+00 : f32
    %379 = vector.broadcast %cst_131 : f32 to vector<1x32xf32>
    %380 = arith.maximumf %378, %379 : vector<1x32xf32>
    %cst_132 = arith.constant dense<0.000000e+00> : vector<1x64xf32>
    %381 = tpu.matmul %380, %10, %cst_132 {dimension_numbers = #tpu.dot_dimension_numbers<[1], [0], [0], [1], [0, 0, 1, 1], [], []>} : vector<1x32xf32>, vector<32x64xf32>, vector<1x64xf32> -> vector<1x64xf32>
    %382 = arith.addf %381, %11 : vector<1x64xf32>
    %cst_133 = arith.constant dense<0xFF800000> : vector<1xf32>
    %383 = vector.multi_reduction <maximumf>, %382, %cst_133 [1] : vector<1x64xf32> to vector<1xf32>
    %384 = vector.shape_cast %383 : vector<1xf32> to vector<1x1xf32>
    %385 = vector.broadcast %384 : vector<1x1xf32> to vector<1x64xf32>
    %386 = arith.subf %382, %385 : vector<1x64xf32>
    %387 = math.exp %386 : vector<1x64xf32>
    %cst_134 = arith.constant dense<0.000000e+00> : vector<1xf32>
    %388 = vector.multi_reduction <add>, %387, %cst_134 [1] : vector<1x64xf32> to vector<1xf32>
    %389 = vector.shape_cast %388 : vector<1xf32> to vector<1x1xf32>
    %390 = math.log %389 : vector<1x1xf32>
    %391 = vector.broadcast %390 : vector<1x1xf32> to vector<1x64xf32>
    %392 = arith.subf %386, %391 : vector<1x64xf32>
    %393 = arith.index_cast %c4_i32 : i32 to index
    %c0_135 = arith.constant 0 : index
    %c0_136 = arith.constant 0 : index
    %394 = vector.load %arg13[%393, %c0_135, %c0_136] : memref<6x1x256xf32, #tpu.memory_space<vmem>>, vector<1x1x64xf32>
    %395 = vector.shape_cast %394 : vector<1x1x64xf32> to vector<1x64xf32>
    %396 = vector.shape_cast %392 : vector<1x64xf32> to vector<1x1x64xf32>
    tpu.vector_store %arg13[%393, %c0_135, %c0_136], %396 {strides = array<i32>} : memref<6x1x256xf32, #tpu.memory_space<vmem>>, vector<1x1x64xf32>,
    %397 = arith.index_cast %c4_i32 : i32 to index
    %c0_137 = arith.constant 0 : index
    %c64_138 = arith.constant 64 : index
    %398 = vector.load %arg13[%397, %c0_137, %c64_138] : memref<6x1x256xf32, #tpu.memory_space<vmem>>, vector<1x1x32xf32>
    %399 = vector.shape_cast %398 : vector<1x1x32xf32> to vector<1x32xf32>
    %400 = vector.shape_cast %361 : vector<1x32xf32> to vector<1x1x32xf32>
    tpu.vector_store %arg13[%397, %c0_137, %c64_138], %400 {strides = array<i32>} : memref<6x1x256xf32, #tpu.memory_space<vmem>>, vector<1x1x32xf32>,
    %401 = arith.index_cast %c4_i32 : i32 to index
    %c0_139 = arith.constant 0 : index
    %c96_140 = arith.constant 96 : index
    %402 = vector.load %arg13[%401, %c0_139, %c96_140] : memref<6x1x256xf32, #tpu.memory_space<vmem>>, vector<1x1x32xf32>
    %403 = vector.shape_cast %402 : vector<1x1x32xf32> to vector<1x32xf32>
    %404 = vector.shape_cast %359 : vector<1x32xf32> to vector<1x1x32xf32>
    tpu.vector_store %arg13[%401, %c0_139, %c96_140], %404 {strides = array<i32>} : memref<6x1x256xf32, #tpu.memory_space<vmem>>, vector<1x1x32xf32>,
    %405 = arith.index_cast %c4_i32 : i32 to index
    %c0_141 = arith.constant 0 : index
    %c128_142 = arith.constant 128 : index
    %406 = vector.load %arg13[%405, %c0_141, %c128_142] : memref<6x1x256xf32, #tpu.memory_space<vmem>>, vector<1x1x16xf32>
    %407 = vector.shape_cast %406 : vector<1x1x16xf32> to vector<1x16xf32>
    %408 = vector.shape_cast %374 : vector<1x16xf32> to vector<1x1x16xf32>
    tpu.vector_store %arg13[%405, %c0_141, %c128_142], %408 {strides = array<i32>} : memref<6x1x256xf32, #tpu.memory_space<vmem>>, vector<1x1x16xf32>,
    %c5_i32 = arith.constant 5 : i32
    %409 = arith.index_cast %c5_i32 : i32 to index
    %c0_143 = arith.constant 0 : index
    %c0_144 = arith.constant 0 : index
    %410 = vector.load %arg0[%409, %c0_143, %c0_144] : memref<6x1x32xf32, #tpu.memory_space<vmem>>, vector<1x1x32xf32>
    %411 = vector.shape_cast %410 : vector<1x1x32xf32> to vector<1x32xf32>
    %cst_145 = arith.constant dense<0.000000e+00> : vector<1x128xf32>
    %412 = tpu.matmul %411, %2, %cst_145 {dimension_numbers = #tpu.dot_dimension_numbers<[1], [0], [0], [1], [0, 0, 1, 1], [], []>} : vector<1x32xf32>, vector<32x128xf32>, vector<1x128xf32> -> vector<1x128xf32>
    %cst_146 = arith.constant dense<0.000000e+00> : vector<1x128xf32>
    %413 = tpu.matmul %361, %3, %cst_146 {dimension_numbers = #tpu.dot_dimension_numbers<[1], [0], [0], [1], [0, 0, 1, 1], [], []>} : vector<1x32xf32>, vector<32x128xf32>, vector<1x128xf32> -> vector<1x128xf32>
    %414 = arith.addf %412, %413 : vector<1x128xf32>
    %415 = arith.addf %414, %4 : vector<1x128xf32>
    %416 = vector.extract_strided_slice %415 {offsets = [0, 0], sizes = [1, 32], strides = [1, 1]} : vector<1x128xf32> to vector<1x32xf32>
    %417 = arith.negf %416 : vector<1x32xf32>
    %418 = math.exp %417 : vector<1x32xf32>
    %cst_147 = arith.constant 1.000000e+00 : f32
    %419 = vector.broadcast %cst_147 : f32 to vector<1x32xf32>
    %420 = arith.addf %419, %418 : vector<1x32xf32>
    %421 = arith.divf %419, %420 : vector<1x32xf32>
    %422 = vector.extract_strided_slice %415 {offsets = [0, 32], sizes = [1, 32], strides = [1, 1]} : vector<1x128xf32> to vector<1x32xf32>
    %423 = arith.negf %422 : vector<1x32xf32>
    %424 = math.exp %423 : vector<1x32xf32>
    %cst_148 = arith.constant 1.000000e+00 : f32
    %425 = vector.broadcast %cst_148 : f32 to vector<1x32xf32>
    %426 = arith.addf %425, %424 : vector<1x32xf32>
    %427 = arith.divf %425, %426 : vector<1x32xf32>
    %428 = vector.extract_strided_slice %415 {offsets = [0, 64], sizes = [1, 32], strides = [1, 1]} : vector<1x128xf32> to vector<1x32xf32>
    %429 = math.tanh %428 : vector<1x32xf32>
    %430 = vector.extract_strided_slice %415 {offsets = [0, 96], sizes = [1, 32], strides = [1, 1]} : vector<1x128xf32> to vector<1x32xf32>
    %431 = arith.negf %430 : vector<1x32xf32>
    %432 = math.exp %431 : vector<1x32xf32>
    %cst_149 = arith.constant 1.000000e+00 : f32
    %433 = vector.broadcast %cst_149 : f32 to vector<1x32xf32>
    %434 = arith.addf %433, %432 : vector<1x32xf32>
    %435 = arith.divf %433, %434 : vector<1x32xf32>
    %436 = arith.mulf %427, %359 : vector<1x32xf32>
    %437 = arith.mulf %421, %429 : vector<1x32xf32>
    %438 = arith.addf %436, %437 : vector<1x32xf32>
    %439 = math.tanh %438 : vector<1x32xf32>
    %440 = arith.mulf %435, %439 : vector<1x32xf32>
    %cst_150 = arith.constant dense<0.000000e+00> : vector<1x48xf32>
    %441 = tpu.matmul %440, %5, %cst_150 {dimension_numbers = #tpu.dot_dimension_numbers<[1], [0], [0], [1], [0, 0, 1, 1], [], []>} : vector<1x32xf32>, vector<32x48xf32>, vector<1x48xf32> -> vector<1x48xf32>
    %442 = vector.extract_strided_slice %441 {offsets = [0, 0], sizes = [1, 16], strides = [1, 1]} : vector<1x48xf32> to vector<1x16xf32>
    %443 = arith.addf %442, %6 : vector<1x16xf32>
    %444 = vector.extract_strided_slice %441 {offsets = [0, 16], sizes = [1, 32], strides = [1, 1]} : vector<1x48xf32> to vector<1x32xf32>
    %cst_151 = arith.constant dense<0xFF800000> : vector<1xf32>
    %445 = vector.multi_reduction <maximumf>, %443, %cst_151 [1] : vector<1x16xf32> to vector<1xf32>
    %446 = vector.shape_cast %445 : vector<1xf32> to vector<1x1xf32>
    %447 = vector.broadcast %446 : vector<1x1xf32> to vector<1x16xf32>
    %448 = arith.subf %443, %447 : vector<1x16xf32>
    %449 = math.exp %448 : vector<1x16xf32>
    %cst_152 = arith.constant dense<0.000000e+00> : vector<1xf32>
    %450 = vector.multi_reduction <add>, %449, %cst_152 [1] : vector<1x16xf32> to vector<1xf32>
    %451 = vector.shape_cast %450 : vector<1xf32> to vector<1x1xf32>
    %452 = vector.broadcast %451 : vector<1x1xf32> to vector<1x16xf32>
    %453 = arith.divf %449, %452 : vector<1x16xf32>
    %cst_153 = arith.constant dense<0.000000e+00> : vector<1x32xf32>
    %454 = tpu.matmul %453, %7, %cst_153 {dimension_numbers = #tpu.dot_dimension_numbers<[1], [0], [0], [1], [0, 0, 1, 1], [], []>} : vector<1x16xf32>, vector<16x32xf32>, vector<1x32xf32> -> vector<1x32xf32>
    %cst_154 = arith.constant dense<0.000000e+00> : vector<1x32xf32>
    %455 = tpu.matmul %454, %8, %cst_154 {dimension_numbers = #tpu.dot_dimension_numbers<[1], [0], [0], [1], [0, 0, 1, 1], [], []>} : vector<1x32xf32>, vector<32x32xf32>, vector<1x32xf32> -> vector<1x32xf32>
    %456 = arith.addf %444, %455 : vector<1x32xf32>
    %457 = arith.addf %456, %9 : vector<1x32xf32>
    %cst_155 = arith.constant 0.000000e+00 : f32
    %458 = vector.broadcast %cst_155 : f32 to vector<1x32xf32>
    %459 = arith.maximumf %457, %458 : vector<1x32xf32>
    %cst_156 = arith.constant dense<0.000000e+00> : vector<1x64xf32>
    %460 = tpu.matmul %459, %10, %cst_156 {dimension_numbers = #tpu.dot_dimension_numbers<[1], [0], [0], [1], [0, 0, 1, 1], [], []>} : vector<1x32xf32>, vector<32x64xf32>, vector<1x64xf32> -> vector<1x64xf32>
    %461 = arith.addf %460, %11 : vector<1x64xf32>
    %cst_157 = arith.constant dense<0xFF800000> : vector<1xf32>
    %462 = vector.multi_reduction <maximumf>, %461, %cst_157 [1] : vector<1x64xf32> to vector<1xf32>
    %463 = vector.shape_cast %462 : vector<1xf32> to vector<1x1xf32>
    %464 = vector.broadcast %463 : vector<1x1xf32> to vector<1x64xf32>
    %465 = arith.subf %461, %464 : vector<1x64xf32>
    %466 = math.exp %465 : vector<1x64xf32>
    %cst_158 = arith.constant dense<0.000000e+00> : vector<1xf32>
    %467 = vector.multi_reduction <add>, %466, %cst_158 [1] : vector<1x64xf32> to vector<1xf32>
    %468 = vector.shape_cast %467 : vector<1xf32> to vector<1x1xf32>
    %469 = math.log %468 : vector<1x1xf32>
    %470 = vector.broadcast %469 : vector<1x1xf32> to vector<1x64xf32>
    %471 = arith.subf %465, %470 : vector<1x64xf32>
    %472 = arith.index_cast %c5_i32 : i32 to index
    %c0_159 = arith.constant 0 : index
    %c0_160 = arith.constant 0 : index
    %473 = vector.load %arg13[%472, %c0_159, %c0_160] : memref<6x1x256xf32, #tpu.memory_space<vmem>>, vector<1x1x64xf32>
    %474 = vector.shape_cast %473 : vector<1x1x64xf32> to vector<1x64xf32>
    %475 = vector.shape_cast %471 : vector<1x64xf32> to vector<1x1x64xf32>
    tpu.vector_store %arg13[%472, %c0_159, %c0_160], %475 {strides = array<i32>} : memref<6x1x256xf32, #tpu.memory_space<vmem>>, vector<1x1x64xf32>,
    %476 = arith.index_cast %c5_i32 : i32 to index
    %c0_161 = arith.constant 0 : index
    %c64_162 = arith.constant 64 : index
    %477 = vector.load %arg13[%476, %c0_161, %c64_162] : memref<6x1x256xf32, #tpu.memory_space<vmem>>, vector<1x1x32xf32>
    %478 = vector.shape_cast %477 : vector<1x1x32xf32> to vector<1x32xf32>
    %479 = vector.shape_cast %440 : vector<1x32xf32> to vector<1x1x32xf32>
    tpu.vector_store %arg13[%476, %c0_161, %c64_162], %479 {strides = array<i32>} : memref<6x1x256xf32, #tpu.memory_space<vmem>>, vector<1x1x32xf32>,
    %480 = arith.index_cast %c5_i32 : i32 to index
    %c0_163 = arith.constant 0 : index
    %c96_164 = arith.constant 96 : index
    %481 = vector.load %arg13[%480, %c0_163, %c96_164] : memref<6x1x256xf32, #tpu.memory_space<vmem>>, vector<1x1x32xf32>
    %482 = vector.shape_cast %481 : vector<1x1x32xf32> to vector<1x32xf32>
    %483 = vector.shape_cast %438 : vector<1x32xf32> to vector<1x1x32xf32>
    tpu.vector_store %arg13[%480, %c0_163, %c96_164], %483 {strides = array<i32>} : memref<6x1x256xf32, #tpu.memory_space<vmem>>, vector<1x1x32xf32>,
    %484 = arith.index_cast %c5_i32 : i32 to index
    %c0_165 = arith.constant 0 : index
    %c128_166 = arith.constant 128 : index
    %485 = vector.load %arg13[%484, %c0_165, %c128_166] : memref<6x1x256xf32, #tpu.memory_space<vmem>>, vector<1x1x16xf32>
    %486 = vector.shape_cast %485 : vector<1x1x16xf32> to vector<1x16xf32>
    %487 = vector.shape_cast %453 : vector<1x16xf32> to vector<1x1x16xf32>
    tpu.vector_store %arg13[%484, %c0_165, %c128_166], %487 {strides = array<i32>} : memref<6x1x256xf32, #tpu.memory_space<vmem>>, vector<1x1x16xf32>,
    %c6_i32 = arith.constant 6 : i32
    return
  }
}

</mosaic_0001>

<llo_original>
// kernel: tpu_custom_call.1
$region0: #{tpu_custom_call.1}
  #allocation0 [shape = 'u32[]', space=smem, size = 0x4, offset = 0x4, fixed_abs, tag = 'smem constant byte address 0x4 - core index']
  #allocation1 [shape = 'u32[144,128]{1,0:T(1,128)}', space=vmem, size = 0x12000, scoped, tag = 'internal scratch']
  %s0 = inlined_call_operand.hbm [shape: f32[6,1,32], index: 0, kind: input, shape index: {}]
  %s1 = inlined_call_operand.vmem [shape: f32[1,32], index: 1, kind: input, shape index: {}]
  %s2 = inlined_call_operand.vmem [shape: f32[1,32], index: 2, kind: input, shape index: {}]
  %s3 = inlined_call_operand.hbm [shape: f32[32,128], index: 3, kind: input, shape index: {}]
  %s4 = inlined_call_operand.hbm [shape: f32[32,128], index: 4, kind: input, shape index: {}]
  %s5 = inlined_call_operand.vmem [shape: f32[1,128], index: 5, kind: input, shape index: {}]
  %s6 = inlined_call_operand.hbm [shape: f32[32,48], index: 6, kind: input, shape index: {}]
  %s7 = inlined_call_operand.vmem [shape: f32[1,16], index: 7, kind: input, shape index: {}]
  %s8 = inlined_call_operand.hbm [shape: f32[16,32], index: 8, kind: input, shape index: {}]
  %s9 = inlined_call_operand.hbm [shape: f32[32,32], index: 9, kind: input, shape index: {}]
  %s10 = inlined_call_operand.vmem [shape: f32[1,32], index: 10, kind: input, shape index: {}]
  %s11 = inlined_call_operand.hbm [shape: f32[32,64], index: 11, kind: input, shape index: {}]
  %s12 = inlined_call_operand.vmem [shape: f32[1,64], index: 12, kind: input, shape index: {}]
  %s13 = inlined_call_operand.hbm [shape: f32[6,1,256], index: 13, kind: output, shape index: {}]
  %s14 = sld [smem:[#allocation0]]
  $region90: #{tpu_custom_call.1} parent=0
    _
  %s16 = ssub.s32 1, %s14
  %s17 = scalar_select 0, %s16, %s14
  $region1: #{tpu_custom_call.1} parent=0
    #allocation2 [shape = 'u8[3072]{0}', space=vmem, size = 0xc00, scoped, tag = 'input window, operand 0, single buffered']
    #allocation3 [shape = 's32[1]{0}', space=sflag, size = 0x4, scoped, tag = 'scoped memory for tpu_custom_call.1']
    #allocation4 [shape = 's32[1]{0}', space=sflag, size = 0x4, scoped, tag = 'scoped memory for tpu_custom_call.1']
    #allocation5 [shape = 'u8[16384]{0}', space=vmem, size = 0x4000, scoped, tag = 'input window, operand 3, single buffered']
    #allocation6 [shape = 's32[1]{0}', space=sflag, size = 0x4, scoped, tag = 'scoped memory for tpu_custom_call.1']
    #allocation7 [shape = 'u8[16384]{0}', space=vmem, size = 0x4000, scoped, tag = 'input window, operand 4, single buffered']
    #allocation8 [shape = 'u8[16384]{0}', space=vmem, size = 0x4000, scoped, tag = 'input window, operand 6, single buffered']
    #allocation9 [shape = 's32[1]{0}', space=sflag, size = 0x4, scoped, tag = 'scoped memory for tpu_custom_call.1']
    #allocation10 [shape = 'u8[8192]{0}', space=vmem, size = 0x2000, scoped, tag = 'input window, operand 8, single buffered']
    #allocation11 [shape = 'u8[16384]{0}', space=vmem, size = 0x4000, scoped, tag = 'input window, operand 9, single buffered']
    #allocation12 [shape = 's32[1]{0}', space=sflag, size = 0x4, scoped, tag = 'scoped memory for tpu_custom_call.1']
    #allocation13 [shape = 'u8[16384]{0}', space=vmem, size = 0x4000, scoped, tag = 'input window, operand 11, single buffered']
    #allocation14 [shape = 'u8[6144]{0}', space=vmem, size = 0x1800, scoped, tag = 'output window, operand 0, single buffered']
    %18 = vsyncpa [#allocation3], 0
    %19 = vsyncpa [#allocation6], 0
    %20 = vsyncpa [#allocation9], 0
    %21 = vsyncpa [#allocation12], 0
    %22 = vsyncpa [#allocation4], 0
    // Predicated region
    $region2: #{tpu_custom_call.1} parent=1 // pred_check
      _
    $region3: #{tpu_custom_call.1} parent=1 // pred_check_branch
      %24 = sbr.rel (0) target = $region5
    $region4: #{tpu_custom_call.1} parent=1 // pred_region
      %s26 = ssub.s32 96, 96
      %27 = vsyncadd [#allocation3], %s26
      %s28 = sshll.u32 [#allocation2], 4
      %s29 = int_to_ptr.vmem [resolvable:$true] %s28
      %34 = dma.hbm_to_vmem [thread:$0]  %s0, 96, %s29, [#allocation3], 16, 16, 1
    $region5: #{tpu_custom_call.1} parent=1 // pred_fallthru
      _
    // Predicated region
    $region6: #{tpu_custom_call.1} parent=1 // pred_check
      _
    $region7: #{tpu_custom_call.1} parent=1 // pred_check_branch
      %36 = sbr.rel (0) target = $region9
    $region8: #{tpu_custom_call.1} parent=1 // pred_region
      _
    $region9: #{tpu_custom_call.1} parent=1 // pred_fallthru
      _
    // Predicated region
    $region10: #{tpu_custom_call.1} parent=1 // pred_check
      _
    $region11: #{tpu_custom_call.1} parent=1 // pred_check_branch
      %38 = sbr.rel (0) target = $region13
    $region12: #{tpu_custom_call.1} parent=1 // pred_region
      _
    $region13: #{tpu_custom_call.1} parent=1 // pred_fallthru
      _
    // Predicated region
    $region14: #{tpu_custom_call.1} parent=1 // pred_check
      _
    $region15: #{tpu_custom_call.1} parent=1 // pred_check_branch
      %40 = sbr.rel (0) target = $region17
    $region16: #{tpu_custom_call.1} parent=1 // pred_region
      %s42 = ssub.s32 512, 512
      %43 = vsyncadd [#allocation6], %s42
      %s44 = sshll.u32 [#allocation5], 4
      %s45 = int_to_ptr.vmem [resolvable:$true] %s44
      %50 = dma.hbm_to_vmem [thread:$0]  %s3, 512, %s45, [#allocation6], 128, 128, 8
    $region17: #{tpu_custom_call.1} parent=1 // pred_fallthru
      _
    // Predicated region
    $region18: #{tpu_custom_call.1} parent=1 // pred_check
      _
    $region19: #{tpu_custom_call.1} parent=1 // pred_check_branch
      %52 = sbr.rel (0) target = $region21
    $region20: #{tpu_custom_call.1} parent=1 // pred_region
      %s54 = ssub.s32 512, 512
      %55 = vsyncadd [#allocation6], %s54
      %s56 = sshll.u32 [#allocation7], 4
      %s57 = int_to_ptr.vmem [resolvable:$true] %s56
      %62 = dma.hbm_to_vmem [thread:$0]  %s4, 512, %s57, [#allocation6], 128, 128, 8
    $region21: #{tpu_custom_call.1} parent=1 // pred_fallthru
      _
    // Predicated region
    $region22: #{tpu_custom_call.1} parent=1 // pred_check
      _
    $region23: #{tpu_custom_call.1} parent=1 // pred_check_branch
      %64 = sbr.rel (0) target = $region25
    $region24: #{tpu_custom_call.1} parent=1 // pred_region
      _
    $region25: #{tpu_custom_call.1} parent=1 // pred_fallthru
      _
    // Predicated region
    $region26: #{tpu_custom_call.1} parent=1 // pred_check
      _
    $region27: #{tpu_custom_call.1} parent=1 // pred_check_branch
      %66 = sbr.rel (0) target = $region29
    $region28: #{tpu_custom_call.1} parent=1 // pred_region
      %s68 = ssub.s32 512, 512
      %69 = vsyncadd [#allocation9], %s68
      %s70 = sshll.u32 [#allocation8], 4
      %s71 = int_to_ptr.vmem [resolvable:$true] %s70
      %76 = dma.hbm_to_vmem [thread:$0]  %s6, 512, %s71, [#allocation9], 128, 128, 8
    $region29: #{tpu_custom_call.1} parent=1 // pred_fallthru
      _
    // Predicated region
    $region30: #{tpu_custom_call.1} parent=1 // pred_check
      _
    $region31: #{tpu_custom_call.1} parent=1 // pred_check_branch
      %78 = sbr.rel (0) target = $region33
    $region32: #{tpu_custom_call.1} parent=1 // pred_region
      _
    $region33: #{tpu_custom_call.1} parent=1 // pred_fallthru
      _
    // Predicated region
    $region34: #{tpu_custom_call.1} parent=1 // pred_check
      _
    $region35: #{tpu_custom_call.1} parent=1 // pred_check_branch
      %80 = sbr.rel (0) target = $region37
    $region36: #{tpu_custom_call.1} parent=1 // pred_region
      %s82 = ssub.s32 256, 256
      %83 = vsyncadd [#allocation9], %s82
      %s84 = sshll.u32 [#allocation10], 4
      %s85 = int_to_ptr.vmem [resolvable:$true] %s84
      %90 = dma.hbm_to_vmem [thread:$0]  %s8, 256, %s85, [#allocation9], 128, 128, 8
    $region37: #{tpu_custom_call.1} parent=1 // pred_fallthru
      _
    // Predicated region
    $region38: #{tpu_custom_call.1} parent=1 // pred_check
      _
    $region39: #{tpu_custom_call.1} parent=1 // pred_check_branch
      %92 = sbr.rel (0) target = $region41
    $region40: #{tpu_custom_call.1} parent=1 // pred_region
      %s94 = ssub.s32 512, 512
      %95 = vsyncadd [#allocation12], %s94
      %s96 = sshll.u32 [#allocation11], 4
      %s97 = int_to_ptr.vmem [resolvable:$true] %s96
      %102 = dma.hbm_to_vmem [thread:$0]  %s9, 512, %s97, [#allocation12], 128, 128, 8
    $region41: #{tpu_custom_call.1} parent=1 // pred_fallthru
      _
    // Predicated region
    $region42: #{tpu_custom_call.1} parent=1 // pred_check
      _
    $region43: #{tpu_custom_call.1} parent=1 // pred_check_branch
      %104 = sbr.rel (0) target = $region45
    $region44: #{tpu_custom_call.1} parent=1 // pred_region
      _
    $region45: #{tpu_custom_call.1} parent=1 // pred_fallthru
      _
    // Predicated region
    $region46: #{tpu_custom_call.1} parent=1 // pred_check
      _
    $region47: #{tpu_custom_call.1} parent=1 // pred_check_branch
      %106 = sbr.rel (0) target = $region49
    $region48: #{tpu_custom_call.1} parent=1 // pred_region
      %s108 = ssub.s32 512, 512
      %109 = vsyncadd [#allocation12], %s108
      %s110 = sshll.u32 [#allocation13], 4
      %s111 = int_to_ptr.vmem [resolvable:$true] %s110
      %116 = dma.hbm_to_vmem [thread:$0]  %s11, 512, %s111, [#allocation12], 128, 128, 8
    $region49: #{tpu_custom_call.1} parent=1 // pred_fallthru
      _
    // Predicated region
    $region50: #{tpu_custom_call.1} parent=1 // pred_check
      _
    $region51: #{tpu_custom_call.1} parent=1 // pred_check_branch
      %118 = sbr.rel (0) target = $region53
    $region52: #{tpu_custom_call.1} parent=1 // pred_region
      _
    $region53: #{tpu_custom_call.1} parent=1 // pred_fallthru
      _
    // Predicated region
    $region54: #{tpu_custom_call.1} parent=1 // pred_check
      _
    $region55: #{tpu_custom_call.1} parent=1 // pred_check_branch
      %120 = sbr.rel (0) target = $region57
    $region56: #{tpu_custom_call.1} parent=1 // pred_region
      %121 = dma.done [#allocation3], 96
    $region57: #{tpu_custom_call.1} parent=1 // pred_fallthru
      _
    // Predicated region
    $region58: #{tpu_custom_call.1} parent=1 // pred_check
      _
    $region59: #{tpu_custom_call.1} parent=1 // pred_check_branch
      %123 = sbr.rel (0) target = $region61
    $region60: #{tpu_custom_call.1} parent=1 // pred_region
      %124 = dma.done [#allocation6], 512
    $region61: #{tpu_custom_call.1} parent=1 // pred_fallthru
      _
    // Predicated region
    $region62: #{tpu_custom_call.1} parent=1 // pred_check
      _
    $region63: #{tpu_custom_call.1} parent=1 // pred_check_branch
      %126 = sbr.rel (0) target = $region65
    $region64: #{tpu_custom_call.1} parent=1 // pred_region
      %127 = dma.done [#allocation6], 512
    $region65: #{tpu_custom_call.1} parent=1 // pred_fallthru
      _
    // Predicated region
    $region66: #{tpu_custom_call.1} parent=1 // pred_check
      _
    $region67: #{tpu_custom_call.1} parent=1 // pred_check_branch
      %129 = sbr.rel (0) target = $region69
    $region68: #{tpu_custom_call.1} parent=1 // pred_region
      %130 = dma.done [#allocation9], 512
    $region69: #{tpu_custom_call.1} parent=1 // pred_fallthru
      _
    // Predicated region
    $region70: #{tpu_custom_call.1} parent=1 // pred_check
      _
    $region71: #{tpu_custom_call.1} parent=1 // pred_check_branch
      %132 = sbr.rel (0) target = $region73
    $region72: #{tpu_custom_call.1} parent=1 // pred_region
      %133 = dma.done [#allocation9], 256
    $region73: #{tpu_custom_call.1} parent=1 // pred_fallthru
      _
    // Predicated region
    $region74: #{tpu_custom_call.1} parent=1 // pred_check
      _
    $region75: #{tpu_custom_call.1} parent=1 // pred_check_branch
      %135 = sbr.rel (0) target = $region77
    $region76: #{tpu_custom_call.1} parent=1 // pred_region
      %136 = dma.done [#allocation12], 512
    $region77: #{tpu_custom_call.1} parent=1 // pred_fallthru
      _
    // Predicated region
    $region78: #{tpu_custom_call.1} parent=1 // pred_check
      _
    $region79: #{tpu_custom_call.1} parent=1 // pred_check_branch
      %138 = sbr.rel (0) target = $region81
    $region80: #{tpu_custom_call.1} parent=1 // pred_region
      %139 = dma.done [#allocation12], 512
    $region81: #{tpu_custom_call.1} parent=1 // pred_fallthru
      _
    %v140 = vlaneseq
    %vm141 = vcmp.ge.s32.totalorder %v140, 0
    %vm142 = vcmp.lt.s32.totalorder %v140, 256
    %vm143 = vmand %vm141, %vm142
    %144 = vst.msk [vmem:[#allocation14] sm:$0x3] %vm143, 0.0
    %145 = vst.msk [vmem:[#allocation14 + $0x2] sm:$0x3] %vm143, 0.0
    %146 = vst.msk [vmem:[#allocation14 + $0x4] sm:$0x3] %vm143, 0.0
    %147 = vst.msk [vmem:[#allocation14 + $0x6] sm:$0x3] %vm143, 0.0
    %148 = vst.msk [vmem:[#allocation14 + $0x8] sm:$0x3] %vm143, 0.0
    %149 = vst.msk [vmem:[#allocation14 + $0xa] sm:$0x3] %vm143, 0.0
    %v150 = vld [vmem:[#allocation5] sm:$0xff]
    %v151 = vld [vmem:[#allocation5 + $0x8] sm:$0xff]
    %v152 = vld [vmem:[#allocation5 + $0x10] sm:$0xff]
    %v153 = vld [vmem:[#allocation5 + $0x18] sm:$0xff]
    %v154 = vld [vmem:[#allocation7] sm:$0xff]
    %v155 = vld [vmem:[#allocation7 + $0x8] sm:$0xff]
    %v156 = vld [vmem:[#allocation7 + $0x10] sm:$0xff]
    %v157 = vld [vmem:[#allocation7 + $0x18] sm:$0xff]
    %v158 = vld [vmem:[%s5] sm:$0x1]
    %v159 = vld [vmem:[#allocation8] sm:$0xff]
    %v160 = vld [vmem:[#allocation8 + $0x8] sm:$0xff]
    %v161 = vld [vmem:[#allocation8 + $0x10] sm:$0xff]
    %v162 = vld [vmem:[#allocation8 + $0x18] sm:$0xff]
    %v163 = vld [vmem:[%s7] sm:$0x1]
    %v164 = vld [vmem:[#allocation10] sm:$0xff]
    %v165 = vld [vmem:[#allocation10 + $0x8] sm:$0xff]
    %v166 = vld [vmem:[#allocation11] sm:$0xff]
    %v167 = vld [vmem:[#allocation11 + $0x8] sm:$0xff]
    %v168 = vld [vmem:[#allocation11 + $0x10] sm:$0xff]
    %v169 = vld [vmem:[#allocation11 + $0x18] sm:$0xff]
    %v170 = vld [vmem:[%s10] sm:$0x1]
    %v171 = vld [vmem:[#allocation13] sm:$0xff]
    %v172 = vld [vmem:[#allocation13 + $0x8] sm:$0xff]
    %v173 = vld [vmem:[#allocation13 + $0x10] sm:$0xff]
    %v174 = vld [vmem:[#allocation13 + $0x18] sm:$0xff]
    %v175 = vld [vmem:[%s12] sm:$0x1]
    %v176 = vld [vmem:[%s1] sm:$0x1]
    %v177 = vld [vmem:[%s2] sm:$0x1]
    %v178 = vld [vmem:[#allocation2] sm:$0x1]
    %vm179 = vcmask 261120
    %v181 = vsel %vm179, %v176, 0
    %183 = vmatprep.subr.mxu0 0.0
    %184 = vmatpush1.msra.mxu0 0.0
    %185 = vmatprep.subr.mxu0 0.0
    %186 = vmatpush1.msra.mxu0 0.0
    %187 = vmatprep.subr.mxu0 0.0
    %188 = vmatpush1.msra.mxu0 0.0
    %189 = vmatprep.subr.mxu0 0.0
    %190 = vmatpush1.msra.mxu0 0.0
    %191 = vmatprep.subr.mxu0 0.0
    %192 = vmatpush1.msra.mxu0 0.0
    %193 = vmatprep.subr.mxu0 0.0
    %194 = vmatpush1.msra.mxu0 0.0
    %195 = vmatprep.subr.mxu0 0.0
    %196 = vmatpush1.msra.mxu0 0.0
    %197 = vmatprep.subr.mxu0 0.0
    %198 = vmatpush1.msra.mxu0 0.0
    %199 = vmatprep.subr.mxu0 0.0
    %200 = vmatpush1.msra.mxu0 0.0
    %201 = vmatprep.subr.mxu0 0.0
    %202 = vmatpush1.msra.mxu0 0.0
    %203 = vmatprep.subr.mxu0 0.0
    %204 = vmatpush1.msra.mxu0 0.0
    %205 = vmatprep.subr.mxu0 0.0
    %206 = vmatpush1.msra.mxu0 0.0
    %207 = vmatprep.subr.mxu0 0.0
    %208 = vmatpush1.msra.mxu0 %v157
    %209 = vmatprep.subr.mxu0 0.0
    %210 = vmatpush1.msra.mxu0 %v156
    %211 = vmatprep.subr.mxu0 0.0
    %212 = vmatpush1.msra.mxu0 %v155
    %213 = vmatprep.subr.mxu0 0.0
    %214 = vmatpush1.msra.mxu0 %v154
    %215 = vmatprep.subr.mxu0 0.0
    %216 = vmatpush2.msra.mxu0 0.0
    %217 = vmatprep.subr.mxu0 0.0
    %218 = vmatpush2.msra.mxu0 0.0
    %219 = vmatprep.subr.mxu0 0.0
    %220 = vmatpush2.msra.mxu0 0.0
    %221 = vmatprep.subr.mxu0 0.0
    %222 = vmatpush2.msra.mxu0 0.0
    %223 = vmatprep.subr.mxu0 0.0
    %224 = vmatpush2.msra.mxu0 0.0
    %225 = vmatprep.subr.mxu0 0.0
    %226 = vmatpush2.msra.mxu0 0.0
    %227 = vmatprep.subr.mxu0 0.0
    %228 = vmatpush2.msra.mxu0 0.0
    %229 = vmatprep.subr.mxu0 0.0
    %230 = vmatpush2.msra.mxu0 0.0
    %231 = vmatprep.subr.mxu0 0.0
    %232 = vmatpush2.msra.mxu0 0.0
    %233 = vmatprep.subr.mxu0 0.0
    %234 = vmatpush2.msra.mxu0 0.0
    %235 = vmatprep.subr.mxu0 0.0
    %236 = vmatpush2.msra.mxu0 0.0
    %237 = vmatprep.subr.mxu0 0.0
    %238 = vmatpush2.msra.mxu0 0.0
    %239 = vmatprep.subr.mxu0 0.0
    %240 = vmatpush2.msra.mxu0 0.0
    %241 = vmatprep.subr.mxu0 0.0
    %242 = vmatpush2.msra.mxu0 0.0
    %243 = vmatprep.subr.mxu0 0.0
    %244 = vmatpush2.msra.mxu0 0.0
    %245 = vmatprep.subr.mxu0 0.0
    %246 = vmatpush2.msra.mxu0 0.0
    %247 = vmatprep.mubr.f32.mxu0 0.0
    %248 = vmatmul.mubr.f32.gmra.mxu0 %v181
    %v249 = vpop.f32.mrf.mxu0
    %v250 = vadd.f32 0.0, %v249
    %v251 = vpop.f32.mrf.mxu0
    %252 = vdwg.mxu0
    %v254 = vsel %vm179, %v178, 0
    %256 = vmatprep.subr.mxu0 0.0
    %257 = vmatpush1.msra.mxu0 0.0
    %258 = vmatprep.subr.mxu0 0.0
    %259 = vmatpush1.msra.mxu0 0.0
    %260 = vmatprep.subr.mxu0 0.0
    %261 = vmatpush1.msra.mxu0 0.0
    %262 = vmatprep.subr.mxu0 0.0
    %263 = vmatpush1.msra.mxu0 0.0
    %264 = vmatprep.subr.mxu0 0.0
    %265 = vmatpush1.msra.mxu0 0.0
    %266 = vmatprep.subr.mxu0 0.0
    %267 = vmatpush1.msra.mxu0 0.0
    %268 = vmatprep.subr.mxu0 0.0
    %269 = vmatpush1.msra.mxu0 0.0
    %270 = vmatprep.subr.mxu0 0.0
    %271 = vmatpush1.msra.mxu0 0.0
    %272 = vmatprep.subr.mxu0 0.0
    %273 = vmatpush1.msra.mxu0 0.0
    %274 = vmatprep.subr.mxu0 0.0
    %275 = vmatpush1.msra.mxu0 0.0
    %276 = vmatprep.subr.mxu0 0.0
    %277 = vmatpush1.msra.mxu0 0.0
    %278 = vmatprep.subr.mxu0 0.0
    %279 = vmatpush1.msra.mxu0 0.0
    %280 = vmatprep.subr.mxu0 0.0
    %281 = vmatpush1.msra.mxu0 %v153
    %282 = vmatprep.subr.mxu0 0.0
    %283 = vmatpush1.msra.mxu0 %v152
    %284 = vmatprep.subr.mxu0 0.0
    %285 = vmatpush1.msra.mxu0 %v151
    %286 = vmatprep.subr.mxu0 0.0
    %287 = vmatpush1.msra.mxu0 %v150
    %288 = vmatprep.subr.mxu0 0.0
    %289 = vmatpush2.msra.mxu0 0.0
    %290 = vmatprep.subr.mxu0 0.0
    %291 = vmatpush2.msra.mxu0 0.0
    %292 = vmatprep.subr.mxu0 0.0
    %293 = vmatpush2.msra.mxu0 0.0
    %294 = vmatprep.subr.mxu0 0.0
    %295 = vmatpush2.msra.mxu0 0.0
    %296 = vmatprep.subr.mxu0 0.0
    %297 = vmatpush2.msra.mxu0 0.0
    %298 = vmatprep.subr.mxu0 0.0
    %299 = vmatpush2.msra.mxu0 0.0
    %300 = vmatprep.subr.mxu0 0.0
    %301 = vmatpush2.msra.mxu0 0.0
    %302 = vmatprep.subr.mxu0 0.0
    %303 = vmatpush2.msra.mxu0 0.0
    %304 = vmatprep.subr.mxu0 0.0
    %305 = vmatpush2.msra.mxu0 0.0
    %306 = vmatprep.subr.mxu0 0.0
    %307 = vmatpush2.msra.mxu0 0.0
    %308 = vmatprep.subr.mxu0 0.0
    %309 = vmatpush2.msra.mxu0 0.0
    %310 = vmatprep.subr.mxu0 0.0
    %311 = vmatpush2.msra.mxu0 0.0
    %312 = vmatprep.subr.mxu0 0.0
    %313 = vmatpush2.msra.mxu0 0.0
    %314 = vmatprep.subr.mxu0 0.0
    %315 = vmatpush2.msra.mxu0 0.0
    %316 = vmatprep.subr.mxu0 0.0
    %317 = vmatpush2.msra.mxu0 0.0
    %318 = vmatprep.subr.mxu0 0.0
    %319 = vmatpush2.msra.mxu0 0.0
    %320 = vmatprep.mubr.f32.mxu0 0.0
    %321 = vmatmul.mubr.f32.gmra.mxu0 %v254
    %v322 = vpop.f32.mrf.mxu0
    %v323 = vadd.f32 %v250, %v322
    %v324 = vpop.f32.mrf.mxu0
    %325 = vdwg.mxu0
    %v326 = vadd.f32 %v323, %v158
    %v327 = vxor.u32 %v326, 2147483648
    %v328 = vmul.f32 %v327, 1.442695
    %v329 = vpow.pop %v328
    %v330 = vadd.f32 %v329, 1.0
    %v331 = vrcp.pop %v330
    %v332 = vmul.f32 1.0, %v331
    %v333 = vtanh.pop %v326
    %v335 = vlaneseq
    %v336 = vshrl.u32 %v335, 7
    %v337 = vsub.s32 0, %v336
    %v338 = vrot.slane %v177, %v337
    %339 = vrot.lane.b32.xlu0 %v338, 32
    %v340 = vpop.permute.xlu0 %339
    %v342 = vmul.f32 %v332, %v340
    %344 = vrot.lane.b32.xlu0 %v333, 64
    %v345 = vpop.permute.xlu0 %344
    %v347 = vmul.f32 %v332, %v345
    %349 = vrot.lane.b32.xlu0 %v347, 32
    %v350 = vpop.permute.xlu0 %349
    %v352 = vadd.f32 %v342, %v350
    %v353 = vtanh.pop %v352
    %355 = vrot.lane.b32.xlu0 %v353, 64
    %v356 = vpop.permute.xlu0 %355
    %v358 = vmul.f32 %v332, %v356
    %360 = vrot.lane.b32.xlu0 %v358, 32
    %v361 = vpop.permute.xlu0 %360
    %v362 = vsel %vm179, %v361, 0
    %364 = vmatprep.subr.mxu0 0.0
    %365 = vmatpush1.msra.mxu0 0.0
    %366 = vmatprep.subr.mxu0 0.0
    %367 = vmatpush1.msra.mxu0 0.0
    %368 = vmatprep.subr.mxu0 0.0
    %369 = vmatpush1.msra.mxu0 0.0
    %370 = vmatprep.subr.mxu0 0.0
    %371 = vmatpush1.msra.mxu0 0.0
    %372 = vmatprep.subr.mxu0 0.0
    %373 = vmatpush1.msra.mxu0 0.0
    %374 = vmatprep.subr.mxu0 0.0
    %375 = vmatpush1.msra.mxu0 0.0
    %376 = vmatprep.subr.mxu0 0.0
    %377 = vmatpush1.msra.mxu0 0.0
    %378 = vmatprep.subr.mxu0 0.0
    %379 = vmatpush1.msra.mxu0 0.0
    %380 = vmatprep.subr.mxu0 0.0
    %381 = vmatpush1.msra.mxu0 0.0
    %382 = vmatprep.subr.mxu0 0.0
    %383 = vmatpush1.msra.mxu0 0.0
    %384 = vmatprep.subr.mxu0 0.0
    %385 = vmatpush1.msra.mxu0 0.0
    %386 = vmatprep.subr.mxu0 0.0
    %387 = vmatpush1.msra.mxu0 0.0
    %388 = vmatprep.subr.mxu0 0.0
    %389 = vmatpush1.msra.mxu0 %v162
    %390 = vmatprep.subr.mxu0 0.0
    %391 = vmatpush1.msra.mxu0 %v161
    %392 = vmatprep.subr.mxu0 0.0
    %393 = vmatpush1.msra.mxu0 %v160
    %394 = vmatprep.subr.mxu0 0.0
    %395 = vmatpush1.msra.mxu0 %v159
    %396 = vmatprep.subr.mxu0 0.0
    %397 = vmatpush2.msra.mxu0 0.0
    %398 = vmatprep.subr.mxu0 0.0
    %399 = vmatpush2.msra.mxu0 0.0
    %400 = vmatprep.subr.mxu0 0.0
    %401 = vmatpush2.msra.mxu0 0.0
    %402 = vmatprep.subr.mxu0 0.0
    %403 = vmatpush2.msra.mxu0 0.0
    %404 = vmatprep.subr.mxu0 0.0
    %405 = vmatpush2.msra.mxu0 0.0
    %406 = vmatprep.subr.mxu0 0.0
    %407 = vmatpush2.msra.mxu0 0.0
    %408 = vmatprep.subr.mxu0 0.0
    %409 = vmatpush2.msra.mxu0 0.0
    %410 = vmatprep.subr.mxu0 0.0
    %411 = vmatpush2.msra.mxu0 0.0
    %412 = vmatprep.subr.mxu0 0.0
    %413 = vmatpush2.msra.mxu0 0.0
    %414 = vmatprep.subr.mxu0 0.0
    %415 = vmatpush2.msra.mxu0 0.0
    %416 = vmatprep.subr.mxu0 0.0
    %417 = vmatpush2.msra.mxu0 0.0
    %418 = vmatprep.subr.mxu0 0.0
    %419 = vmatpush2.msra.mxu0 0.0
    %420 = vmatprep.subr.mxu0 0.0
    %421 = vmatpush2.msra.mxu0 0.0
    %422 = vmatprep.subr.mxu0 0.0
    %423 = vmatpush2.msra.mxu0 0.0
    %424 = vmatprep.subr.mxu0 0.0
    %425 = vmatpush2.msra.mxu0 0.0
    %426 = vmatprep.subr.mxu0 0.0
    %427 = vmatpush2.msra.mxu0 0.0
    %428 = vmatprep.mubr.f32.mxu0 0.0
    %429 = vmatmul.mubr.f32.gmra.mxu0 %v362
    %v430 = vpop.f32.mrf.mxu0
    %v431 = vadd.f32 0.0, %v430
    %v432 = vpop.f32.mrf.mxu0
    %433 = vdwg.mxu0
    %v434 = vadd.f32 %v431, %v163
    %vm435 = vcmask 122880
    %v436 = vsel %vm435, %v434, -inf
    %437 = vmax.xlane.f32.xlu0 %v436
    %v438 = vpop.xlane.xlu0 %437
    %v439 = vsub.f32 %v434, %v438
    %v440 = vmul.f32 %v439, 1.442695
    %v441 = vpow.pop %v440
    %v442 = vsel %vm435, %v441, 0.0
    %443 = vadd.xlane.f32.xlu0 %v442
    %v444 = vpop.xlane.xlu0 %443
    %v445 = vrcp.pop %v444
    %v446 = vmul.f32 %v441, %v445
    %vm447 = vcmask 130048
    %v449 = vsel %vm447, %v446, 0
    %451 = vmatprep.subr.mxu0 0.0
    %452 = vmatpush1.msra.mxu0 0.0
    %453 = vmatprep.subr.mxu0 0.0
    %454 = vmatpush1.msra.mxu0 0.0
    %455 = vmatprep.subr.mxu0 0.0
    %456 = vmatpush1.msra.mxu0 0.0
    %457 = vmatprep.subr.mxu0 0.0
    %458 = vmatpush1.msra.mxu0 0.0
    %459 = vmatprep.subr.mxu0 0.0
    %460 = vmatpush1.msra.mxu0 0.0
    %461 = vmatprep.subr.mxu0 0.0
    %462 = vmatpush1.msra.mxu0 0.0
    %463 = vmatprep.subr.mxu0 0.0
    %464 = vmatpush1.msra.mxu0 0.0
    %465 = vmatprep.subr.mxu0 0.0
    %466 = vmatpush1.msra.mxu0 0.0
    %467 = vmatprep.subr.mxu0 0.0
    %468 = vmatpush1.msra.mxu0 0.0
    %469 = vmatprep.subr.mxu0 0.0
    %470 = vmatpush1.msra.mxu0 0.0
    %471 = vmatprep.subr.mxu0 0.0
    %472 = vmatpush1.msra.mxu0 0.0
    %473 = vmatprep.subr.mxu0 0.0
    %474 = vmatpush1.msra.mxu0 0.0
    %475 = vmatprep.subr.mxu0 0.0
    %476 = vmatpush1.msra.mxu0 0.0
    %477 = vmatprep.subr.mxu0 0.0
    %478 = vmatpush1.msra.mxu0 0.0
    %479 = vmatprep.subr.mxu0 0.0
    %480 = vmatpush1.msra.mxu0 %v165
    %481 = vmatprep.subr.mxu0 0.0
    %482 = vmatpush1.msra.mxu0 %v164
    %483 = vmatprep.subr.mxu0 0.0
    %484 = vmatpush2.msra.mxu0 0.0
    %485 = vmatprep.subr.mxu0 0.0
    %486 = vmatpush2.msra.mxu0 0.0
    %487 = vmatprep.subr.mxu0 0.0
    %488 = vmatpush2.msra.mxu0 0.0
    %489 = vmatprep.subr.mxu0 0.0
    %490 = vmatpush2.msra.mxu0 0.0
    %491 = vmatprep.subr.mxu0 0.0
    %492 = vmatpush2.msra.mxu0 0.0
    %493 = vmatprep.subr.mxu0 0.0
    %494 = vmatpush2.msra.mxu0 0.0
    %495 = vmatprep.subr.mxu0 0.0
    %496 = vmatpush2.msra.mxu0 0.0
    %497 = vmatprep.subr.mxu0 0.0
    %498 = vmatpush2.msra.mxu0 0.0
    %499 = vmatprep.subr.mxu0 0.0
    %500 = vmatpush2.msra.mxu0 0.0
    %501 = vmatprep.subr.mxu0 0.0
    %502 = vmatpush2.msra.mxu0 0.0
    %503 = vmatprep.subr.mxu0 0.0
    %504 = vmatpush2.msra.mxu0 0.0
    %505 = vmatprep.subr.mxu0 0.0
    %506 = vmatpush2.msra.mxu0 0.0
    %507 = vmatprep.subr.mxu0 0.0
    %508 = vmatpush2.msra.mxu0 0.0
    %509 = vmatprep.subr.mxu0 0.0
    %510 = vmatpush2.msra.mxu0 0.0
    %511 = vmatprep.subr.mxu0 0.0
    %512 = vmatpush2.msra.mxu0 0.0
    %513 = vmatprep.subr.mxu0 0.0
    %514 = vmatpush2.msra.mxu0 0.0
    %515 = vmatprep.mubr.f32.mxu0 0.0
    %516 = vmatmul.mubr.f32.gmra.mxu0 %v449
    %v517 = vpop.f32.mrf.mxu0
    %v518 = vadd.f32 0.0, %v517
    %v519 = vpop.f32.mrf.mxu0
    %520 = vdwg.mxu0
    %v522 = vsel %vm179, %v518, 0
    %524 = vmatprep.subr.mxu0 0.0
    %525 = vmatpush1.msra.mxu0 0.0
    %526 = vmatprep.subr.mxu0 0.0
    %527 = vmatpush1.msra.mxu0 0.0
    %528 = vmatprep.subr.mxu0 0.0
    %529 = vmatpush1.msra.mxu0 0.0
    %530 = vmatprep.subr.mxu0 0.0
    %531 = vmatpush1.msra.mxu0 0.0
    %532 = vmatprep.subr.mxu0 0.0
    %533 = vmatpush1.msra.mxu0 0.0
    %534 = vmatprep.subr.mxu0 0.0
    %535 = vmatpush1.msra.mxu0 0.0
    %536 = vmatprep.subr.mxu0 0.0
    %537 = vmatpush1.msra.mxu0 0.0
    %538 = vmatprep.subr.mxu0 0.0
    %539 = vmatpush1.msra.mxu0 0.0
    %540 = vmatprep.subr.mxu0 0.0
    %541 = vmatpush1.msra.mxu0 0.0
    %542 = vmatprep.subr.mxu0 0.0
    %543 = vmatpush1.msra.mxu0 0.0
    %544 = vmatprep.subr.mxu0 0.0
    %545 = vmatpush1.msra.mxu0 0.0
    %546 = vmatprep.subr.mxu0 0.0
    %547 = vmatpush1.msra.mxu0 0.0
    %548 = vmatprep.subr.mxu0 0.0
    %549 = vmatpush1.msra.mxu0 %v169
    %550 = vmatprep.subr.mxu0 0.0
    %551 = vmatpush1.msra.mxu0 %v168
    %552 = vmatprep.subr.mxu0 0.0
    %553 = vmatpush1.msra.mxu0 %v167
    %554 = vmatprep.subr.mxu0 0.0
    %555 = vmatpush1.msra.mxu0 %v166
    %556 = vmatprep.subr.mxu0 0.0
    %557 = vmatpush2.msra.mxu0 0.0
    %558 = vmatprep.subr.mxu0 0.0
    %559 = vmatpush2.msra.mxu0 0.0
    %560 = vmatprep.subr.mxu0 0.0
    %561 = vmatpush2.msra.mxu0 0.0
    %562 = vmatprep.subr.mxu0 0.0
    %563 = vmatpush2.msra.mxu0 0.0
    %564 = vmatprep.subr.mxu0 0.0
    %565 = vmatpush2.msra.mxu0 0.0
    %566 = vmatprep.subr.mxu0 0.0
    %567 = vmatpush2.msra.mxu0 0.0
    %568 = vmatprep.subr.mxu0 0.0
    %569 = vmatpush2.msra.mxu0 0.0
    %570 = vmatprep.subr.mxu0 0.0
    %571 = vmatpush2.msra.mxu0 0.0
    %572 = vmatprep.subr.mxu0 0.0
    %573 = vmatpush2.msra.mxu0 0.0
    %574 = vmatprep.subr.mxu0 0.0
    %575 = vmatpush2.msra.mxu0 0.0
    %576 = vmatprep.subr.mxu0 0.0
    %577 = vmatpush2.msra.mxu0 0.0
    %578 = vmatprep.subr.mxu0 0.0
    %579 = vmatpush2.msra.mxu0 0.0
    %580 = vmatprep.subr.mxu0 0.0
    %581 = vmatpush2.msra.mxu0 0.0
    %582 = vmatprep.subr.mxu0 0.0
    %583 = vmatpush2.msra.mxu0 0.0
    %584 = vmatprep.subr.mxu0 0.0
    %585 = vmatpush2.msra.mxu0 0.0
    %586 = vmatprep.subr.mxu0 0.0
    %587 = vmatpush2.msra.mxu0 0.0
    %588 = vmatprep.mubr.f32.mxu0 0.0
    %589 = vmatmul.mubr.f32.gmra.mxu0 %v522
    %v590 = vpop.f32.mrf.mxu0
    %v591 = vadd.f32 0.0, %v590
    %v592 = vpop.f32.mrf.mxu0
    %593 = vdwg.mxu0
    %595 = vrot.lane.b32.xlu0 %v591, 16
    %v596 = vpop.permute.xlu0 %595
    %v598 = vadd.f32 %v431, %v596
    %v600 = vlaneseq
    %v601 = vshrl.u32 %v600, 7
    %v602 = vsub.s32 0, %v601
    %v603 = vrot.slane %v170, %v602
    %604 = vrot.lane.b32.xlu0 %v603, 16
    %v605 = vpop.permute.xlu0 %604
    %v607 = vadd.f32 %v598, %v605
    %v608 = vmax.f32 %v607, 0.0
    %610 = vrot.lane.b32.xlu0 %v608, 112
    %v611 = vpop.permute.xlu0 %610
    %v612 = vsel %vm179, %v611, 0
    %614 = vmatprep.subr.mxu0 0.0
    %615 = vmatpush1.msra.mxu0 0.0
    %616 = vmatprep.subr.mxu0 0.0
    %617 = vmatpush1.msra.mxu0 0.0
    %618 = vmatprep.subr.mxu0 0.0
    %619 = vmatpush1.msra.mxu0 0.0
    %620 = vmatprep.subr.mxu0 0.0
    %621 = vmatpush1.msra.mxu0 0.0
    %622 = vmatprep.subr.mxu0 0.0
    %623 = vmatpush1.msra.mxu0 0.0
    %624 = vmatprep.subr.mxu0 0.0
    %625 = vmatpush1.msra.mxu0 0.0
    %626 = vmatprep.subr.mxu0 0.0
    %627 = vmatpush1.msra.mxu0 0.0
    %628 = vmatprep.subr.mxu0 0.0
    %629 = vmatpush1.msra.mxu0 0.0
    %630 = vmatprep.subr.mxu0 0.0
    %631 = vmatpush1.msra.mxu0 0.0
    %632 = vmatprep.subr.mxu0 0.0
    %633 = vmatpush1.msra.mxu0 0.0
    %634 = vmatprep.subr.mxu0 0.0
    %635 = vmatpush1.msra.mxu0 0.0
    %636 = vmatprep.subr.mxu0 0.0
    %637 = vmatpush1.msra.mxu0 0.0
    %638 = vmatprep.subr.mxu0 0.0
    %639 = vmatpush1.msra.mxu0 %v174
    %640 = vmatprep.subr.mxu0 0.0
    %641 = vmatpush1.msra.mxu0 %v173
    %642 = vmatprep.subr.mxu0 0.0
    %643 = vmatpush1.msra.mxu0 %v172
    %644 = vmatprep.subr.mxu0 0.0
    %645 = vmatpush1.msra.mxu0 %v171
    %646 = vmatprep.subr.mxu0 0.0
    %647 = vmatpush2.msra.mxu0 0.0
    %648 = vmatprep.subr.mxu0 0.0
    %649 = vmatpush2.msra.mxu0 0.0
    %650 = vmatprep.subr.mxu0 0.0
    %651 = vmatpush2.msra.mxu0 0.0
    %652 = vmatprep.subr.mxu0 0.0
    %653 = vmatpush2.msra.mxu0 0.0
    %654 = vmatprep.subr.mxu0 0.0
    %655 = vmatpush2.msra.mxu0 0.0
    %656 = vmatprep.subr.mxu0 0.0
    %657 = vmatpush2.msra.mxu0 0.0
    %658 = vmatprep.subr.mxu0 0.0
    %659 = vmatpush2.msra.mxu0 0.0
    %660 = vmatprep.subr.mxu0 0.0
    %661 = vmatpush2.msra.mxu0 0.0
    %662 = vmatprep.subr.mxu0 0.0
    %663 = vmatpush2.msra.mxu0 0.0
    %664 = vmatprep.subr.mxu0 0.0
    %665 = vmatpush2.msra.mxu0 0.0
    %666 = vmatprep.subr.mxu0 0.0
    %667 = vmatpush2.msra.mxu0 0.0
    %668 = vmatprep.subr.mxu0 0.0
    %669 = vmatpush2.msra.mxu0 0.0
    %670 = vmatprep.subr.mxu0 0.0
    %671 = vmatpush2.msra.mxu0 0.0
    %672 = vmatprep.subr.mxu0 0.0
    %673 = vmatpush2.msra.mxu0 0.0
    %674 = vmatprep.subr.mxu0 0.0
    %675 = vmatpush2.msra.mxu0 0.0
    %676 = vmatprep.subr.mxu0 0.0
    %677 = vmatpush2.msra.mxu0 0.0
    %678 = vmatprep.mubr.f32.mxu0 0.0
    %679 = vmatmul.mubr.f32.gmra.mxu0 %v612
    %v680 = vpop.f32.mrf.mxu0
    %v681 = vadd.f32 %v175, %v680
    %v682 = vpop.f32.mrf.mxu0
    %683 = vdwg.mxu0
    %vm684 = vcmask 516096
    %v685 = vsel %vm684, %v681, -inf
    %686 = vmax.xlane.f32.xlu0 %v685
    %v687 = vpop.xlane.xlu0 %686
    %v688 = vsub.f32 %v681, %v687
    %v689 = vmul.f32 %v688, 1.442695
    %v690 = vpow.pop %v689
    %v691 = vsel %vm684, %v690, 0.0
    %692 = vadd.xlane.f32.xlu0 %v691
    %v693 = vpop.xlane.xlu0 %692
    %v694 = vlog2.pop %v693
    %v695 = vmul.f32 %v694, 0.6931472
    %v696 = vsub.f32 %v688, %v695
    %vm697 = vcmp.lt.s32.totalorder %v140, 64
    %vm698 = vmand %vm141, %vm697
    %699 = vst.msk [vmem:[#allocation14] sm:$0x1] %vm698, %v696
    %v701 = vunpack.c.l.s4 1966171168
    %v702 = vunpack.c.0.s8 %v701
    %v703 = vlaneseq
    %v704 = vshrl.u32 %v703, 7
    %v705 = vsub.s32 %v702, %v704
    %v706 = vrot.slane %v358, %v705
    %v708 = vunpack.c.l.s4 1966171168
    %v709 = vunpack.c.0.s8 %v708
    %v710 = vlaneseq
    %v711 = vshrl.u32 %v710, 7
    %v712 = vsub.s32 %v709, %v711
    %v713 = vrot.slane %v706, %v712
    %714 = vrot.lane.b32.xlu0 %v713, 96
    %v715 = vpop.permute.xlu0 %714
    %vm717 = vcmp.ge.s32.totalorder %v140, 64
    %vm718 = vcmp.lt.s32.totalorder %v140, 96
    %vm719 = vmand %vm717, %vm718
    %720 = vst.msk [vmem:[#allocation14] sm:$0x1] %vm719, %v715
    %v723 = vunpack.c.l.s4 1966171168
    %v724 = vunpack.c.0.s8 %v723
    %v725 = vlaneseq
    %v726 = vshrl.u32 %v725, 7
    %v727 = vsub.s32 %v724, %v726
    %v728 = vrot.slane %v352, %v727
    %v730 = vunpack.c.l.s4 1966171168
    %v731 = vunpack.c.0.s8 %v730
    %v732 = vlaneseq
    %v733 = vshrl.u32 %v732, 7
    %v734 = vsub.s32 %v731, %v733
    %v735 = vrot.slane %v728, %v734
    %736 = vrot.lane.b32.xlu0 %v735, 64
    %v737 = vpop.permute.xlu0 %736
    %vm739 = vcmp.ge.s32.totalorder %v140, 96
    %vm740 = vcmp.lt.s32.totalorder %v140, 128
    %vm741 = vmand %vm739, %vm740
    %742 = vst.msk [vmem:[#allocation14] sm:$0x1] %vm741, %v737
    %vm743 = vcmp.lt.s32.totalorder %v140, 16
    %vm744 = vmand %vm141, %vm743
    %745 = vst.msk [vmem:[#allocation14 + $0x1] sm:$0x1] %vm744, %v446
    %s746 = scalar_lea.vmem [#allocation2], 1
    %v747 = vld [vmem:[%s746] sm:$0x1]
    %748 = vmatprep.subr.mxu0 0.0
    %749 = vmatpush1.msra.mxu0 0.0
    %750 = vmatprep.subr.mxu0 0.0
    %751 = vmatpush1.msra.mxu0 0.0
    %752 = vmatprep.subr.mxu0 0.0
    %753 = vmatpush1.msra.mxu0 0.0
    %754 = vmatprep.subr.mxu0 0.0
    %755 = vmatpush1.msra.mxu0 0.0
    %756 = vmatprep.subr.mxu0 0.0
    %757 = vmatpush1.msra.mxu0 0.0
    %758 = vmatprep.subr.mxu0 0.0
    %759 = vmatpush1.msra.mxu0 0.0
    %760 = vmatprep.subr.mxu0 0.0
    %761 = vmatpush1.msra.mxu0 0.0
    %762 = vmatprep.subr.mxu0 0.0
    %763 = vmatpush1.msra.mxu0 0.0
    %764 = vmatprep.subr.mxu0 0.0
    %765 = vmatpush1.msra.mxu0 0.0
    %766 = vmatprep.subr.mxu0 0.0
    %767 = vmatpush1.msra.mxu0 0.0
    %768 = vmatprep.subr.mxu0 0.0
    %769 = vmatpush1.msra.mxu0 0.0
    %770 = vmatprep.subr.mxu0 0.0
    %771 = vmatpush1.msra.mxu0 0.0
    %772 = vmatprep.subr.mxu0 0.0
    %773 = vmatpush1.msra.mxu0 %v157
    %774 = vmatprep.subr.mxu0 0.0
    %775 = vmatpush1.msra.mxu0 %v156
    %776 = vmatprep.subr.mxu0 0.0
    %777 = vmatpush1.msra.mxu0 %v155
    %778 = vmatprep.subr.mxu0 0.0
    %779 = vmatpush1.msra.mxu0 %v154
    %780 = vmatprep.subr.mxu0 0.0
    %781 = vmatpush2.msra.mxu0 0.0
    %782 = vmatprep.subr.mxu0 0.0
    %783 = vmatpush2.msra.mxu0 0.0
    %784 = vmatprep.subr.mxu0 0.0
    %785 = vmatpush2.msra.mxu0 0.0
    %786 = vmatprep.subr.mxu0 0.0
    %787 = vmatpush2.msra.mxu0 0.0
    %788 = vmatprep.subr.mxu0 0.0
    %789 = vmatpush2.msra.mxu0 0.0
    %790 = vmatprep.subr.mxu0 0.0
    %791 = vmatpush2.msra.mxu0 0.0
    %792 = vmatprep.subr.mxu0 0.0
    %793 = vmatpush2.msra.mxu0 0.0
    %794 = vmatprep.subr.mxu0 0.0
    %795 = vmatpush2.msra.mxu0 0.0
    %796 = vmatprep.subr.mxu0 0.0
    %797 = vmatpush2.msra.mxu0 0.0
    %798 = vmatprep.subr.mxu0 0.0
    %799 = vmatpush2.msra.mxu0 0.0
    %800 = vmatprep.subr.mxu0 0.0
    %801 = vmatpush2.msra.mxu0 0.0
    %802 = vmatprep.subr.mxu0 0.0
    %803 = vmatpush2.msra.mxu0 0.0
    %804 = vmatprep.subr.mxu0 0.0
    %805 = vmatpush2.msra.mxu0 0.0
    %806 = vmatprep.subr.mxu0 0.0
    %807 = vmatpush2.msra.mxu0 0.0
    %808 = vmatprep.subr.mxu0 0.0
    %809 = vmatpush2.msra.mxu0 0.0
    %810 = vmatprep.subr.mxu0 0.0
    %811 = vmatpush2.msra.mxu0 0.0
    %812 = vmatprep.mubr.f32.mxu0 0.0
    %813 = vmatmul.mubr.f32.gmra.mxu0 %v362
    %v814 = vpop.f32.mrf.mxu0
    %v815 = vadd.f32 0.0, %v814
    %v816 = vpop.f32.mrf.mxu0
    %817 = vdwg.mxu0
    %v819 = vsel %vm179, %v747, 0
    %821 = vmatprep.subr.mxu0 0.0
    %822 = vmatpush1.msra.mxu0 0.0
    %823 = vmatprep.subr.mxu0 0.0
    %824 = vmatpush1.msra.mxu0 0.0
    %825 = vmatprep.subr.mxu0 0.0
    %826 = vmatpush1.msra.mxu0 0.0
    %827 = vmatprep.subr.mxu0 0.0
    %828 = vmatpush1.msra.mxu0 0.0
    %829 = vmatprep.subr.mxu0 0.0
    %830 = vmatpush1.msra.mxu0 0.0
    %831 = vmatprep.subr.mxu0 0.0
    %832 = vmatpush1.msra.mxu0 0.0
    %833 = vmatprep.subr.mxu0 0.0
    %834 = vmatpush1.msra.mxu0 0.0
    %835 = vmatprep.subr.mxu0 0.0
    %836 = vmatpush1.msra.mxu0 0.0
    %837 = vmatprep.subr.mxu0 0.0
    %838 = vmatpush1.msra.mxu0 0.0
    %839 = vmatprep.subr.mxu0 0.0
    %840 = vmatpush1.msra.mxu0 0.0
    %841 = vmatprep.subr.mxu0 0.0
    %842 = vmatpush1.msra.mxu0 0.0
    %843 = vmatprep.subr.mxu0 0.0
    %844 = vmatpush1.msra.mxu0 0.0
    %845 = vmatprep.subr.mxu0 0.0
    %846 = vmatpush1.msra.mxu0 %v153
    %847 = vmatprep.subr.mxu0 0.0
    %848 = vmatpush1.msra.mxu0 %v152
    %849 = vmatprep.subr.mxu0 0.0
    %850 = vmatpush1.msra.mxu0 %v151
    %851 = vmatprep.subr.mxu0 0.0
    %852 = vmatpush1.msra.mxu0 %v150
    %853 = vmatprep.subr.mxu0 0.0
    %854 = vmatpush2.msra.mxu0 0.0
    %855 = vmatprep.subr.mxu0 0.0
    %856 = vmatpush2.msra.mxu0 0.0
    %857 = vmatprep.subr.mxu0 0.0
    %858 = vmatpush2.msra.mxu0 0.0
    %859 = vmatprep.subr.mxu0 0.0
    %860 = vmatpush2.msra.mxu0 0.0
    %861 = vmatprep.subr.mxu0 0.0
    %862 = vmatpush2.msra.mxu0 0.0
    %863 = vmatprep.subr.mxu0 0.0
    %864 = vmatpush2.msra.mxu0 0.0
    %865 = vmatprep.subr.mxu0 0.0
    %866 = vmatpush2.msra.mxu0 0.0
    %867 = vmatprep.subr.mxu0 0.0
    %868 = vmatpush2.msra.mxu0 0.0
    %869 = vmatprep.subr.mxu0 0.0
    %870 = vmatpush2.msra.mxu0 0.0
    %871 = vmatprep.subr.mxu0 0.0
    %872 = vmatpush2.msra.mxu0 0.0
    %873 = vmatprep.subr.mxu0 0.0
    %874 = vmatpush2.msra.mxu0 0.0
    %875 = vmatprep.subr.mxu0 0.0
    %876 = vmatpush2.msra.mxu0 0.0
    %877 = vmatprep.subr.mxu0 0.0
    %878 = vmatpush2.msra.mxu0 0.0
    %879 = vmatprep.subr.mxu0 0.0
    %880 = vmatpush2.msra.mxu0 0.0
    %881 = vmatprep.subr.mxu0 0.0
    %882 = vmatpush2.msra.mxu0 0.0
    %883 = vmatprep.subr.mxu0 0.0
    %884 = vmatpush2.msra.mxu0 0.0
    %885 = vmatprep.mubr.f32.mxu0 0.0
    %886 = vmatmul.mubr.f32.gmra.mxu0 %v819
    %v887 = vpop.f32.mrf.mxu0
    %v888 = vadd.f32 %v815, %v887
    %v889 = vpop.f32.mrf.mxu0
    %890 = vdwg.mxu0
    %v891 = vadd.f32 %v888, %v158
    %v892 = vxor.u32 %v891, 2147483648
    %v893 = vmul.f32 %v892, 1.442695
    %v894 = vpow.pop %v893
    %v895 = vadd.f32 %v894, 1.0
    %v896 = vrcp.pop %v895
    %v897 = vmul.f32 1.0, %v896
    %v898 = vtanh.pop %v891
    %v899 = vmul.f32 %v897, %v352
    %901 = vrot.lane.b32.xlu0 %v898, 64
    %v902 = vpop.permute.xlu0 %901
    %v904 = vmul.f32 %v897, %v902
    %906 = vrot.lane.b32.xlu0 %v904, 32
    %v907 = vpop.permute.xlu0 %906
    %v909 = vadd.f32 %v899, %v907
    %v910 = vtanh.pop %v909
    %912 = vrot.lane.b32.xlu0 %v910, 64
    %v913 = vpop.permute.xlu0 %912
    %v915 = vmul.f32 %v897, %v913
    %917 = vrot.lane.b32.xlu0 %v915, 32
    %v918 = vpop.permute.xlu0 %917
    %v919 = vsel %vm179, %v918, 0
    %921 = vmatprep.subr.mxu0 0.0
    %922 = vmatpush1.msra.mxu0 0.0
    %923 = vmatprep.subr.mxu0 0.0
    %924 = vmatpush1.msra.mxu0 0.0
    %925 = vmatprep.subr.mxu0 0.0
    %926 = vmatpush1.msra.mxu0 0.0
    %927 = vmatprep.subr.mxu0 0.0
    %928 = vmatpush1.msra.mxu0 0.0
    %929 = vmatprep.subr.mxu0 0.0
    %930 = vmatpush1.msra.mxu0 0.0
    %931 = vmatprep.subr.mxu0 0.0
    %932 = vmatpush1.msra.mxu0 0.0
    %933 = vmatprep.subr.mxu0 0.0
    %934 = vmatpush1.msra.mxu0 0.0
    %935 = vmatprep.subr.mxu0 0.0
    %936 = vmatpush1.msra.mxu0 0.0
    %937 = vmatprep.subr.mxu0 0.0
    %938 = vmatpush1.msra.mxu0 0.0
    %939 = vmatprep.subr.mxu0 0.0
    %940 = vmatpush1.msra.mxu0 0.0
    %941 = vmatprep.subr.mxu0 0.0
    %942 = vmatpush1.msra.mxu0 0.0
    %943 = vmatprep.subr.mxu0 0.0
    %944 = vmatpush1.msra.mxu0 0.0
    %945 = vmatprep.subr.mxu0 0.0
    %946 = vmatpush1.msra.mxu0 %v162
    %947 = vmatprep.subr.mxu0 0.0
    %948 = vmatpush1.msra.mxu0 %v161
    %949 = vmatprep.subr.mxu0 0.0
    %950 = vmatpush1.msra.mxu0 %v160
    %951 = vmatprep.subr.mxu0 0.0
    %952 = vmatpush1.msra.mxu0 %v159
    %953 = vmatprep.subr.mxu0 0.0
    %954 = vmatpush2.msra.mxu0 0.0
    %955 = vmatprep.subr.mxu0 0.0
    %956 = vmatpush2.msra.mxu0 0.0
    %957 = vmatprep.subr.mxu0 0.0
    %958 = vmatpush2.msra.mxu0 0.0
    %959 = vmatprep.subr.mxu0 0.0
    %960 = vmatpush2.msra.mxu0 0.0
    %961 = vmatprep.subr.mxu0 0.0
    %962 = vmatpush2.msra.mxu0 0.0
    %963 = vmatprep.subr.mxu0 0.0
    %964 = vmatpush2.msra.mxu0 0.0
    %965 = vmatprep.subr.mxu0 0.0
    %966 = vmatpush2.msra.mxu0 0.0
    %967 = vmatprep.subr.mxu0 0.0
    %968 = vmatpush2.msra.mxu0 0.0
    %969 = vmatprep.subr.mxu0 0.0
    %970 = vmatpush2.msra.mxu0 0.0
    %971 = vmatprep.subr.mxu0 0.0
    %972 = vmatpush2.msra.mxu0 0.0
    %973 = vmatprep.subr.mxu0 0.0
    %974 = vmatpush2.msra.mxu0 0.0
    %975 = vmatprep.subr.mxu0 0.0
    %976 = vmatpush2.msra.mxu0 0.0
    %977 = vmatprep.subr.mxu0 0.0
    %978 = vmatpush2.msra.mxu0 0.0
    %979 = vmatprep.subr.mxu0 0.0
    %980 = vmatpush2.msra.mxu0 0.0
    %981 = vmatprep.subr.mxu0 0.0
    %982 = vmatpush2.msra.mxu0 0.0
    %983 = vmatprep.subr.mxu0 0.0
    %984 = vmatpush2.msra.mxu0 0.0
    %985 = vmatprep.mubr.f32.mxu0 0.0
    %986 = vmatmul.mubr.f32.gmra.mxu0 %v919
    %v987 = vpop.f32.mrf.mxu0
    %v988 = vadd.f32 0.0, %v987
    %v989 = vpop.f32.mrf.mxu0
    %990 = vdwg.mxu0
    %v991 = vadd.f32 %v988, %v163
    %v992 = vsel %vm435, %v991, -inf
    %993 = vmax.xlane.f32.xlu0 %v992
    %v994 = vpop.xlane.xlu0 %993
    %v995 = vsub.f32 %v991, %v994
    %v996 = vmul.f32 %v995, 1.442695
    %v997 = vpow.pop %v996
    %v998 = vsel %vm435, %v997, 0.0
    %999 = vadd.xlane.f32.xlu0 %v998
    %v1000 = vpop.xlane.xlu0 %999
    %v1001 = vrcp.pop %v1000
    %v1002 = vmul.f32 %v997, %v1001
    %v1004 = vsel %vm447, %v1002, 0
    %1006 = vmatprep.subr.mxu0 0.0
    %1007 = vmatpush1.msra.mxu0 0.0
    %1008 = vmatprep.subr.mxu0 0.0
    %1009 = vmatpush1.msra.mxu0 0.0
    %1010 = vmatprep.subr.mxu0 0.0
    %1011 = vmatpush1.msra.mxu0 0.0
    %1012 = vmatprep.subr.mxu0 0.0
    %1013 = vmatpush1.msra.mxu0 0.0
    %1014 = vmatprep.subr.mxu0 0.0
    %1015 = vmatpush1.msra.mxu0 0.0
    %1016 = vmatprep.subr.mxu0 0.0
    %1017 = vmatpush1.msra.mxu0 0.0
    %1018 = vmatprep.subr.mxu0 0.0
    %1019 = vmatpush1.msra.mxu0 0.0
    %1020 = vmatprep.subr.mxu0 0.0
    %1021 = vmatpush1.msra.mxu0 0.0
    %1022 = vmatprep.subr.mxu0 0.0
    %1023 = vmatpush1.msra.mxu0 0.0
    %1024 = vmatprep.subr.mxu0 0.0
    %1025 = vmatpush1.msra.mxu0 0.0
    %1026 = vmatprep.subr.mxu0 0.0
    %1027 = vmatpush1.msra.mxu0 0.0
    %1028 = vmatprep.subr.mxu0 0.0
    %1029 = vmatpush1.msra.mxu0 0.0
    %1030 = vmatprep.subr.mxu0 0.0
    %1031 = vmatpush1.msra.mxu0 0.0
    %1032 = vmatprep.subr.mxu0 0.0
    %1033 = vmatpush1.msra.mxu0 0.0
    %1034 = vmatprep.subr.mxu0 0.0
    %1035 = vmatpush1.msra.mxu0 %v165
    %1036 = vmatprep.subr.mxu0 0.0
    %1037 = vmatpush1.msra.mxu0 %v164
    %1038 = vmatprep.subr.mxu0 0.0
    %1039 = vmatpush2.msra.mxu0 0.0
    %1040 = vmatprep.subr.mxu0 0.0
    %1041 = vmatpush2.msra.mxu0 0.0
    %1042 = vmatprep.subr.mxu0 0.0
    %1043 = vmatpush2.msra.mxu0 0.0
    %1044 = vmatprep.subr.mxu0 0.0
    %1045 = vmatpush2.msra.mxu0 0.0
    %1046 = vmatprep.subr.mxu0 0.0
    %1047 = vmatpush2.msra.mxu0 0.0
    %1048 = vmatprep.subr.mxu0 0.0
    %1049 = vmatpush2.msra.mxu0 0.0
    %1050 = vmatprep.subr.mxu0 0.0
    %1051 = vmatpush2.msra.mxu0 0.0
    %1052 = vmatprep.subr.mxu0 0.0
    %1053 = vmatpush2.msra.mxu0 0.0
    %1054 = vmatprep.subr.mxu0 0.0
    %1055 = vmatpush2.msra.mxu0 0.0
    %1056 = vmatprep.subr.mxu0 0.0
    %1057 = vmatpush2.msra.mxu0 0.0
    %1058 = vmatprep.subr.mxu0 0.0
    %1059 = vmatpush2.msra.mxu0 0.0
    %1060 = vmatprep.subr.mxu0 0.0
    %1061 = vmatpush2.msra.mxu0 0.0
    %1062 = vmatprep.subr.mxu0 0.0
    %1063 = vmatpush2.msra.mxu0 0.0
    %1064 = vmatprep.subr.mxu0 0.0
    %1065 = vmatpush2.msra.mxu0 0.0
    %1066 = vmatprep.subr.mxu0 0.0
    %1067 = vmatpush2.msra.mxu0 0.0
    %1068 = vmatprep.subr.mxu0 0.0
    %1069 = vmatpush2.msra.mxu0 0.0
    %1070 = vmatprep.mubr.f32.mxu0 0.0
    %1071 = vmatmul.mubr.f32.gmra.mxu0 %v1004
    %v1072 = vpop.f32.mrf.mxu0
    %v1073 = vadd.f32 0.0, %v1072
    %v1074 = vpop.f32.mrf.mxu0
    %1075 = vdwg.mxu0
    %v1077 = vsel %vm179, %v1073, 0
    %1079 = vmatprep.subr.mxu0 0.0
    %1080 = vmatpush1.msra.mxu0 0.0
    %1081 = vmatprep.subr.mxu0 0.0
    %1082 = vmatpush1.msra.mxu0 0.0
    %1083 = vmatprep.subr.mxu0 0.0
    %1084 = vmatpush1.msra.mxu0 0.0
    %1085 = vmatprep.subr.mxu0 0.0
    %1086 = vmatpush1.msra.mxu0 0.0
    %1087 = vmatprep.subr.mxu0 0.0
    %1088 = vmatpush1.msra.mxu0 0.0
    %1089 = vmatprep.subr.mxu0 0.0
    %1090 = vmatpush1.msra.mxu0 0.0
    %1091 = vmatprep.subr.mxu0 0.0
    %1092 = vmatpush1.msra.mxu0 0.0
    %1093 = vmatprep.subr.mxu0 0.0
    %1094 = vmatpush1.msra.mxu0 0.0
    %1095 = vmatprep.subr.mxu0 0.0
    %1096 = vmatpush1.msra.mxu0 0.0
    %1097 = vmatprep.subr.mxu0 0.0
    %1098 = vmatpush1.msra.mxu0 0.0
    %1099 = vmatprep.subr.mxu0 0.0
    %1100 = vmatpush1.msra.mxu0 0.0
    %1101 = vmatprep.subr.mxu0 0.0
    %1102 = vmatpush1.msra.mxu0 0.0
    %1103 = vmatprep.subr.mxu0 0.0
    %1104 = vmatpush1.msra.mxu0 %v169
    %1105 = vmatprep.subr.mxu0 0.0
    %1106 = vmatpush1.msra.mxu0 %v168
    %1107 = vmatprep.subr.mxu0 0.0
    %1108 = vmatpush1.msra.mxu0 %v167
    %1109 = vmatprep.subr.mxu0 0.0
    %1110 = vmatpush1.msra.mxu0 %v166
    %1111 = vmatprep.subr.mxu0 0.0
    %1112 = vmatpush2.msra.mxu0 0.0
    %1113 = vmatprep.subr.mxu0 0.0
    %1114 = vmatpush2.msra.mxu0 0.0
    %1115 = vmatprep.subr.mxu0 0.0
    %1116 = vmatpush2.msra.mxu0 0.0
    %1117 = vmatprep.subr.mxu0 0.0
    %1118 = vmatpush2.msra.mxu0 0.0
    %1119 = vmatprep.subr.mxu0 0.0
    %1120 = vmatpush2.msra.mxu0 0.0
    %1121 = vmatprep.subr.mxu0 0.0
    %1122 = vmatpush2.msra.mxu0 0.0
    %1123 = vmatprep.subr.mxu0 0.0
    %1124 = vmatpush2.msra.mxu0 0.0
    %1125 = vmatprep.subr.mxu0 0.0
    %1126 = vmatpush2.msra.mxu0 0.0
    %1127 = vmatprep.subr.mxu0 0.0
    %1128 = vmatpush2.msra.mxu0 0.0
    %1129 = vmatprep.subr.mxu0 0.0
    %1130 = vmatpush2.msra.mxu0 0.0
    %1131 = vmatprep.subr.mxu0 0.0
    %1132 = vmatpush2.msra.mxu0 0.0
    %1133 = vmatprep.subr.mxu0 0.0
    %1134 = vmatpush2.msra.mxu0 0.0
    %1135 = vmatprep.subr.mxu0 0.0
    %1136 = vmatpush2.msra.mxu0 0.0
    %1137 = vmatprep.subr.mxu0 0.0
    %1138 = vmatpush2.msra.mxu0 0.0
    %1139 = vmatprep.subr.mxu0 0.0
    %1140 = vmatpush2.msra.mxu0 0.0
    %1141 = vmatprep.subr.mxu0 0.0
    %1142 = vmatpush2.msra.mxu0 0.0
    %1143 = vmatprep.mubr.f32.mxu0 0.0
    %1144 = vmatmul.mubr.f32.gmra.mxu0 %v1077
    %v1145 = vpop.f32.mrf.mxu0
    %v1146 = vadd.f32 0.0, %v1145
    %v1147 = vpop.f32.mrf.mxu0
    %1148 = vdwg.mxu0
    %1150 = vrot.lane.b32.xlu0 %v1146, 16
    %v1151 = vpop.permute.xlu0 %1150
    %v1153 = vadd.f32 %v988, %v1151
    %v1154 = vadd.f32 %v1153, %v605
    %v1155 = vmax.f32 %v1154, 0.0
    %1157 = vrot.lane.b32.xlu0 %v1155, 112
    %v1158 = vpop.permute.xlu0 %1157
    %v1159 = vsel %vm179, %v1158, 0
    %1161 = vmatprep.subr.mxu0 0.0
    %1162 = vmatpush1.msra.mxu0 0.0
    %1163 = vmatprep.subr.mxu0 0.0
    %1164 = vmatpush1.msra.mxu0 0.0
    %1165 = vmatprep.subr.mxu0 0.0
    %1166 = vmatpush1.msra.mxu0 0.0
    %1167 = vmatprep.subr.mxu0 0.0
    %1168 = vmatpush1.msra.mxu0 0.0
    %1169 = vmatprep.subr.mxu0 0.0
    %1170 = vmatpush1.msra.mxu0 0.0
    %1171 = vmatprep.subr.mxu0 0.0
    %1172 = vmatpush1.msra.mxu0 0.0
    %1173 = vmatprep.subr.mxu0 0.0
    %1174 = vmatpush1.msra.mxu0 0.0
    %1175 = vmatprep.subr.mxu0 0.0
    %1176 = vmatpush1.msra.mxu0 0.0
    %1177 = vmatprep.subr.mxu0 0.0
    %1178 = vmatpush1.msra.mxu0 0.0
    %1179 = vmatprep.subr.mxu0 0.0
    %1180 = vmatpush1.msra.mxu0 0.0
    %1181 = vmatprep.subr.mxu0 0.0
    %1182 = vmatpush1.msra.mxu0 0.0
    %1183 = vmatprep.subr.mxu0 0.0
    %1184 = vmatpush1.msra.mxu0 0.0
    %1185 = vmatprep.subr.mxu0 0.0
    %1186 = vmatpush1.msra.mxu0 %v174
    %1187 = vmatprep.subr.mxu0 0.0
    %1188 = vmatpush1.msra.mxu0 %v173
    %1189 = vmatprep.subr.mxu0 0.0
    %1190 = vmatpush1.msra.mxu0 %v172
    %1191 = vmatprep.subr.mxu0 0.0
    %1192 = vmatpush1.msra.mxu0 %v171
    %1193 = vmatprep.subr.mxu0 0.0
    %1194 = vmatpush2.msra.mxu0 0.0
    %1195 = vmatprep.subr.mxu0 0.0
    %1196 = vmatpush2.msra.mxu0 0.0
    %1197 = vmatprep.subr.mxu0 0.0
    %1198 = vmatpush2.msra.mxu0 0.0
    %1199 = vmatprep.subr.mxu0 0.0
    %1200 = vmatpush2.msra.mxu0 0.0
    %1201 = vmatprep.subr.mxu0 0.0
    %1202 = vmatpush2.msra.mxu0 0.0
    %1203 = vmatprep.subr.mxu0 0.0
    %1204 = vmatpush2.msra.mxu0 0.0
    %1205 = vmatprep.subr.mxu0 0.0
    %1206 = vmatpush2.msra.mxu0 0.0
    %1207 = vmatprep.subr.mxu0 0.0
    %1208 = vmatpush2.msra.mxu0 0.0
    %1209 = vmatprep.subr.mxu0 0.0
    %1210 = vmatpush2.msra.mxu0 0.0
    %1211 = vmatprep.subr.mxu0 0.0
    %1212 = vmatpush2.msra.mxu0 0.0
    %1213 = vmatprep.subr.mxu0 0.0
    %1214 = vmatpush2.msra.mxu0 0.0
    %1215 = vmatprep.subr.mxu0 0.0
    %1216 = vmatpush2.msra.mxu0 0.0
    %1217 = vmatprep.subr.mxu0 0.0
    %1218 = vmatpush2.msra.mxu0 0.0
    %1219 = vmatprep.subr.mxu0 0.0
    %1220 = vmatpush2.msra.mxu0 0.0
    %1221 = vmatprep.subr.mxu0 0.0
    %1222 = vmatpush2.msra.mxu0 0.0
    %1223 = vmatprep.subr.mxu0 0.0
    %1224 = vmatpush2.msra.mxu0 0.0
    %1225 = vmatprep.mubr.f32.mxu0 0.0
    %1226 = vmatmul.mubr.f32.gmra.mxu0 %v1159
    %v1227 = vpop.f32.mrf.mxu0
    %v1228 = vadd.f32 %v175, %v1227
    %v1229 = vpop.f32.mrf.mxu0
    %1230 = vdwg.mxu0
    %v1231 = vsel %vm684, %v1228, -inf
    %1232 = vmax.xlane.f32.xlu0 %v1231
    %v1233 = vpop.xlane.xlu0 %1232
    %v1234 = vsub.f32 %v1228, %v1233
    %v1235 = vmul.f32 %v1234, 1.442695
    %v1236 = vpow.pop %v1235
    %v1237 = vsel %vm684, %v1236, 0.0
    %1238 = vadd.xlane.f32.xlu0 %v1237
    %v1239 = vpop.xlane.xlu0 %1238
    %v1240 = vlog2.pop %v1239
    %v1241 = vmul.f32 %v1240, 0.6931472
    %v1242 = vsub.f32 %v1234, %v1241
    %s1243 = scalar_lea.vmem [#allocation14], 2
    %1244 = vst.msk [vmem:[%s1243] sm:$0x1] %vm698, %v1242
    %v1246 = vunpack.c.l.s4 1966171168
    %v1247 = vunpack.c.0.s8 %v1246
    %v1248 = vlaneseq
    %v1249 = vshrl.u32 %v1248, 7
    %v1250 = vsub.s32 %v1247, %v1249
    %v1251 = vrot.slane %v915, %v1250
    %v1253 = vunpack.c.l.s4 1966171168
    %v1254 = vunpack.c.0.s8 %v1253
    %v1255 = vlaneseq
    %v1256 = vshrl.u32 %v1255, 7
    %v1257 = vsub.s32 %v1254, %v1256
    %v1258 = vrot.slane %v1251, %v1257
    %1259 = vrot.lane.b32.xlu0 %v1258, 96
    %v1260 = vpop.permute.xlu0 %1259
    %1262 = vst.msk [vmem:[%s1243] sm:$0x1] %vm719, %v1260
    %v1265 = vunpack.c.l.s4 1966171168
    %v1266 = vunpack.c.0.s8 %v1265
    %v1267 = vlaneseq
    %v1268 = vshrl.u32 %v1267, 7
    %v1269 = vsub.s32 %v1266, %v1268
    %v1270 = vrot.slane %v909, %v1269
    %v1272 = vunpack.c.l.s4 1966171168
    %v1273 = vunpack.c.0.s8 %v1272
    %v1274 = vlaneseq
    %v1275 = vshrl.u32 %v1274, 7
    %v1276 = vsub.s32 %v1273, %v1275
    %v1277 = vrot.slane %v1270, %v1276
    %1278 = vrot.lane.b32.xlu0 %v1277, 64
    %v1279 = vpop.permute.xlu0 %1278
    %1281 = vst.msk [vmem:[%s1243] sm:$0x1] %vm741, %v1279
    %1282 = vst.msk [vmem:[%s1243 + $0x1] sm:$0x1] %vm744, %v1002
    %s1283 = scalar_lea.vmem [#allocation2], 2
    %v1284 = vld [vmem:[%s1283] sm:$0x1]
    %1285 = vmatprep.subr.mxu0 0.0
    %1286 = vmatpush1.msra.mxu0 0.0
    %1287 = vmatprep.subr.mxu0 0.0
    %1288 = vmatpush1.msra.mxu0 0.0
    %1289 = vmatprep.subr.mxu0 0.0
    %1290 = vmatpush1.msra.mxu0 0.0
    %1291 = vmatprep.subr.mxu0 0.0
    %1292 = vmatpush1.msra.mxu0 0.0
    %1293 = vmatprep.subr.mxu0 0.0
    %1294 = vmatpush1.msra.mxu0 0.0
    %1295 = vmatprep.subr.mxu0 0.0
    %1296 = vmatpush1.msra.mxu0 0.0
    %1297 = vmatprep.subr.mxu0 0.0
    %1298 = vmatpush1.msra.mxu0 0.0
    %1299 = vmatprep.subr.mxu0 0.0
    %1300 = vmatpush1.msra.mxu0 0.0
    %1301 = vmatprep.subr.mxu0 0.0
    %1302 = vmatpush1.msra.mxu0 0.0
    %1303 = vmatprep.subr.mxu0 0.0
    %1304 = vmatpush1.msra.mxu0 0.0
    %1305 = vmatprep.subr.mxu0 0.0
    %1306 = vmatpush1.msra.mxu0 0.0
    %1307 = vmatprep.subr.mxu0 0.0
    %1308 = vmatpush1.msra.mxu0 0.0
    %1309 = vmatprep.subr.mxu0 0.0
    %1310 = vmatpush1.msra.mxu0 %v157
    %1311 = vmatprep.subr.mxu0 0.0
    %1312 = vmatpush1.msra.mxu0 %v156
    %1313 = vmatprep.subr.mxu0 0.0
    %1314 = vmatpush1.msra.mxu0 %v155
    %1315 = vmatprep.subr.mxu0 0.0
    %1316 = vmatpush1.msra.mxu0 %v154
    %1317 = vmatprep.subr.mxu0 0.0
    %1318 = vmatpush2.msra.mxu0 0.0
    %1319 = vmatprep.subr.mxu0 0.0
    %1320 = vmatpush2.msra.mxu0 0.0
    %1321 = vmatprep.subr.mxu0 0.0
    %1322 = vmatpush2.msra.mxu0 0.0
    %1323 = vmatprep.subr.mxu0 0.0
    %1324 = vmatpush2.msra.mxu0 0.0
    %1325 = vmatprep.subr.mxu0 0.0
    %1326 = vmatpush2.msra.mxu0 0.0
    %1327 = vmatprep.subr.mxu0 0.0
    %1328 = vmatpush2.msra.mxu0 0.0
    %1329 = vmatprep.subr.mxu0 0.0
    %1330 = vmatpush2.msra.mxu0 0.0
    %1331 = vmatprep.subr.mxu0 0.0
    %1332 = vmatpush2.msra.mxu0 0.0
    %1333 = vmatprep.subr.mxu0 0.0
    %1334 = vmatpush2.msra.mxu0 0.0
    %1335 = vmatprep.subr.mxu0 0.0
    %1336 = vmatpush2.msra.mxu0 0.0
    %1337 = vmatprep.subr.mxu0 0.0
    %1338 = vmatpush2.msra.mxu0 0.0
    %1339 = vmatprep.subr.mxu0 0.0
    %1340 = vmatpush2.msra.mxu0 0.0
    %1341 = vmatprep.subr.mxu0 0.0
    %1342 = vmatpush2.msra.mxu0 0.0
    %1343 = vmatprep.subr.mxu0 0.0
    %1344 = vmatpush2.msra.mxu0 0.0
    %1345 = vmatprep.subr.mxu0 0.0
    %1346 = vmatpush2.msra.mxu0 0.0
    %1347 = vmatprep.subr.mxu0 0.0
    %1348 = vmatpush2.msra.mxu0 0.0
    %1349 = vmatprep.mubr.f32.mxu0 0.0
    %1350 = vmatmul.mubr.f32.gmra.mxu0 %v919
    %v1351 = vpop.f32.mrf.mxu0
    %v1352 = vadd.f32 0.0, %v1351
    %v1353 = vpop.f32.mrf.mxu0
    %1354 = vdwg.mxu0
    %v1356 = vsel %vm179, %v1284, 0
    %1358 = vmatprep.subr.mxu0 0.0
    %1359 = vmatpush1.msra.mxu0 0.0
    %1360 = vmatprep.subr.mxu0 0.0
    %1361 = vmatpush1.msra.mxu0 0.0
    %1362 = vmatprep.subr.mxu0 0.0
    %1363 = vmatpush1.msra.mxu0 0.0
    %1364 = vmatprep.subr.mxu0 0.0
    %1365 = vmatpush1.msra.mxu0 0.0
    %1366 = vmatprep.subr.mxu0 0.0
    %1367 = vmatpush1.msra.mxu0 0.0
    %1368 = vmatprep.subr.mxu0 0.0
    %1369 = vmatpush1.msra.mxu0 0.0
    %1370 = vmatprep.subr.mxu0 0.0
    %1371 = vmatpush1.msra.mxu0 0.0
    %1372 = vmatprep.subr.mxu0 0.0
    %1373 = vmatpush1.msra.mxu0 0.0
    %1374 = vmatprep.subr.mxu0 0.0
    %1375 = vmatpush1.msra.mxu0 0.0
    %1376 = vmatprep.subr.mxu0 0.0
    %1377 = vmatpush1.msra.mxu0 0.0
    %1378 = vmatprep.subr.mxu0 0.0
    %1379 = vmatpush1.msra.mxu0 0.0
    %1380 = vmatprep.subr.mxu0 0.0
    %1381 = vmatpush1.msra.mxu0 0.0
    %1382 = vmatprep.subr.mxu0 0.0
    %1383 = vmatpush1.msra.mxu0 %v153
    %1384 = vmatprep.subr.mxu0 0.0
    %1385 = vmatpush1.msra.mxu0 %v152
    %1386 = vmatprep.subr.mxu0 0.0
    %1387 = vmatpush1.msra.mxu0 %v151
    %1388 = vmatprep.subr.mxu0 0.0
    %1389 = vmatpush1.msra.mxu0 %v150
    %1390 = vmatprep.subr.mxu0 0.0
    %1391 = vmatpush2.msra.mxu0 0.0
    %1392 = vmatprep.subr.mxu0 0.0
    %1393 = vmatpush2.msra.mxu0 0.0
    %1394 = vmatprep.subr.mxu0 0.0
    %1395 = vmatpush2.msra.mxu0 0.0
    %1396 = vmatprep.subr.mxu0 0.0
    %1397 = vmatpush2.msra.mxu0 0.0
    %1398 = vmatprep.subr.mxu0 0.0
    %1399 = vmatpush2.msra.mxu0 0.0
    %1400 = vmatprep.subr.mxu0 0.0
    %1401 = vmatpush2.msra.mxu0 0.0
    %1402 = vmatprep.subr.mxu0 0.0
    %1403 = vmatpush2.msra.mxu0 0.0
    %1404 = vmatprep.subr.mxu0 0.0
    %1405 = vmatpush2.msra.mxu0 0.0
    %1406 = vmatprep.subr.mxu0 0.0
    %1407 = vmatpush2.msra.mxu0 0.0
    %1408 = vmatprep.subr.mxu0 0.0
    %1409 = vmatpush2.msra.mxu0 0.0
    %1410 = vmatprep.subr.mxu0 0.0
    %1411 = vmatpush2.msra.mxu0 0.0
    %1412 = vmatprep.subr.mxu0 0.0
    %1413 = vmatpush2.msra.mxu0 0.0
    %1414 = vmatprep.subr.mxu0 0.0
    %1415 = vmatpush2.msra.mxu0 0.0
    %1416 = vmatprep.subr.mxu0 0.0
    %1417 = vmatpush2.msra.mxu0 0.0
    %1418 = vmatprep.subr.mxu0 0.0
    %1419 = vmatpush2.msra.mxu0 0.0
    %1420 = vmatprep.subr.mxu0 0.0
    %1421 = vmatpush2.msra.mxu0 0.0
    %1422 = vmatprep.mubr.f32.mxu0 0.0
    %1423 = vmatmul.mubr.f32.gmra.mxu0 %v1356
    %v1424 = vpop.f32.mrf.mxu0
    %v1425 = vadd.f32 %v1352, %v1424
    %v1426 = vpop.f32.mrf.mxu0
    %1427 = vdwg.mxu0
    %v1428 = vadd.f32 %v1425, %v158
    %v1429 = vxor.u32 %v1428, 2147483648
    %v1430 = vmul.f32 %v1429, 1.442695
    %v1431 = vpow.pop %v1430
    %v1432 = vadd.f32 %v1431, 1.0
    %v1433 = vrcp.pop %v1432
    %v1434 = vmul.f32 1.0, %v1433
    %v1435 = vtanh.pop %v1428
    %v1436 = vmul.f32 %v1434, %v909
    %1438 = vrot.lane.b32.xlu0 %v1435, 64
    %v1439 = vpop.permute.xlu0 %1438
    %v1441 = vmul.f32 %v1434, %v1439
    %1443 = vrot.lane.b32.xlu0 %v1441, 32
    %v1444 = vpop.permute.xlu0 %1443
    %v1446 = vadd.f32 %v1436, %v1444
    %v1447 = vtanh.pop %v1446
    %1449 = vrot.lane.b32.xlu0 %v1447, 64
    %v1450 = vpop.permute.xlu0 %1449
    %v1452 = vmul.f32 %v1434, %v1450
    %1454 = vrot.lane.b32.xlu0 %v1452, 32
    %v1455 = vpop.permute.xlu0 %1454
    %v1456 = vsel %vm179, %v1455, 0
    %1458 = vmatprep.subr.mxu0 0.0
    %1459 = vmatpush1.msra.mxu0 0.0
    %1460 = vmatprep.subr.mxu0 0.0
    %1461 = vmatpush1.msra.mxu0 0.0
    %1462 = vmatprep.subr.mxu0 0.0
    %1463 = vmatpush1.msra.mxu0 0.0
    %1464 = vmatprep.subr.mxu0 0.0
    %1465 = vmatpush1.msra.mxu0 0.0
    %1466 = vmatprep.subr.mxu0 0.0
    %1467 = vmatpush1.msra.mxu0 0.0
    %1468 = vmatprep.subr.mxu0 0.0
    %1469 = vmatpush1.msra.mxu0 0.0
    %1470 = vmatprep.subr.mxu0 0.0
    %1471 = vmatpush1.msra.mxu0 0.0
    %1472 = vmatprep.subr.mxu0 0.0
    %1473 = vmatpush1.msra.mxu0 0.0
    %1474 = vmatprep.subr.mxu0 0.0
    %1475 = vmatpush1.msra.mxu0 0.0
    %1476 = vmatprep.subr.mxu0 0.0
    %1477 = vmatpush1.msra.mxu0 0.0
    %1478 = vmatprep.subr.mxu0 0.0
    %1479 = vmatpush1.msra.mxu0 0.0
    %1480 = vmatprep.subr.mxu0 0.0
    %1481 = vmatpush1.msra.mxu0 0.0
    %1482 = vmatprep.subr.mxu0 0.0
    %1483 = vmatpush1.msra.mxu0 %v162
    %1484 = vmatprep.subr.mxu0 0.0
    %1485 = vmatpush1.msra.mxu0 %v161
    %1486 = vmatprep.subr.mxu0 0.0
    %1487 = vmatpush1.msra.mxu0 %v160
    %1488 = vmatprep.subr.mxu0 0.0
    %1489 = vmatpush1.msra.mxu0 %v159
    %1490 = vmatprep.subr.mxu0 0.0
    %1491 = vmatpush2.msra.mxu0 0.0
    %1492 = vmatprep.subr.mxu0 0.0
    %1493 = vmatpush2.msra.mxu0 0.0
    %1494 = vmatprep.subr.mxu0 0.0
    %1495 = vmatpush2.msra.mxu0 0.0
    %1496 = vmatprep.subr.mxu0 0.0
    %1497 = vmatpush2.msra.mxu0 0.0
    %1498 = vmatprep.subr.mxu0 0.0
    %1499 = vmatpush2.msra.mxu0 0.0
    %1500 = vmatprep.subr.mxu0 0.0
    %1501 = vmatpush2.msra.mxu0 0.0
    %1502 = vmatprep.subr.mxu0 0.0
    %1503 = vmatpush2.msra.mxu0 0.0
    %1504 = vmatprep.subr.mxu0 0.0
    %1505 = vmatpush2.msra.mxu0 0.0
    %1506 = vmatprep.subr.mxu0 0.0
    %1507 = vmatpush2.msra.mxu0 0.0
    %1508 = vmatprep.subr.mxu0 0.0
    %1509 = vmatpush2.msra.mxu0 0.0
    %1510 = vmatprep.subr.mxu0 0.0
    %1511 = vmatpush2.msra.mxu0 0.0
    %1512 = vmatprep.subr.mxu0 0.0
    %1513 = vmatpush2.msra.mxu0 0.0
    %1514 = vmatprep.subr.mxu0 0.0
    %1515 = vmatpush2.msra.mxu0 0.0
    %1516 = vmatprep.subr.mxu0 0.0
    %1517 = vmatpush2.msra.mxu0 0.0
    %1518 = vmatprep.subr.mxu0 0.0
    %1519 = vmatpush2.msra.mxu0 0.0
    %1520 = vmatprep.subr.mxu0 0.0
    %1521 = vmatpush2.msra.mxu0 0.0
    %1522 = vmatprep.mubr.f32.mxu0 0.0
    %1523 = vmatmul.mubr.f32.gmra.mxu0 %v1456
    %v1524 = vpop.f32.mrf.mxu0
    %v1525 = vadd.f32 0.0, %v1524
    %v1526 = vpop.f32.mrf.mxu0
    %1527 = vdwg.mxu0
    %v1528 = vadd.f32 %v1525, %v163
    %v1529 = vsel %vm435, %v1528, -inf
    %1530 = vmax.xlane.f32.xlu0 %v1529
    %v1531 = vpop.xlane.xlu0 %1530
    %v1532 = vsub.f32 %v1528, %v1531
    %v1533 = vmul.f32 %v1532, 1.442695
    %v1534 = vpow.pop %v1533
    %v1535 = vsel %vm435, %v1534, 0.0
    %1536 = vadd.xlane.f32.xlu0 %v1535
    %v1537 = vpop.xlane.xlu0 %1536
    %v1538 = vrcp.pop %v1537
    %v1539 = vmul.f32 %v1534, %v1538
    %v1541 = vsel %vm447, %v1539, 0
    %1543 = vmatprep.subr.mxu0 0.0
    %1544 = vmatpush1.msra.mxu0 0.0
    %1545 = vmatprep.subr.mxu0 0.0
    %1546 = vmatpush1.msra.mxu0 0.0
    %1547 = vmatprep.subr.mxu0 0.0
    %1548 = vmatpush1.msra.mxu0 0.0
    %1549 = vmatprep.subr.mxu0 0.0
    %1550 = vmatpush1.msra.mxu0 0.0
    %1551 = vmatprep.subr.mxu0 0.0
    %1552 = vmatpush1.msra.mxu0 0.0
    %1553 = vmatprep.subr.mxu0 0.0
    %1554 = vmatpush1.msra.mxu0 0.0
    %1555 = vmatprep.subr.mxu0 0.0
    %1556 = vmatpush1.msra.mxu0 0.0
    %1557 = vmatprep.subr.mxu0 0.0
    %1558 = vmatpush1.msra.mxu0 0.0
    %1559 = vmatprep.subr.mxu0 0.0
    %1560 = vmatpush1.msra.mxu0 0.0
    %1561 = vmatprep.subr.mxu0 0.0
    %1562 = vmatpush1.msra.mxu0 0.0
    %1563 = vmatprep.subr.mxu0 0.0
    %1564 = vmatpush1.msra.mxu0 0.0
    %1565 = vmatprep.subr.mxu0 0.0
    %1566 = vmatpush1.msra.mxu0 0.0
    %1567 = vmatprep.subr.mxu0 0.0
    %1568 = vmatpush1.msra.mxu0 0.0
    %1569 = vmatprep.subr.mxu0 0.0
    %1570 = vmatpush1.msra.mxu0 0.0
    %1571 = vmatprep.subr.mxu0 0.0
    %1572 = vmatpush1.msra.mxu0 %v165
    %1573 = vmatprep.subr.mxu0 0.0
    %1574 = vmatpush1.msra.mxu0 %v164
    %1575 = vmatprep.subr.mxu0 0.0
    %1576 = vmatpush2.msra.mxu0 0.0
    %1577 = vmatprep.subr.mxu0 0.0
    %1578 = vmatpush2.msra.mxu0 0.0
    %1579 = vmatprep.subr.mxu0 0.0
    %1580 = vmatpush2.msra.mxu0 0.0
    %1581 = vmatprep.subr.mxu0 0.0
    %1582 = vmatpush2.msra.mxu0 0.0
    %1583 = vmatprep.subr.mxu0 0.0
    %1584 = vmatpush2.msra.mxu0 0.0
    %1585 = vmatprep.subr.mxu0 0.0
    %1586 = vmatpush2.msra.mxu0 0.0
    %1587 = vmatprep.subr.mxu0 0.0
    %1588 = vmatpush2.msra.mxu0 0.0
    %1589 = vmatprep.subr.mxu0 0.0
    %1590 = vmatpush2.msra.mxu0 0.0
    %1591 = vmatprep.subr.mxu0 0.0
    %1592 = vmatpush2.msra.mxu0 0.0
    %1593 = vmatprep.subr.mxu0 0.0
    %1594 = vmatpush2.msra.mxu0 0.0
    %1595 = vmatprep.subr.mxu0 0.0
    %1596 = vmatpush2.msra.mxu0 0.0
    %1597 = vmatprep.subr.mxu0 0.0
    %1598 = vmatpush2.msra.mxu0 0.0
    %1599 = vmatprep.subr.mxu0 0.0
    %1600 = vmatpush2.msra.mxu0 0.0
    %1601 = vmatprep.subr.mxu0 0.0
    %1602 = vmatpush2.msra.mxu0 0.0
    %1603 = vmatprep.subr.mxu0 0.0
    %1604 = vmatpush2.msra.mxu0 0.0
    %1605 = vmatprep.subr.mxu0 0.0
    %1606 = vmatpush2.msra.mxu0 0.0
    %1607 = vmatprep.mubr.f32.mxu0 0.0
    %1608 = vmatmul.mubr.f32.gmra.mxu0 %v1541
    %v1609 = vpop.f32.mrf.mxu0
    %v1610 = vadd.f32 0.0, %v1609
    %v1611 = vpop.f32.mrf.mxu0
    %1612 = vdwg.mxu0
    %v1614 = vsel %vm179, %v1610, 0
    %1616 = vmatprep.subr.mxu0 0.0
    %1617 = vmatpush1.msra.mxu0 0.0
    %1618 = vmatprep.subr.mxu0 0.0
    %1619 = vmatpush1.msra.mxu0 0.0
    %1620 = vmatprep.subr.mxu0 0.0
    %1621 = vmatpush1.msra.mxu0 0.0
    %1622 = vmatprep.subr.mxu0 0.0
    %1623 = vmatpush1.msra.mxu0 0.0
    %1624 = vmatprep.subr.mxu0 0.0
    %1625 = vmatpush1.msra.mxu0 0.0
    %1626 = vmatprep.subr.mxu0 0.0
    %1627 = vmatpush1.msra.mxu0 0.0
    %1628 = vmatprep.subr.mxu0 0.0
    %1629 = vmatpush1.msra.mxu0 0.0
    %1630 = vmatprep.subr.mxu0 0.0
    %1631 = vmatpush1.msra.mxu0 0.0
    %1632 = vmatprep.subr.mxu0 0.0
    %1633 = vmatpush1.msra.mxu0 0.0
    %1634 = vmatprep.subr.mxu0 0.0
    %1635 = vmatpush1.msra.mxu0 0.0
    %1636 = vmatprep.subr.mxu0 0.0
    %1637 = vmatpush1.msra.mxu0 0.0
    %1638 = vmatprep.subr.mxu0 0.0
    %1639 = vmatpush1.msra.mxu0 0.0
    %1640 = vmatprep.subr.mxu0 0.0
    %1641 = vmatpush1.msra.mxu0 %v169
    %1642 = vmatprep.subr.mxu0 0.0
    %1643 = vmatpush1.msra.mxu0 %v168
    %1644 = vmatprep.subr.mxu0 0.0
    %1645 = vmatpush1.msra.mxu0 %v167
    %1646 = vmatprep.subr.mxu0 0.0
    %1647 = vmatpush1.msra.mxu0 %v166
    %1648 = vmatprep.subr.mxu0 0.0
    %1649 = vmatpush2.msra.mxu0 0.0
    %1650 = vmatprep.subr.mxu0 0.0
    %1651 = vmatpush2.msra.mxu0 0.0
    %1652 = vmatprep.subr.mxu0 0.0
    %1653 = vmatpush2.msra.mxu0 0.0
    %1654 = vmatprep.subr.mxu0 0.0
    %1655 = vmatpush2.msra.mxu0 0.0
    %1656 = vmatprep.subr.mxu0 0.0
    %1657 = vmatpush2.msra.mxu0 0.0
    %1658 = vmatprep.subr.mxu0 0.0
    %1659 = vmatpush2.msra.mxu0 0.0
    %1660 = vmatprep.subr.mxu0 0.0
    %1661 = vmatpush2.msra.mxu0 0.0
    %1662 = vmatprep.subr.mxu0 0.0
    %1663 = vmatpush2.msra.mxu0 0.0
    %1664 = vmatprep.subr.mxu0 0.0
    %1665 = vmatpush2.msra.mxu0 0.0
    %1666 = vmatprep.subr.mxu0 0.0
    %1667 = vmatpush2.msra.mxu0 0.0
    %1668 = vmatprep.subr.mxu0 0.0
    %1669 = vmatpush2.msra.mxu0 0.0
    %1670 = vmatprep.subr.mxu0 0.0
    %1671 = vmatpush2.msra.mxu0 0.0
    %1672 = vmatprep.subr.mxu0 0.0
    %1673 = vmatpush2.msra.mxu0 0.0
    %1674 = vmatprep.subr.mxu0 0.0
    %1675 = vmatpush2.msra.mxu0 0.0
    %1676 = vmatprep.subr.mxu0 0.0
    %1677 = vmatpush2.msra.mxu0 0.0
    %1678 = vmatprep.subr.mxu0 0.0
    %1679 = vmatpush2.msra.mxu0 0.0
    %1680 = vmatprep.mubr.f32.mxu0 0.0
    %1681 = vmatmul.mubr.f32.gmra.mxu0 %v1614
    %v1682 = vpop.f32.mrf.mxu0
    %v1683 = vadd.f32 0.0, %v1682
    %v1684 = vpop.f32.mrf.mxu0
    %1685 = vdwg.mxu0
    %1687 = vrot.lane.b32.xlu0 %v1683, 16
    %v1688 = vpop.permute.xlu0 %1687
    %v1690 = vadd.f32 %v1525, %v1688
    %v1691 = vadd.f32 %v1690, %v605
    %v1692 = vmax.f32 %v1691, 0.0
    %1694 = vrot.lane.b32.xlu0 %v1692, 112
    %v1695 = vpop.permute.xlu0 %1694
    %v1696 = vsel %vm179, %v1695, 0
    %1698 = vmatprep.subr.mxu0 0.0
    %1699 = vmatpush1.msra.mxu0 0.0
    %1700 = vmatprep.subr.mxu0 0.0
    %1701 = vmatpush1.msra.mxu0 0.0
    %1702 = vmatprep.subr.mxu0 0.0
    %1703 = vmatpush1.msra.mxu0 0.0
    %1704 = vmatprep.subr.mxu0 0.0
    %1705 = vmatpush1.msra.mxu0 0.0
    %1706 = vmatprep.subr.mxu0 0.0
    %1707 = vmatpush1.msra.mxu0 0.0
    %1708 = vmatprep.subr.mxu0 0.0
    %1709 = vmatpush1.msra.mxu0 0.0
    %1710 = vmatprep.subr.mxu0 0.0
    %1711 = vmatpush1.msra.mxu0 0.0
    %1712 = vmatprep.subr.mxu0 0.0
    %1713 = vmatpush1.msra.mxu0 0.0
    %1714 = vmatprep.subr.mxu0 0.0
    %1715 = vmatpush1.msra.mxu0 0.0
    %1716 = vmatprep.subr.mxu0 0.0
    %1717 = vmatpush1.msra.mxu0 0.0
    %1718 = vmatprep.subr.mxu0 0.0
    %1719 = vmatpush1.msra.mxu0 0.0
    %1720 = vmatprep.subr.mxu0 0.0
    %1721 = vmatpush1.msra.mxu0 0.0
    %1722 = vmatprep.subr.mxu0 0.0
    %1723 = vmatpush1.msra.mxu0 %v174
    %1724 = vmatprep.subr.mxu0 0.0
    %1725 = vmatpush1.msra.mxu0 %v173
    %1726 = vmatprep.subr.mxu0 0.0
    %1727 = vmatpush1.msra.mxu0 %v172
    %1728 = vmatprep.subr.mxu0 0.0
    %1729 = vmatpush1.msra.mxu0 %v171
    %1730 = vmatprep.subr.mxu0 0.0
    %1731 = vmatpush2.msra.mxu0 0.0
    %1732 = vmatprep.subr.mxu0 0.0
    %1733 = vmatpush2.msra.mxu0 0.0
    %1734 = vmatprep.subr.mxu0 0.0
    %1735 = vmatpush2.msra.mxu0 0.0
    %1736 = vmatprep.subr.mxu0 0.0
    %1737 = vmatpush2.msra.mxu0 0.0
    %1738 = vmatprep.subr.mxu0 0.0
    %1739 = vmatpush2.msra.mxu0 0.0
    %1740 = vmatprep.subr.mxu0 0.0
    %1741 = vmatpush2.msra.mxu0 0.0
    %1742 = vmatprep.subr.mxu0 0.0
    %1743 = vmatpush2.msra.mxu0 0.0
    %1744 = vmatprep.subr.mxu0 0.0
    %1745 = vmatpush2.msra.mxu0 0.0
    %1746 = vmatprep.subr.mxu0 0.0
    %1747 = vmatpush2.msra.mxu0 0.0
    %1748 = vmatprep.subr.mxu0 0.0
    %1749 = vmatpush2.msra.mxu0 0.0
    %1750 = vmatprep.subr.mxu0 0.0
    %1751 = vmatpush2.msra.mxu0 0.0
    %1752 = vmatprep.subr.mxu0 0.0
    %1753 = vmatpush2.msra.mxu0 0.0
    %1754 = vmatprep.subr.mxu0 0.0
    %1755 = vmatpush2.msra.mxu0 0.0
    %1756 = vmatprep.subr.mxu0 0.0
    %1757 = vmatpush2.msra.mxu0 0.0
    %1758 = vmatprep.subr.mxu0 0.0
    %1759 = vmatpush2.msra.mxu0 0.0
    %1760 = vmatprep.subr.mxu0 0.0
    %1761 = vmatpush2.msra.mxu0 0.0
    %1762 = vmatprep.mubr.f32.mxu0 0.0
    %1763 = vmatmul.mubr.f32.gmra.mxu0 %v1696
    %v1764 = vpop.f32.mrf.mxu0
    %v1765 = vadd.f32 %v175, %v1764
    %v1766 = vpop.f32.mrf.mxu0
    %1767 = vdwg.mxu0
    %v1768 = vsel %vm684, %v1765, -inf
    %1769 = vmax.xlane.f32.xlu0 %v1768
    %v1770 = vpop.xlane.xlu0 %1769
    %v1771 = vsub.f32 %v1765, %v1770
    %v1772 = vmul.f32 %v1771, 1.442695
    %v1773 = vpow.pop %v1772
    %v1774 = vsel %vm684, %v1773, 0.0
    %1775 = vadd.xlane.f32.xlu0 %v1774
    %v1776 = vpop.xlane.xlu0 %1775
    %v1777 = vlog2.pop %v1776
    %v1778 = vmul.f32 %v1777, 0.6931472
    %v1779 = vsub.f32 %v1771, %v1778
    %s1780 = scalar_lea.vmem [#allocation14], 4
    %1781 = vst.msk [vmem:[%s1780] sm:$0x1] %vm698, %v1779
    %v1783 = vunpack.c.l.s4 1966171168
    %v1784 = vunpack.c.0.s8 %v1783
    %v1785 = vlaneseq
    %v1786 = vshrl.u32 %v1785, 7
    %v1787 = vsub.s32 %v1784, %v1786
    %v1788 = vrot.slane %v1452, %v1787
    %v1790 = vunpack.c.l.s4 1966171168
    %v1791 = vunpack.c.0.s8 %v1790
    %v1792 = vlaneseq
    %v1793 = vshrl.u32 %v1792, 7
    %v1794 = vsub.s32 %v1791, %v1793
    %v1795 = vrot.slane %v1788, %v1794
    %1796 = vrot.lane.b32.xlu0 %v1795, 96
    %v1797 = vpop.permute.xlu0 %1796
    %1799 = vst.msk [vmem:[%s1780] sm:$0x1] %vm719, %v1797
    %v1802 = vunpack.c.l.s4 1966171168
    %v1803 = vunpack.c.0.s8 %v1802
    %v1804 = vlaneseq
    %v1805 = vshrl.u32 %v1804, 7
    %v1806 = vsub.s32 %v1803, %v1805
    %v1807 = vrot.slane %v1446, %v1806
    %v1809 = vunpack.c.l.s4 1966171168
    %v1810 = vunpack.c.0.s8 %v1809
    %v1811 = vlaneseq
    %v1812 = vshrl.u32 %v1811, 7
    %v1813 = vsub.s32 %v1810, %v1812
    %v1814 = vrot.slane %v1807, %v1813
    %1815 = vrot.lane.b32.xlu0 %v1814, 64
    %v1816 = vpop.permute.xlu0 %1815
    %1818 = vst.msk [vmem:[%s1780] sm:$0x1] %vm741, %v1816
    %1819 = vst.msk [vmem:[%s1780 + $0x1] sm:$0x1] %vm744, %v1539
    %s1820 = scalar_lea.vmem [#allocation2], 3
    %v1821 = vld [vmem:[%s1820] sm:$0x1]
    %1822 = vmatprep.subr.mxu0 0.0
    %1823 = vmatpush1.msra.mxu0 0.0
    %1824 = vmatprep.subr.mxu0 0.0
    %1825 = vmatpush1.msra.mxu0 0.0
    %1826 = vmatprep.subr.mxu0 0.0
    %1827 = vmatpush1.msra.mxu0 0.0
    %1828 = vmatprep.subr.mxu0 0.0
    %1829 = vmatpush1.msra.mxu0 0.0
    %1830 = vmatprep.subr.mxu0 0.0
    %1831 = vmatpush1.msra.mxu0 0.0
    %1832 = vmatprep.subr.mxu0 0.0
    %1833 = vmatpush1.msra.mxu0 0.0
    %1834 = vmatprep.subr.mxu0 0.0
    %1835 = vmatpush1.msra.mxu0 0.0
    %1836 = vmatprep.subr.mxu0 0.0
    %1837 = vmatpush1.msra.mxu0 0.0
    %1838 = vmatprep.subr.mxu0 0.0
    %1839 = vmatpush1.msra.mxu0 0.0
    %1840 = vmatprep.subr.mxu0 0.0
    %1841 = vmatpush1.msra.mxu0 0.0
    %1842 = vmatprep.subr.mxu0 0.0
    %1843 = vmatpush1.msra.mxu0 0.0
    %1844 = vmatprep.subr.mxu0 0.0
    %1845 = vmatpush1.msra.mxu0 0.0
    %1846 = vmatprep.subr.mxu0 0.0
    %1847 = vmatpush1.msra.mxu0 %v157
    %1848 = vmatprep.subr.mxu0 0.0
    %1849 = vmatpush1.msra.mxu0 %v156
    %1850 = vmatprep.subr.mxu0 0.0
    %1851 = vmatpush1.msra.mxu0 %v155
    %1852 = vmatprep.subr.mxu0 0.0
    %1853 = vmatpush1.msra.mxu0 %v154
    %1854 = vmatprep.subr.mxu0 0.0
    %1855 = vmatpush2.msra.mxu0 0.0
    %1856 = vmatprep.subr.mxu0 0.0
    %1857 = vmatpush2.msra.mxu0 0.0
    %1858 = vmatprep.subr.mxu0 0.0
    %1859 = vmatpush2.msra.mxu0 0.0
    %1860 = vmatprep.subr.mxu0 0.0
    %1861 = vmatpush2.msra.mxu0 0.0
    %1862 = vmatprep.subr.mxu0 0.0
    %1863 = vmatpush2.msra.mxu0 0.0
    %1864 = vmatprep.subr.mxu0 0.0
    %1865 = vmatpush2.msra.mxu0 0.0
    %1866 = vmatprep.subr.mxu0 0.0
    %1867 = vmatpush2.msra.mxu0 0.0
    %1868 = vmatprep.subr.mxu0 0.0
    %1869 = vmatpush2.msra.mxu0 0.0
    %1870 = vmatprep.subr.mxu0 0.0
    %1871 = vmatpush2.msra.mxu0 0.0
    %1872 = vmatprep.subr.mxu0 0.0
    %1873 = vmatpush2.msra.mxu0 0.0
    %1874 = vmatprep.subr.mxu0 0.0
    %1875 = vmatpush2.msra.mxu0 0.0
    %1876 = vmatprep.subr.mxu0 0.0
    %1877 = vmatpush2.msra.mxu0 0.0
    %1878 = vmatprep.subr.mxu0 0.0
    %1879 = vmatpush2.msra.mxu0 0.0
    %1880 = vmatprep.subr.mxu0 0.0
    %1881 = vmatpush2.msra.mxu0 0.0
    %1882 = vmatprep.subr.mxu0 0.0
    %1883 = vmatpush2.msra.mxu0 0.0
    %1884 = vmatprep.subr.mxu0 0.0
    %1885 = vmatpush2.msra.mxu0 0.0
    %1886 = vmatprep.mubr.f32.mxu0 0.0
    %1887 = vmatmul.mubr.f32.gmra.mxu0 %v1456
    %v1888 = vpop.f32.mrf.mxu0
    %v1889 = vadd.f32 0.0, %v1888
    %v1890 = vpop.f32.mrf.mxu0
    %1891 = vdwg.mxu0
    %v1893 = vsel %vm179, %v1821, 0
    %1895 = vmatprep.subr.mxu0 0.0
    %1896 = vmatpush1.msra.mxu0 0.0
    %1897 = vmatprep.subr.mxu0 0.0
    %1898 = vmatpush1.msra.mxu0 0.0
    %1899 = vmatprep.subr.mxu0 0.0
    %1900 = vmatpush1.msra.mxu0 0.0
    %1901 = vmatprep.subr.mxu0 0.0
    %1902 = vmatpush1.msra.mxu0 0.0
    %1903 = vmatprep.subr.mxu0 0.0
    %1904 = vmatpush1.msra.mxu0 0.0
    %1905 = vmatprep.subr.mxu0 0.0
    %1906 = vmatpush1.msra.mxu0 0.0
    %1907 = vmatprep.subr.mxu0 0.0
    %1908 = vmatpush1.msra.mxu0 0.0
    %1909 = vmatprep.subr.mxu0 0.0
    %1910 = vmatpush1.msra.mxu0 0.0
    %1911 = vmatprep.subr.mxu0 0.0
    %1912 = vmatpush1.msra.mxu0 0.0
    %1913 = vmatprep.subr.mxu0 0.0
    %1914 = vmatpush1.msra.mxu0 0.0
    %1915 = vmatprep.subr.mxu0 0.0
    %1916 = vmatpush1.msra.mxu0 0.0
    %1917 = vmatprep.subr.mxu0 0.0
    %1918 = vmatpush1.msra.mxu0 0.0
    %1919 = vmatprep.subr.mxu0 0.0
    %1920 = vmatpush1.msra.mxu0 %v153
    %1921 = vmatprep.subr.mxu0 0.0
    %1922 = vmatpush1.msra.mxu0 %v152
    %1923 = vmatprep.subr.mxu0 0.0
    %1924 = vmatpush1.msra.mxu0 %v151
    %1925 = vmatprep.subr.mxu0 0.0
    %1926 = vmatpush1.msra.mxu0 %v150
    %1927 = vmatprep.subr.mxu0 0.0
    %1928 = vmatpush2.msra.mxu0 0.0
    %1929 = vmatprep.subr.mxu0 0.0
    %1930 = vmatpush2.msra.mxu0 0.0
    %1931 = vmatprep.subr.mxu0 0.0
    %1932 = vmatpush2.msra.mxu0 0.0
    %1933 = vmatprep.subr.mxu0 0.0
    %1934 = vmatpush2.msra.mxu0 0.0
    %1935 = vmatprep.subr.mxu0 0.0
    %1936 = vmatpush2.msra.mxu0 0.0
    %1937 = vmatprep.subr.mxu0 0.0
    %1938 = vmatpush2.msra.mxu0 0.0
    %1939 = vmatprep.subr.mxu0 0.0
    %1940 = vmatpush2.msra.mxu0 0.0
    %1941 = vmatprep.subr.mxu0 0.0
    %1942 = vmatpush2.msra.mxu0 0.0
    %1943 = vmatprep.subr.mxu0 0.0
    %1944 = vmatpush2.msra.mxu0 0.0
    %1945 = vmatprep.subr.mxu0 0.0
    %1946 = vmatpush2.msra.mxu0 0.0
    %1947 = vmatprep.subr.mxu0 0.0
    %1948 = vmatpush2.msra.mxu0 0.0
    %1949 = vmatprep.subr.mxu0 0.0
    %1950 = vmatpush2.msra.mxu0 0.0
    %1951 = vmatprep.subr.mxu0 0.0
    %1952 = vmatpush2.msra.mxu0 0.0
    %1953 = vmatprep.subr.mxu0 0.0
    %1954 = vmatpush2.msra.mxu0 0.0
    %1955 = vmatprep.subr.mxu0 0.0
    %1956 = vmatpush2.msra.mxu0 0.0
    %1957 = vmatprep.subr.mxu0 0.0
    %1958 = vmatpush2.msra.mxu0 0.0
    %1959 = vmatprep.mubr.f32.mxu0 0.0
    %1960 = vmatmul.mubr.f32.gmra.mxu0 %v1893
    %v1961 = vpop.f32.mrf.mxu0
    %v1962 = vadd.f32 %v1889, %v1961
    %v1963 = vpop.f32.mrf.mxu0
    %1964 = vdwg.mxu0
    %v1965 = vadd.f32 %v1962, %v158
    %v1966 = vxor.u32 %v1965, 2147483648
    %v1967 = vmul.f32 %v1966, 1.442695
    %v1968 = vpow.pop %v1967
    %v1969 = vadd.f32 %v1968, 1.0
    %v1970 = vrcp.pop %v1969
    %v1971 = vmul.f32 1.0, %v1970
    %v1972 = vtanh.pop %v1965
    %v1973 = vmul.f32 %v1971, %v1446
    %1975 = vrot.lane.b32.xlu0 %v1972, 64
    %v1976 = vpop.permute.xlu0 %1975
    %v1978 = vmul.f32 %v1971, %v1976
    %1980 = vrot.lane.b32.xlu0 %v1978, 32
    %v1981 = vpop.permute.xlu0 %1980
    %v1983 = vadd.f32 %v1973, %v1981
    %v1984 = vtanh.pop %v1983
    %1986 = vrot.lane.b32.xlu0 %v1984, 64
    %v1987 = vpop.permute.xlu0 %1986
    %v1989 = vmul.f32 %v1971, %v1987
    %1991 = vrot.lane.b32.xlu0 %v1989, 32
    %v1992 = vpop.permute.xlu0 %1991
    %v1993 = vsel %vm179, %v1992, 0
    %1995 = vmatprep.subr.mxu0 0.0
    %1996 = vmatpush1.msra.mxu0 0.0
    %1997 = vmatprep.subr.mxu0 0.0
    %1998 = vmatpush1.msra.mxu0 0.0
    %1999 = vmatprep.subr.mxu0 0.0
    %2000 = vmatpush1.msra.mxu0 0.0
    %2001 = vmatprep.subr.mxu0 0.0
    %2002 = vmatpush1.msra.mxu0 0.0
    %2003 = vmatprep.subr.mxu0 0.0
    %2004 = vmatpush1.msra.mxu0 0.0
    %2005 = vmatprep.subr.mxu0 0.0
    %2006 = vmatpush1.msra.mxu0 0.0
    %2007 = vmatprep.subr.mxu0 0.0
    %2008 = vmatpush1.msra.mxu0 0.0
    %2009 = vmatprep.subr.mxu0 0.0
    %2010 = vmatpush1.msra.mxu0 0.0
    %2011 = vmatprep.subr.mxu0 0.0
    %2012 = vmatpush1.msra.mxu0 0.0
    %2013 = vmatprep.subr.mxu0 0.0
    %2014 = vmatpush1.msra.mxu0 0.0
    %2015 = vmatprep.subr.mxu0 0.0
    %2016 = vmatpush1.msra.mxu0 0.0
    %2017 = vmatprep.subr.mxu0 0.0
    %2018 = vmatpush1.msra.mxu0 0.0
    %2019 = vmatprep.subr.mxu0 0.0
    %2020 = vmatpush1.msra.mxu0 %v162
    %2021 = vmatprep.subr.mxu0 0.0
    %2022 = vmatpush1.msra.mxu0 %v161
    %2023 = vmatprep.subr.mxu0 0.0
    %2024 = vmatpush1.msra.mxu0 %v160
    %2025 = vmatprep.subr.mxu0 0.0
    %2026 = vmatpush1.msra.mxu0 %v159
    %2027 = vmatprep.subr.mxu0 0.0
    %2028 = vmatpush2.msra.mxu0 0.0
    %2029 = vmatprep.subr.mxu0 0.0
    %2030 = vmatpush2.msra.mxu0 0.0
    %2031 = vmatprep.subr.mxu0 0.0
    %2032 = vmatpush2.msra.mxu0 0.0
    %2033 = vmatprep.subr.mxu0 0.0
    %2034 = vmatpush2.msra.mxu0 0.0
    %2035 = vmatprep.subr.mxu0 0.0
    %2036 = vmatpush2.msra.mxu0 0.0
    %2037 = vmatprep.subr.mxu0 0.0
    %2038 = vmatpush2.msra.mxu0 0.0
    %2039 = vmatprep.subr.mxu0 0.0
    %2040 = vmatpush2.msra.mxu0 0.0
    %2041 = vmatprep.subr.mxu0 0.0
    %2042 = vmatpush2.msra.mxu0 0.0
    %2043 = vmatprep.subr.mxu0 0.0
    %2044 = vmatpush2.msra.mxu0 0.0
    %2045 = vmatprep.subr.mxu0 0.0
    %2046 = vmatpush2.msra.mxu0 0.0
    %2047 = vmatprep.subr.mxu0 0.0
    %2048 = vmatpush2.msra.mxu0 0.0
    %2049 = vmatprep.subr.mxu0 0.0
    %2050 = vmatpush2.msra.mxu0 0.0
    %2051 = vmatprep.subr.mxu0 0.0
    %2052 = vmatpush2.msra.mxu0 0.0
    %2053 = vmatprep.subr.mxu0 0.0
    %2054 = vmatpush2.msra.mxu0 0.0
    %2055 = vmatprep.subr.mxu0 0.0
    %2056 = vmatpush2.msra.mxu0 0.0
    %2057 = vmatprep.subr.mxu0 0.0
    %2058 = vmatpush2.msra.mxu0 0.0
    %2059 = vmatprep.mubr.f32.mxu0 0.0
    %2060 = vmatmul.mubr.f32.gmra.mxu0 %v1993
    %v2061 = vpop.f32.mrf.mxu0
    %v2062 = vadd.f32 0.0, %v2061
    %v2063 = vpop.f32.mrf.mxu0
    %2064 = vdwg.mxu0
    %v2065 = vadd.f32 %v2062, %v163
    %v2066 = vsel %vm435, %v2065, -inf
    %2067 = vmax.xlane.f32.xlu0 %v2066
    %v2068 = vpop.xlane.xlu0 %2067
    %v2069 = vsub.f32 %v2065, %v2068
    %v2070 = vmul.f32 %v2069, 1.442695
    %v2071 = vpow.pop %v2070
    %v2072 = vsel %vm435, %v2071, 0.0
    %2073 = vadd.xlane.f32.xlu0 %v2072
    %v2074 = vpop.xlane.xlu0 %2073
    %v2075 = vrcp.pop %v2074
    %v2076 = vmul.f32 %v2071, %v2075
    %v2078 = vsel %vm447, %v2076, 0
    %2080 = vmatprep.subr.mxu0 0.0
    %2081 = vmatpush1.msra.mxu0 0.0
    %2082 = vmatprep.subr.mxu0 0.0
    %2083 = vmatpush1.msra.mxu0 0.0
    %2084 = vmatprep.subr.mxu0 0.0
    %2085 = vmatpush1.msra.mxu0 0.0
    %2086 = vmatprep.subr.mxu0 0.0
    %2087 = vmatpush1.msra.mxu0 0.0
    %2088 = vmatprep.subr.mxu0 0.0
    %2089 = vmatpush1.msra.mxu0 0.0
    %2090 = vmatprep.subr.mxu0 0.0
    %2091 = vmatpush1.msra.mxu0 0.0
    %2092 = vmatprep.subr.mxu0 0.0
    %2093 = vmatpush1.msra.mxu0 0.0
    %2094 = vmatprep.subr.mxu0 0.0
    %2095 = vmatpush1.msra.mxu0 0.0
    %2096 = vmatprep.subr.mxu0 0.0
    %2097 = vmatpush1.msra.mxu0 0.0
    %2098 = vmatprep.subr.mxu0 0.0
    %2099 = vmatpush1.msra.mxu0 0.0
    %2100 = vmatprep.subr.mxu0 0.0
    %2101 = vmatpush1.msra.mxu0 0.0
    %2102 = vmatprep.subr.mxu0 0.0
    %2103 = vmatpush1.msra.mxu0 0.0
    %2104 = vmatprep.subr.mxu0 0.0
    %2105 = vmatpush1.msra.mxu0 0.0
    %2106 = vmatprep.subr.mxu0 0.0
    %2107 = vmatpush1.msra.mxu0 0.0
    %2108 = vmatprep.subr.mxu0 0.0
    %2109 = vmatpush1.msra.mxu0 %v165
    %2110 = vmatprep.subr.mxu0 0.0
    %2111 = vmatpush1.msra.mxu0 %v164
    %2112 = vmatprep.subr.mxu0 0.0
    %2113 = vmatpush2.msra.mxu0 0.0
    %2114 = vmatprep.subr.mxu0 0.0
    %2115 = vmatpush2.msra.mxu0 0.0
    %2116 = vmatprep.subr.mxu0 0.0
    %2117 = vmatpush2.msra.mxu0 0.0
    %2118 = vmatprep.subr.mxu0 0.0
    %2119 = vmatpush2.msra.mxu0 0.0
    %2120 = vmatprep.subr.mxu0 0.0
    %2121 = vmatpush2.msra.mxu0 0.0
    %2122 = vmatprep.subr.mxu0 0.0
    %2123 = vmatpush2.msra.mxu0 0.0
    %2124 = vmatprep.subr.mxu0 0.0
    %2125 = vmatpush2.msra.mxu0 0.0
    %2126 = vmatprep.subr.mxu0 0.0
    %2127 = vmatpush2.msra.mxu0 0.0
    %2128 = vmatprep.subr.mxu0 0.0
    %2129 = vmatpush2.msra.mxu0 0.0
    %2130 = vmatprep.subr.mxu0 0.0
    %2131 = vmatpush2.msra.mxu0 0.0
    %2132 = vmatprep.subr.mxu0 0.0
    %2133 = vmatpush2.msra.mxu0 0.0
    %2134 = vmatprep.subr.mxu0 0.0
    %2135 = vmatpush2.msra.mxu0 0.0
    %2136 = vmatprep.subr.mxu0 0.0
    %2137 = vmatpush2.msra.mxu0 0.0
    %2138 = vmatprep.subr.mxu0 0.0
    %2139 = vmatpush2.msra.mxu0 0.0
    %2140 = vmatprep.subr.mxu0 0.0
    %2141 = vmatpush2.msra.mxu0 0.0
    %2142 = vmatprep.subr.mxu0 0.0
    %2143 = vmatpush2.msra.mxu0 0.0
    %2144 = vmatprep.mubr.f32.mxu0 0.0
    %2145 = vmatmul.mubr.f32.gmra.mxu0 %v2078
    %v2146 = vpop.f32.mrf.mxu0
    %v2147 = vadd.f32 0.0, %v2146
    %v2148 = vpop.f32.mrf.mxu0
    %2149 = vdwg.mxu0
    %v2151 = vsel %vm179, %v2147, 0
    %2153 = vmatprep.subr.mxu0 0.0
    %2154 = vmatpush1.msra.mxu0 0.0
    %2155 = vmatprep.subr.mxu0 0.0
    %2156 = vmatpush1.msra.mxu0 0.0
    %2157 = vmatprep.subr.mxu0 0.0
    %2158 = vmatpush1.msra.mxu0 0.0
    %2159 = vmatprep.subr.mxu0 0.0
    %2160 = vmatpush1.msra.mxu0 0.0
    %2161 = vmatprep.subr.mxu0 0.0
    %2162 = vmatpush1.msra.mxu0 0.0
    %2163 = vmatprep.subr.mxu0 0.0
    %2164 = vmatpush1.msra.mxu0 0.0
    %2165 = vmatprep.subr.mxu0 0.0
    %2166 = vmatpush1.msra.mxu0 0.0
    %2167 = vmatprep.subr.mxu0 0.0
    %2168 = vmatpush1.msra.mxu0 0.0
    %2169 = vmatprep.subr.mxu0 0.0
    %2170 = vmatpush1.msra.mxu0 0.0
    %2171 = vmatprep.subr.mxu0 0.0
    %2172 = vmatpush1.msra.mxu0 0.0
    %2173 = vmatprep.subr.mxu0 0.0
    %2174 = vmatpush1.msra.mxu0 0.0
    %2175 = vmatprep.subr.mxu0 0.0
    %2176 = vmatpush1.msra.mxu0 0.0
    %2177 = vmatprep.subr.mxu0 0.0
    %2178 = vmatpush1.msra.mxu0 %v169
    %2179 = vmatprep.subr.mxu0 0.0
    %2180 = vmatpush1.msra.mxu0 %v168
    %2181 = vmatprep.subr.mxu0 0.0
    %2182 = vmatpush1.msra.mxu0 %v167
    %2183 = vmatprep.subr.mxu0 0.0
    %2184 = vmatpush1.msra.mxu0 %v166
    %2185 = vmatprep.subr.mxu0 0.0
    %2186 = vmatpush2.msra.mxu0 0.0
    %2187 = vmatprep.subr.mxu0 0.0
    %2188 = vmatpush2.msra.mxu0 0.0
    %2189 = vmatprep.subr.mxu0 0.0
    %2190 = vmatpush2.msra.mxu0 0.0
    %2191 = vmatprep.subr.mxu0 0.0
    %2192 = vmatpush2.msra.mxu0 0.0
    %2193 = vmatprep.subr.mxu0 0.0
    %2194 = vmatpush2.msra.mxu0 0.0
    %2195 = vmatprep.subr.mxu0 0.0
    %2196 = vmatpush2.msra.mxu0 0.0
    %2197 = vmatprep.subr.mxu0 0.0
    %2198 = vmatpush2.msra.mxu0 0.0
    %2199 = vmatprep.subr.mxu0 0.0
    %2200 = vmatpush2.msra.mxu0 0.0
    %2201 = vmatprep.subr.mxu0 0.0
    %2202 = vmatpush2.msra.mxu0 0.0
    %2203 = vmatprep.subr.mxu0 0.0
    %2204 = vmatpush2.msra.mxu0 0.0
    %2205 = vmatprep.subr.mxu0 0.0
    %2206 = vmatpush2.msra.mxu0 0.0
    %2207 = vmatprep.subr.mxu0 0.0
    %2208 = vmatpush2.msra.mxu0 0.0
    %2209 = vmatprep.subr.mxu0 0.0
    %2210 = vmatpush2.msra.mxu0 0.0
    %2211 = vmatprep.subr.mxu0 0.0
    %2212 = vmatpush2.msra.mxu0 0.0
    %2213 = vmatprep.subr.mxu0 0.0
    %2214 = vmatpush2.msra.mxu0 0.0
    %2215 = vmatprep.subr.mxu0 0.0
    %2216 = vmatpush2.msra.mxu0 0.0
    %2217 = vmatprep.mubr.f32.mxu0 0.0
    %2218 = vmatmul.mubr.f32.gmra.mxu0 %v2151
    %v2219 = vpop.f32.mrf.mxu0
    %v2220 = vadd.f32 0.0, %v2219
    %v2221 = vpop.f32.mrf.mxu0
    %2222 = vdwg.mxu0
    %2224 = vrot.lane.b32.xlu0 %v2220, 16
    %v2225 = vpop.permute.xlu0 %2224
    %v2227 = vadd.f32 %v2062, %v2225
    %v2228 = vadd.f32 %v2227, %v605
    %v2229 = vmax.f32 %v2228, 0.0
    %2231 = vrot.lane.b32.xlu0 %v2229, 112
    %v2232 = vpop.permute.xlu0 %2231
    %v2233 = vsel %vm179, %v2232, 0
    %2235 = vmatprep.subr.mxu0 0.0
    %2236 = vmatpush1.msra.mxu0 0.0
    %2237 = vmatprep.subr.mxu0 0.0
    %2238 = vmatpush1.msra.mxu0 0.0
    %2239 = vmatprep.subr.mxu0 0.0
    %2240 = vmatpush1.msra.mxu0 0.0
    %2241 = vmatprep.subr.mxu0 0.0
    %2242 = vmatpush1.msra.mxu0 0.0
    %2243 = vmatprep.subr.mxu0 0.0
    %2244 = vmatpush1.msra.mxu0 0.0
    %2245 = vmatprep.subr.mxu0 0.0
    %2246 = vmatpush1.msra.mxu0 0.0
    %2247 = vmatprep.subr.mxu0 0.0
    %2248 = vmatpush1.msra.mxu0 0.0
    %2249 = vmatprep.subr.mxu0 0.0
    %2250 = vmatpush1.msra.mxu0 0.0
    %2251 = vmatprep.subr.mxu0 0.0
    %2252 = vmatpush1.msra.mxu0 0.0
    %2253 = vmatprep.subr.mxu0 0.0
    %2254 = vmatpush1.msra.mxu0 0.0
    %2255 = vmatprep.subr.mxu0 0.0
    %2256 = vmatpush1.msra.mxu0 0.0
    %2257 = vmatprep.subr.mxu0 0.0
    %2258 = vmatpush1.msra.mxu0 0.0
    %2259 = vmatprep.subr.mxu0 0.0
    %2260 = vmatpush1.msra.mxu0 %v174
    %2261 = vmatprep.subr.mxu0 0.0
    %2262 = vmatpush1.msra.mxu0 %v173
    %2263 = vmatprep.subr.mxu0 0.0
    %2264 = vmatpush1.msra.mxu0 %v172
    %2265 = vmatprep.subr.mxu0 0.0
    %2266 = vmatpush1.msra.mxu0 %v171
    %2267 = vmatprep.subr.mxu0 0.0
    %2268 = vmatpush2.msra.mxu0 0.0
    %2269 = vmatprep.subr.mxu0 0.0
    %2270 = vmatpush2.msra.mxu0 0.0
    %2271 = vmatprep.subr.mxu0 0.0
    %2272 = vmatpush2.msra.mxu0 0.0
    %2273 = vmatprep.subr.mxu0 0.0
    %2274 = vmatpush2.msra.mxu0 0.0
    %2275 = vmatprep.subr.mxu0 0.0
    %2276 = vmatpush2.msra.mxu0 0.0
    %2277 = vmatprep.subr.mxu0 0.0
    %2278 = vmatpush2.msra.mxu0 0.0
    %2279 = vmatprep.subr.mxu0 0.0
    %2280 = vmatpush2.msra.mxu0 0.0
    %2281 = vmatprep.subr.mxu0 0.0
    %2282 = vmatpush2.msra.mxu0 0.0
    %2283 = vmatprep.subr.mxu0 0.0
    %2284 = vmatpush2.msra.mxu0 0.0
    %2285 = vmatprep.subr.mxu0 0.0
    %2286 = vmatpush2.msra.mxu0 0.0
    %2287 = vmatprep.subr.mxu0 0.0
    %2288 = vmatpush2.msra.mxu0 0.0
    %2289 = vmatprep.subr.mxu0 0.0
    %2290 = vmatpush2.msra.mxu0 0.0
    %2291 = vmatprep.subr.mxu0 0.0
    %2292 = vmatpush2.msra.mxu0 0.0
    %2293 = vmatprep.subr.mxu0 0.0
    %2294 = vmatpush2.msra.mxu0 0.0
    %2295 = vmatprep.subr.mxu0 0.0
    %2296 = vmatpush2.msra.mxu0 0.0
    %2297 = vmatprep.subr.mxu0 0.0
    %2298 = vmatpush2.msra.mxu0 0.0
    %2299 = vmatprep.mubr.f32.mxu0 0.0
    %2300 = vmatmul.mubr.f32.gmra.mxu0 %v2233
    %v2301 = vpop.f32.mrf.mxu0
    %v2302 = vadd.f32 %v175, %v2301
    %v2303 = vpop.f32.mrf.mxu0
    %2304 = vdwg.mxu0
    %v2305 = vsel %vm684, %v2302, -inf
    %2306 = vmax.xlane.f32.xlu0 %v2305
    %v2307 = vpop.xlane.xlu0 %2306
    %v2308 = vsub.f32 %v2302, %v2307
    %v2309 = vmul.f32 %v2308, 1.442695
    %v2310 = vpow.pop %v2309
    %v2311 = vsel %vm684, %v2310, 0.0
    %2312 = vadd.xlane.f32.xlu0 %v2311
    %v2313 = vpop.xlane.xlu0 %2312
    %v2314 = vlog2.pop %v2313
    %v2315 = vmul.f32 %v2314, 0.6931472
    %v2316 = vsub.f32 %v2308, %v2315
    %s2317 = scalar_lea.vmem [#allocation14], 6
    %2318 = vst.msk [vmem:[%s2317] sm:$0x1] %vm698, %v2316
    %v2320 = vunpack.c.l.s4 1966171168
    %v2321 = vunpack.c.0.s8 %v2320
    %v2322 = vlaneseq
    %v2323 = vshrl.u32 %v2322, 7
    %v2324 = vsub.s32 %v2321, %v2323
    %v2325 = vrot.slane %v1989, %v2324
    %v2327 = vunpack.c.l.s4 1966171168
    %v2328 = vunpack.c.0.s8 %v2327
    %v2329 = vlaneseq
    %v2330 = vshrl.u32 %v2329, 7
    %v2331 = vsub.s32 %v2328, %v2330
    %v2332 = vrot.slane %v2325, %v2331
    %2333 = vrot.lane.b32.xlu0 %v2332, 96
    %v2334 = vpop.permute.xlu0 %2333
    %2336 = vst.msk [vmem:[%s2317] sm:$0x1] %vm719, %v2334
    %v2339 = vunpack.c.l.s4 1966171168
    %v2340 = vunpack.c.0.s8 %v2339
    %v2341 = vlaneseq
    %v2342 = vshrl.u32 %v2341, 7
    %v2343 = vsub.s32 %v2340, %v2342
    %v2344 = vrot.slane %v1983, %v2343
    %v2346 = vunpack.c.l.s4 1966171168
    %v2347 = vunpack.c.0.s8 %v2346
    %v2348 = vlaneseq
    %v2349 = vshrl.u32 %v2348, 7
    %v2350 = vsub.s32 %v2347, %v2349
    %v2351 = vrot.slane %v2344, %v2350
    %2352 = vrot.lane.b32.xlu0 %v2351, 64
    %v2353 = vpop.permute.xlu0 %2352
    %2355 = vst.msk [vmem:[%s2317] sm:$0x1] %vm741, %v2353
    %2356 = vst.msk [vmem:[%s2317 + $0x1] sm:$0x1] %vm744, %v2076
    %s2357 = scalar_lea.vmem [#allocation2], 4
    %v2358 = vld [vmem:[%s2357] sm:$0x1]
    %2359 = vmatprep.subr.mxu0 0.0
    %2360 = vmatpush1.msra.mxu0 0.0
    %2361 = vmatprep.subr.mxu0 0.0
    %2362 = vmatpush1.msra.mxu0 0.0
    %2363 = vmatprep.subr.mxu0 0.0
    %2364 = vmatpush1.msra.mxu0 0.0
    %2365 = vmatprep.subr.mxu0 0.0
    %2366 = vmatpush1.msra.mxu0 0.0
    %2367 = vmatprep.subr.mxu0 0.0
    %2368 = vmatpush1.msra.mxu0 0.0
    %2369 = vmatprep.subr.mxu0 0.0
    %2370 = vmatpush1.msra.mxu0 0.0
    %2371 = vmatprep.subr.mxu0 0.0
    %2372 = vmatpush1.msra.mxu0 0.0
    %2373 = vmatprep.subr.mxu0 0.0
    %2374 = vmatpush1.msra.mxu0 0.0
    %2375 = vmatprep.subr.mxu0 0.0
    %2376 = vmatpush1.msra.mxu0 0.0
    %2377 = vmatprep.subr.mxu0 0.0
    %2378 = vmatpush1.msra.mxu0 0.0
    %2379 = vmatprep.subr.mxu0 0.0
    %2380 = vmatpush1.msra.mxu0 0.0
    %2381 = vmatprep.subr.mxu0 0.0
    %2382 = vmatpush1.msra.mxu0 0.0
    %2383 = vmatprep.subr.mxu0 0.0
    %2384 = vmatpush1.msra.mxu0 %v157
    %2385 = vmatprep.subr.mxu0 0.0
    %2386 = vmatpush1.msra.mxu0 %v156
    %2387 = vmatprep.subr.mxu0 0.0
    %2388 = vmatpush1.msra.mxu0 %v155
    %2389 = vmatprep.subr.mxu0 0.0
    %2390 = vmatpush1.msra.mxu0 %v154
    %2391 = vmatprep.subr.mxu0 0.0
    %2392 = vmatpush2.msra.mxu0 0.0
    %2393 = vmatprep.subr.mxu0 0.0
    %2394 = vmatpush2.msra.mxu0 0.0
    %2395 = vmatprep.subr.mxu0 0.0
    %2396 = vmatpush2.msra.mxu0 0.0
    %2397 = vmatprep.subr.mxu0 0.0
    %2398 = vmatpush2.msra.mxu0 0.0
    %2399 = vmatprep.subr.mxu0 0.0
    %2400 = vmatpush2.msra.mxu0 0.0
    %2401 = vmatprep.subr.mxu0 0.0
    %2402 = vmatpush2.msra.mxu0 0.0
    %2403 = vmatprep.subr.mxu0 0.0
    %2404 = vmatpush2.msra.mxu0 0.0
    %2405 = vmatprep.subr.mxu0 0.0
    %2406 = vmatpush2.msra.mxu0 0.0
    %2407 = vmatprep.subr.mxu0 0.0
    %2408 = vmatpush2.msra.mxu0 0.0
    %2409 = vmatprep.subr.mxu0 0.0
    %2410 = vmatpush2.msra.mxu0 0.0
    %2411 = vmatprep.subr.mxu0 0.0
    %2412 = vmatpush2.msra.mxu0 0.0
    %2413 = vmatprep.subr.mxu0 0.0
    %2414 = vmatpush2.msra.mxu0 0.0
    %2415 = vmatprep.subr.mxu0 0.0
    %2416 = vmatpush2.msra.mxu0 0.0
    %2417 = vmatprep.subr.mxu0 0.0
    %2418 = vmatpush2.msra.mxu0 0.0
    %2419 = vmatprep.subr.mxu0 0.0
    %2420 = vmatpush2.msra.mxu0 0.0
    %2421 = vmatprep.subr.mxu0 0.0
    %2422 = vmatpush2.msra.mxu0 0.0
    %2423 = vmatprep.mubr.f32.mxu0 0.0
    %2424 = vmatmul.mubr.f32.gmra.mxu0 %v1993
    %v2425 = vpop.f32.mrf.mxu0
    %v2426 = vadd.f32 0.0, %v2425
    %v2427 = vpop.f32.mrf.mxu0
    %2428 = vdwg.mxu0
    %v2430 = vsel %vm179, %v2358, 0
    %2432 = vmatprep.subr.mxu0 0.0
    %2433 = vmatpush1.msra.mxu0 0.0
    %2434 = vmatprep.subr.mxu0 0.0
    %2435 = vmatpush1.msra.mxu0 0.0
    %2436 = vmatprep.subr.mxu0 0.0
    %2437 = vmatpush1.msra.mxu0 0.0
    %2438 = vmatprep.subr.mxu0 0.0
    %2439 = vmatpush1.msra.mxu0 0.0
    %2440 = vmatprep.subr.mxu0 0.0
    %2441 = vmatpush1.msra.mxu0 0.0
    %2442 = vmatprep.subr.mxu0 0.0
    %2443 = vmatpush1.msra.mxu0 0.0
    %2444 = vmatprep.subr.mxu0 0.0
    %2445 = vmatpush1.msra.mxu0 0.0
    %2446 = vmatprep.subr.mxu0 0.0
    %2447 = vmatpush1.msra.mxu0 0.0
    %2448 = vmatprep.subr.mxu0 0.0
    %2449 = vmatpush1.msra.mxu0 0.0
    %2450 = vmatprep.subr.mxu0 0.0
    %2451 = vmatpush1.msra.mxu0 0.0
    %2452 = vmatprep.subr.mxu0 0.0
    %2453 = vmatpush1.msra.mxu0 0.0
    %2454 = vmatprep.subr.mxu0 0.0
    %2455 = vmatpush1.msra.mxu0 0.0
    %2456 = vmatprep.subr.mxu0 0.0
    %2457 = vmatpush1.msra.mxu0 %v153
    %2458 = vmatprep.subr.mxu0 0.0
    %2459 = vmatpush1.msra.mxu0 %v152
    %2460 = vmatprep.subr.mxu0 0.0
    %2461 = vmatpush1.msra.mxu0 %v151
    %2462 = vmatprep.subr.mxu0 0.0
    %2463 = vmatpush1.msra.mxu0 %v150
    %2464 = vmatprep.subr.mxu0 0.0
    %2465 = vmatpush2.msra.mxu0 0.0
    %2466 = vmatprep.subr.mxu0 0.0
    %2467 = vmatpush2.msra.mxu0 0.0
    %2468 = vmatprep.subr.mxu0 0.0
    %2469 = vmatpush2.msra.mxu0 0.0
    %2470 = vmatprep.subr.mxu0 0.0
    %2471 = vmatpush2.msra.mxu0 0.0
    %2472 = vmatprep.subr.mxu0 0.0
    %2473 = vmatpush2.msra.mxu0 0.0
    %2474 = vmatprep.subr.mxu0 0.0
    %2475 = vmatpush2.msra.mxu0 0.0
    %2476 = vmatprep.subr.mxu0 0.0
    %2477 = vmatpush2.msra.mxu0 0.0
    %2478 = vmatprep.subr.mxu0 0.0
    %2479 = vmatpush2.msra.mxu0 0.0
    %2480 = vmatprep.subr.mxu0 0.0
    %2481 = vmatpush2.msra.mxu0 0.0
    %2482 = vmatprep.subr.mxu0 0.0
    %2483 = vmatpush2.msra.mxu0 0.0
    %2484 = vmatprep.subr.mxu0 0.0
    %2485 = vmatpush2.msra.mxu0 0.0
    %2486 = vmatprep.subr.mxu0 0.0
    %2487 = vmatpush2.msra.mxu0 0.0
    %2488 = vmatprep.subr.mxu0 0.0
    %2489 = vmatpush2.msra.mxu0 0.0
    %2490 = vmatprep.subr.mxu0 0.0
    %2491 = vmatpush2.msra.mxu0 0.0
    %2492 = vmatprep.subr.mxu0 0.0
    %2493 = vmatpush2.msra.mxu0 0.0
    %2494 = vmatprep.subr.mxu0 0.0
    %2495 = vmatpush2.msra.mxu0 0.0
    %2496 = vmatprep.mubr.f32.mxu0 0.0
    %2497 = vmatmul.mubr.f32.gmra.mxu0 %v2430
    %v2498 = vpop.f32.mrf.mxu0
    %v2499 = vadd.f32 %v2426, %v2498
    %v2500 = vpop.f32.mrf.mxu0
    %2501 = vdwg.mxu0
    %v2502 = vadd.f32 %v2499, %v158
    %v2503 = vxor.u32 %v2502, 2147483648
    %v2504 = vmul.f32 %v2503, 1.442695
    %v2505 = vpow.pop %v2504
    %v2506 = vadd.f32 %v2505, 1.0
    %v2507 = vrcp.pop %v2506
    %v2508 = vmul.f32 1.0, %v2507
    %v2509 = vtanh.pop %v2502
    %v2510 = vmul.f32 %v2508, %v1983
    %2512 = vrot.lane.b32.xlu0 %v2509, 64
    %v2513 = vpop.permute.xlu0 %2512
    %v2515 = vmul.f32 %v2508, %v2513
    %2517 = vrot.lane.b32.xlu0 %v2515, 32
    %v2518 = vpop.permute.xlu0 %2517
    %v2520 = vadd.f32 %v2510, %v2518
    %v2521 = vtanh.pop %v2520
    %2523 = vrot.lane.b32.xlu0 %v2521, 64
    %v2524 = vpop.permute.xlu0 %2523
    %v2526 = vmul.f32 %v2508, %v2524
    %2528 = vrot.lane.b32.xlu0 %v2526, 32
    %v2529 = vpop.permute.xlu0 %2528
    %v2530 = vsel %vm179, %v2529, 0
    %2532 = vmatprep.subr.mxu0 0.0
    %2533 = vmatpush1.msra.mxu0 0.0
    %2534 = vmatprep.subr.mxu0 0.0
    %2535 = vmatpush1.msra.mxu0 0.0
    %2536 = vmatprep.subr.mxu0 0.0
    %2537 = vmatpush1.msra.mxu0 0.0
    %2538 = vmatprep.subr.mxu0 0.0
    %2539 = vmatpush1.msra.mxu0 0.0
    %2540 = vmatprep.subr.mxu0 0.0
    %2541 = vmatpush1.msra.mxu0 0.0
    %2542 = vmatprep.subr.mxu0 0.0
    %2543 = vmatpush1.msra.mxu0 0.0
    %2544 = vmatprep.subr.mxu0 0.0
    %2545 = vmatpush1.msra.mxu0 0.0
    %2546 = vmatprep.subr.mxu0 0.0
    %2547 = vmatpush1.msra.mxu0 0.0
    %2548 = vmatprep.subr.mxu0 0.0
    %2549 = vmatpush1.msra.mxu0 0.0
    %2550 = vmatprep.subr.mxu0 0.0
    %2551 = vmatpush1.msra.mxu0 0.0
    %2552 = vmatprep.subr.mxu0 0.0
    %2553 = vmatpush1.msra.mxu0 0.0
    %2554 = vmatprep.subr.mxu0 0.0
    %2555 = vmatpush1.msra.mxu0 0.0
    %2556 = vmatprep.subr.mxu0 0.0
    %2557 = vmatpush1.msra.mxu0 %v162
    %2558 = vmatprep.subr.mxu0 0.0
    %2559 = vmatpush1.msra.mxu0 %v161
    %2560 = vmatprep.subr.mxu0 0.0
    %2561 = vmatpush1.msra.mxu0 %v160
    %2562 = vmatprep.subr.mxu0 0.0
    %2563 = vmatpush1.msra.mxu0 %v159
    %2564 = vmatprep.subr.mxu0 0.0
    %2565 = vmatpush2.msra.mxu0 0.0
    %2566 = vmatprep.subr.mxu0 0.0
    %2567 = vmatpush2.msra.mxu0 0.0
    %2568 = vmatprep.subr.mxu0 0.0
    %2569 = vmatpush2.msra.mxu0 0.0
    %2570 = vmatprep.subr.mxu0 0.0
    %2571 = vmatpush2.msra.mxu0 0.0
    %2572 = vmatprep.subr.mxu0 0.0
    %2573 = vmatpush2.msra.mxu0 0.0
    %2574 = vmatprep.subr.mxu0 0.0
    %2575 = vmatpush2.msra.mxu0 0.0
    %2576 = vmatprep.subr.mxu0 0.0
    %2577 = vmatpush2.msra.mxu0 0.0
    %2578 = vmatprep.subr.mxu0 0.0
    %2579 = vmatpush2.msra.mxu0 0.0
    %2580 = vmatprep.subr.mxu0 0.0
    %2581 = vmatpush2.msra.mxu0 0.0
    %2582 = vmatprep.subr.mxu0 0.0
    %2583 = vmatpush2.msra.mxu0 0.0
    %2584 = vmatprep.subr.mxu0 0.0
    %2585 = vmatpush2.msra.mxu0 0.0
    %2586 = vmatprep.subr.mxu0 0.0
    %2587 = vmatpush2.msra.mxu0 0.0
    %2588 = vmatprep.subr.mxu0 0.0
    %2589 = vmatpush2.msra.mxu0 0.0
    %2590 = vmatprep.subr.mxu0 0.0
    %2591 = vmatpush2.msra.mxu0 0.0
    %2592 = vmatprep.subr.mxu0 0.0
    %2593 = vmatpush2.msra.mxu0 0.0
    %2594 = vmatprep.subr.mxu0 0.0
    %2595 = vmatpush2.msra.mxu0 0.0
    %2596 = vmatprep.mubr.f32.mxu0 0.0
    %2597 = vmatmul.mubr.f32.gmra.mxu0 %v2530
    %v2598 = vpop.f32.mrf.mxu0
    %v2599 = vadd.f32 0.0, %v2598
    %v2600 = vpop.f32.mrf.mxu0
    %2601 = vdwg.mxu0
    %v2602 = vadd.f32 %v2599, %v163
    %v2603 = vsel %vm435, %v2602, -inf
    %2604 = vmax.xlane.f32.xlu0 %v2603
    %v2605 = vpop.xlane.xlu0 %2604
    %v2606 = vsub.f32 %v2602, %v2605
    %v2607 = vmul.f32 %v2606, 1.442695
    %v2608 = vpow.pop %v2607
    %v2609 = vsel %vm435, %v2608, 0.0
    %2610 = vadd.xlane.f32.xlu0 %v2609
    %v2611 = vpop.xlane.xlu0 %2610
    %v2612 = vrcp.pop %v2611
    %v2613 = vmul.f32 %v2608, %v2612
    %v2615 = vsel %vm447, %v2613, 0
    %2617 = vmatprep.subr.mxu0 0.0
    %2618 = vmatpush1.msra.mxu0 0.0
    %2619 = vmatprep.subr.mxu0 0.0
    %2620 = vmatpush1.msra.mxu0 0.0
    %2621 = vmatprep.subr.mxu0 0.0
    %2622 = vmatpush1.msra.mxu0 0.0
    %2623 = vmatprep.subr.mxu0 0.0
    %2624 = vmatpush1.msra.mxu0 0.0
    %2625 = vmatprep.subr.mxu0 0.0
    %2626 = vmatpush1.msra.mxu0 0.0
    %2627 = vmatprep.subr.mxu0 0.0
    %2628 = vmatpush1.msra.mxu0 0.0
    %2629 = vmatprep.subr.mxu0 0.0
    %2630 = vmatpush1.msra.mxu0 0.0
    %2631 = vmatprep.subr.mxu0 0.0
    %2632 = vmatpush1.msra.mxu0 0.0
    %2633 = vmatprep.subr.mxu0 0.0
    %2634 = vmatpush1.msra.mxu0 0.0
    %2635 = vmatprep.subr.mxu0 0.0
    %2636 = vmatpush1.msra.mxu0 0.0
    %2637 = vmatprep.subr.mxu0 0.0
    %2638 = vmatpush1.msra.mxu0 0.0
    %2639 = vmatprep.subr.mxu0 0.0
    %2640 = vmatpush1.msra.mxu0 0.0
    %2641 = vmatprep.subr.mxu0 0.0
    %2642 = vmatpush1.msra.mxu0 0.0
    %2643 = vmatprep.subr.mxu0 0.0
    %2644 = vmatpush1.msra.mxu0 0.0
    %2645 = vmatprep.subr.mxu0 0.0
    %2646 = vmatpush1.msra.mxu0 %v165
    %2647 = vmatprep.subr.mxu0 0.0
    %2648 = vmatpush1.msra.mxu0 %v164
    %2649 = vmatprep.subr.mxu0 0.0
    %2650 = vmatpush2.msra.mxu0 0.0
    %2651 = vmatprep.subr.mxu0 0.0
    %2652 = vmatpush2.msra.mxu0 0.0
    %2653 = vmatprep.subr.mxu0 0.0
    %2654 = vmatpush2.msra.mxu0 0.0
    %2655 = vmatprep.subr.mxu0 0.0
    %2656 = vmatpush2.msra.mxu0 0.0
    %2657 = vmatprep.subr.mxu0 0.0
    %2658 = vmatpush2.msra.mxu0 0.0
    %2659 = vmatprep.subr.mxu0 0.0
    %2660 = vmatpush2.msra.mxu0 0.0
    %2661 = vmatprep.subr.mxu0 0.0
    %2662 = vmatpush2.msra.mxu0 0.0
    %2663 = vmatprep.subr.mxu0 0.0
    %2664 = vmatpush2.msra.mxu0 0.0
    %2665 = vmatprep.subr.mxu0 0.0
    %2666 = vmatpush2.msra.mxu0 0.0
    %2667 = vmatprep.subr.mxu0 0.0
    %2668 = vmatpush2.msra.mxu0 0.0
    %2669 = vmatprep.subr.mxu0 0.0
    %2670 = vmatpush2.msra.mxu0 0.0
    %2671 = vmatprep.subr.mxu0 0.0
    %2672 = vmatpush2.msra.mxu0 0.0
    %2673 = vmatprep.subr.mxu0 0.0
    %2674 = vmatpush2.msra.mxu0 0.0
    %2675 = vmatprep.subr.mxu0 0.0
    %2676 = vmatpush2.msra.mxu0 0.0
    %2677 = vmatprep.subr.mxu0 0.0
    %2678 = vmatpush2.msra.mxu0 0.0
    %2679 = vmatprep.subr.mxu0 0.0
    %2680 = vmatpush2.msra.mxu0 0.0
    %2681 = vmatprep.mubr.f32.mxu0 0.0
    %2682 = vmatmul.mubr.f32.gmra.mxu0 %v2615
    %v2683 = vpop.f32.mrf.mxu0
    %v2684 = vadd.f32 0.0, %v2683
    %v2685 = vpop.f32.mrf.mxu0
    %2686 = vdwg.mxu0
    %v2688 = vsel %vm179, %v2684, 0
    %2690 = vmatprep.subr.mxu0 0.0
    %2691 = vmatpush1.msra.mxu0 0.0
    %2692 = vmatprep.subr.mxu0 0.0
    %2693 = vmatpush1.msra.mxu0 0.0
    %2694 = vmatprep.subr.mxu0 0.0
    %2695 = vmatpush1.msra.mxu0 0.0
    %2696 = vmatprep.subr.mxu0 0.0
    %2697 = vmatpush1.msra.mxu0 0.0
    %2698 = vmatprep.subr.mxu0 0.0
    %2699 = vmatpush1.msra.mxu0 0.0
    %2700 = vmatprep.subr.mxu0 0.0
    %2701 = vmatpush1.msra.mxu0 0.0
    %2702 = vmatprep.subr.mxu0 0.0
    %2703 = vmatpush1.msra.mxu0 0.0
    %2704 = vmatprep.subr.mxu0 0.0
    %2705 = vmatpush1.msra.mxu0 0.0
    %2706 = vmatprep.subr.mxu0 0.0
    %2707 = vmatpush1.msra.mxu0 0.0
    %2708 = vmatprep.subr.mxu0 0.0
    %2709 = vmatpush1.msra.mxu0 0.0
    %2710 = vmatprep.subr.mxu0 0.0
    %2711 = vmatpush1.msra.mxu0 0.0
    %2712 = vmatprep.subr.mxu0 0.0
    %2713 = vmatpush1.msra.mxu0 0.0
    %2714 = vmatprep.subr.mxu0 0.0
    %2715 = vmatpush1.msra.mxu0 %v169
    %2716 = vmatprep.subr.mxu0 0.0
    %2717 = vmatpush1.msra.mxu0 %v168
    %2718 = vmatprep.subr.mxu0 0.0
    %2719 = vmatpush1.msra.mxu0 %v167
    %2720 = vmatprep.subr.mxu0 0.0
    %2721 = vmatpush1.msra.mxu0 %v166
    %2722 = vmatprep.subr.mxu0 0.0
    %2723 = vmatpush2.msra.mxu0 0.0
    %2724 = vmatprep.subr.mxu0 0.0
    %2725 = vmatpush2.msra.mxu0 0.0
    %2726 = vmatprep.subr.mxu0 0.0
    %2727 = vmatpush2.msra.mxu0 0.0
    %2728 = vmatprep.subr.mxu0 0.0
    %2729 = vmatpush2.msra.mxu0 0.0
    %2730 = vmatprep.subr.mxu0 0.0
    %2731 = vmatpush2.msra.mxu0 0.0
    %2732 = vmatprep.subr.mxu0 0.0
    %2733 = vmatpush2.msra.mxu0 0.0
    %2734 = vmatprep.subr.mxu0 0.0
    %2735 = vmatpush2.msra.mxu0 0.0
    %2736 = vmatprep.subr.mxu0 0.0
    %2737 = vmatpush2.msra.mxu0 0.0
    %2738 = vmatprep.subr.mxu0 0.0
    %2739 = vmatpush2.msra.mxu0 0.0
    %2740 = vmatprep.subr.mxu0 0.0
    %2741 = vmatpush2.msra.mxu0 0.0
    %2742 = vmatprep.subr.mxu0 0.0
    %2743 = vmatpush2.msra.mxu0 0.0
    %2744 = vmatprep.subr.mxu0 0.0
    %2745 = vmatpush2.msra.mxu0 0.0
    %2746 = vmatprep.subr.mxu0 0.0
    %2747 = vmatpush2.msra.mxu0 0.0
    %2748 = vmatprep.subr.mxu0 0.0
    %2749 = vmatpush2.msra.mxu0 0.0
    %2750 = vmatprep.subr.mxu0 0.0
    %2751 = vmatpush2.msra.mxu0 0.0
    %2752 = vmatprep.subr.mxu0 0.0
    %2753 = vmatpush2.msra.mxu0 0.0
    %2754 = vmatprep.mubr.f32.mxu0 0.0
    %2755 = vmatmul.mubr.f32.gmra.mxu0 %v2688
    %v2756 = vpop.f32.mrf.mxu0
    %v2757 = vadd.f32 0.0, %v2756
    %v2758 = vpop.f32.mrf.mxu0
    %2759 = vdwg.mxu0
    %2761 = vrot.lane.b32.xlu0 %v2757, 16
    %v2762 = vpop.permute.xlu0 %2761
    %v2764 = vadd.f32 %v2599, %v2762
    %v2765 = vadd.f32 %v2764, %v605
    %v2766 = vmax.f32 %v2765, 0.0
    %2768 = vrot.lane.b32.xlu0 %v2766, 112
    %v2769 = vpop.permute.xlu0 %2768
    %v2770 = vsel %vm179, %v2769, 0
    %2772 = vmatprep.subr.mxu0 0.0
    %2773 = vmatpush1.msra.mxu0 0.0
    %2774 = vmatprep.subr.mxu0 0.0
    %2775 = vmatpush1.msra.mxu0 0.0
    %2776 = vmatprep.subr.mxu0 0.0
    %2777 = vmatpush1.msra.mxu0 0.0
    %2778 = vmatprep.subr.mxu0 0.0
    %2779 = vmatpush1.msra.mxu0 0.0
    %2780 = vmatprep.subr.mxu0 0.0
    %2781 = vmatpush1.msra.mxu0 0.0
    %2782 = vmatprep.subr.mxu0 0.0
    %2783 = vmatpush1.msra.mxu0 0.0
    %2784 = vmatprep.subr.mxu0 0.0
    %2785 = vmatpush1.msra.mxu0 0.0
    %2786 = vmatprep.subr.mxu0 0.0
    %2787 = vmatpush1.msra.mxu0 0.0
    %2788 = vmatprep.subr.mxu0 0.0
    %2789 = vmatpush1.msra.mxu0 0.0
    %2790 = vmatprep.subr.mxu0 0.0
    %2791 = vmatpush1.msra.mxu0 0.0
    %2792 = vmatprep.subr.mxu0 0.0
    %2793 = vmatpush1.msra.mxu0 0.0
    %2794 = vmatprep.subr.mxu0 0.0
    %2795 = vmatpush1.msra.mxu0 0.0
    %2796 = vmatprep.subr.mxu0 0.0
    %2797 = vmatpush1.msra.mxu0 %v174
    %2798 = vmatprep.subr.mxu0 0.0
    %2799 = vmatpush1.msra.mxu0 %v173
    %2800 = vmatprep.subr.mxu0 0.0
    %2801 = vmatpush1.msra.mxu0 %v172
    %2802 = vmatprep.subr.mxu0 0.0
    %2803 = vmatpush1.msra.mxu0 %v171
    %2804 = vmatprep.subr.mxu0 0.0
    %2805 = vmatpush2.msra.mxu0 0.0
    %2806 = vmatprep.subr.mxu0 0.0
    %2807 = vmatpush2.msra.mxu0 0.0
    %2808 = vmatprep.subr.mxu0 0.0
    %2809 = vmatpush2.msra.mxu0 0.0
    %2810 = vmatprep.subr.mxu0 0.0
    %2811 = vmatpush2.msra.mxu0 0.0
    %2812 = vmatprep.subr.mxu0 0.0
    %2813 = vmatpush2.msra.mxu0 0.0
    %2814 = vmatprep.subr.mxu0 0.0
    %2815 = vmatpush2.msra.mxu0 0.0
    %2816 = vmatprep.subr.mxu0 0.0
    %2817 = vmatpush2.msra.mxu0 0.0
    %2818 = vmatprep.subr.mxu0 0.0
    %2819 = vmatpush2.msra.mxu0 0.0
    %2820 = vmatprep.subr.mxu0 0.0
    %2821 = vmatpush2.msra.mxu0 0.0
    %2822 = vmatprep.subr.mxu0 0.0
    %2823 = vmatpush2.msra.mxu0 0.0
    %2824 = vmatprep.subr.mxu0 0.0
    %2825 = vmatpush2.msra.mxu0 0.0
    %2826 = vmatprep.subr.mxu0 0.0
    %2827 = vmatpush2.msra.mxu0 0.0
    %2828 = vmatprep.subr.mxu0 0.0
    %2829 = vmatpush2.msra.mxu0 0.0
    %2830 = vmatprep.subr.mxu0 0.0
    %2831 = vmatpush2.msra.mxu0 0.0
    %2832 = vmatprep.subr.mxu0 0.0
    %2833 = vmatpush2.msra.mxu0 0.0
    %2834 = vmatprep.subr.mxu0 0.0
    %2835 = vmatpush2.msra.mxu0 0.0
    %2836 = vmatprep.mubr.f32.mxu0 0.0
    %2837 = vmatmul.mubr.f32.gmra.mxu0 %v2770
    %v2838 = vpop.f32.mrf.mxu0
    %v2839 = vadd.f32 %v175, %v2838
    %v2840 = vpop.f32.mrf.mxu0
    %2841 = vdwg.mxu0
    %v2842 = vsel %vm684, %v2839, -inf
    %2843 = vmax.xlane.f32.xlu0 %v2842
    %v2844 = vpop.xlane.xlu0 %2843
    %v2845 = vsub.f32 %v2839, %v2844
    %v2846 = vmul.f32 %v2845, 1.442695
    %v2847 = vpow.pop %v2846
    %v2848 = vsel %vm684, %v2847, 0.0
    %2849 = vadd.xlane.f32.xlu0 %v2848
    %v2850 = vpop.xlane.xlu0 %2849
    %v2851 = vlog2.pop %v2850
    %v2852 = vmul.f32 %v2851, 0.6931472
    %v2853 = vsub.f32 %v2845, %v2852
    %s2854 = scalar_lea.vmem [#allocation14], 8
    %2855 = vst.msk [vmem:[%s2854] sm:$0x1] %vm698, %v2853
    %v2857 = vunpack.c.l.s4 1966171168
    %v2858 = vunpack.c.0.s8 %v2857
    %v2859 = vlaneseq
    %v2860 = vshrl.u32 %v2859, 7
    %v2861 = vsub.s32 %v2858, %v2860
    %v2862 = vrot.slane %v2526, %v2861
    %v2864 = vunpack.c.l.s4 1966171168
    %v2865 = vunpack.c.0.s8 %v2864
    %v2866 = vlaneseq
    %v2867 = vshrl.u32 %v2866, 7
    %v2868 = vsub.s32 %v2865, %v2867
    %v2869 = vrot.slane %v2862, %v2868
    %2870 = vrot.lane.b32.xlu0 %v2869, 96
    %v2871 = vpop.permute.xlu0 %2870
    %2873 = vst.msk [vmem:[%s2854] sm:$0x1] %vm719, %v2871
    %v2876 = vunpack.c.l.s4 1966171168
    %v2877 = vunpack.c.0.s8 %v2876
    %v2878 = vlaneseq
    %v2879 = vshrl.u32 %v2878, 7
    %v2880 = vsub.s32 %v2877, %v2879
    %v2881 = vrot.slane %v2520, %v2880
    %v2883 = vunpack.c.l.s4 1966171168
    %v2884 = vunpack.c.0.s8 %v2883
    %v2885 = vlaneseq
    %v2886 = vshrl.u32 %v2885, 7
    %v2887 = vsub.s32 %v2884, %v2886
    %v2888 = vrot.slane %v2881, %v2887
    %2889 = vrot.lane.b32.xlu0 %v2888, 64
    %v2890 = vpop.permute.xlu0 %2889
    %2892 = vst.msk [vmem:[%s2854] sm:$0x1] %vm741, %v2890
    %2893 = vst.msk [vmem:[%s2854 + $0x1] sm:$0x1] %vm744, %v2613
    %s2894 = scalar_lea.vmem [#allocation2], 5
    %v2895 = vld [vmem:[%s2894] sm:$0x1]
    %2896 = vmatprep.subr.mxu0 0.0
    %2897 = vmatpush1.msra.mxu0 0.0
    %2898 = vmatprep.subr.mxu0 0.0
    %2899 = vmatpush1.msra.mxu0 0.0
    %2900 = vmatprep.subr.mxu0 0.0
    %2901 = vmatpush1.msra.mxu0 0.0
    %2902 = vmatprep.subr.mxu0 0.0
    %2903 = vmatpush1.msra.mxu0 0.0
    %2904 = vmatprep.subr.mxu0 0.0
    %2905 = vmatpush1.msra.mxu0 0.0
    %2906 = vmatprep.subr.mxu0 0.0
    %2907 = vmatpush1.msra.mxu0 0.0
    %2908 = vmatprep.subr.mxu0 0.0
    %2909 = vmatpush1.msra.mxu0 0.0
    %2910 = vmatprep.subr.mxu0 0.0
    %2911 = vmatpush1.msra.mxu0 0.0
    %2912 = vmatprep.subr.mxu0 0.0
    %2913 = vmatpush1.msra.mxu0 0.0
    %2914 = vmatprep.subr.mxu0 0.0
    %2915 = vmatpush1.msra.mxu0 0.0
    %2916 = vmatprep.subr.mxu0 0.0
    %2917 = vmatpush1.msra.mxu0 0.0
    %2918 = vmatprep.subr.mxu0 0.0
    %2919 = vmatpush1.msra.mxu0 0.0
    %2920 = vmatprep.subr.mxu0 0.0
    %2921 = vmatpush1.msra.mxu0 %v157
    %2922 = vmatprep.subr.mxu0 0.0
    %2923 = vmatpush1.msra.mxu0 %v156
    %2924 = vmatprep.subr.mxu0 0.0
    %2925 = vmatpush1.msra.mxu0 %v155
    %2926 = vmatprep.subr.mxu0 0.0
    %2927 = vmatpush1.msra.mxu0 %v154
    %2928 = vmatprep.subr.mxu0 0.0
    %2929 = vmatpush2.msra.mxu0 0.0
    %2930 = vmatprep.subr.mxu0 0.0
    %2931 = vmatpush2.msra.mxu0 0.0
    %2932 = vmatprep.subr.mxu0 0.0
    %2933 = vmatpush2.msra.mxu0 0.0
    %2934 = vmatprep.subr.mxu0 0.0
    %2935 = vmatpush2.msra.mxu0 0.0
    %2936 = vmatprep.subr.mxu0 0.0
    %2937 = vmatpush2.msra.mxu0 0.0
    %2938 = vmatprep.subr.mxu0 0.0
    %2939 = vmatpush2.msra.mxu0 0.0
    %2940 = vmatprep.subr.mxu0 0.0
    %2941 = vmatpush2.msra.mxu0 0.0
    %2942 = vmatprep.subr.mxu0 0.0
    %2943 = vmatpush2.msra.mxu0 0.0
    %2944 = vmatprep.subr.mxu0 0.0
    %2945 = vmatpush2.msra.mxu0 0.0
    %2946 = vmatprep.subr.mxu0 0.0
    %2947 = vmatpush2.msra.mxu0 0.0
    %2948 = vmatprep.subr.mxu0 0.0
    %2949 = vmatpush2.msra.mxu0 0.0
    %2950 = vmatprep.subr.mxu0 0.0
    %2951 = vmatpush2.msra.mxu0 0.0
    %2952 = vmatprep.subr.mxu0 0.0
    %2953 = vmatpush2.msra.mxu0 0.0
    %2954 = vmatprep.subr.mxu0 0.0
    %2955 = vmatpush2.msra.mxu0 0.0
    %2956 = vmatprep.subr.mxu0 0.0
    %2957 = vmatpush2.msra.mxu0 0.0
    %2958 = vmatprep.subr.mxu0 0.0
    %2959 = vmatpush2.msra.mxu0 0.0
    %2960 = vmatprep.mubr.f32.mxu0 0.0
    %2961 = vmatmul.mubr.f32.gmra.mxu0 %v2530
    %v2962 = vpop.f32.mrf.mxu0
    %v2963 = vadd.f32 0.0, %v2962
    %v2964 = vpop.f32.mrf.mxu0
    %2965 = vdwg.mxu0
    %v2967 = vsel %vm179, %v2895, 0
    %2969 = vmatprep.subr.mxu0 0.0
    %2970 = vmatpush1.msra.mxu0 0.0
    %2971 = vmatprep.subr.mxu0 0.0
    %2972 = vmatpush1.msra.mxu0 0.0
    %2973 = vmatprep.subr.mxu0 0.0
    %2974 = vmatpush1.msra.mxu0 0.0
    %2975 = vmatprep.subr.mxu0 0.0
    %2976 = vmatpush1.msra.mxu0 0.0
    %2977 = vmatprep.subr.mxu0 0.0
    %2978 = vmatpush1.msra.mxu0 0.0
    %2979 = vmatprep.subr.mxu0 0.0
    %2980 = vmatpush1.msra.mxu0 0.0
    %2981 = vmatprep.subr.mxu0 0.0
    %2982 = vmatpush1.msra.mxu0 0.0
    %2983 = vmatprep.subr.mxu0 0.0
    %2984 = vmatpush1.msra.mxu0 0.0
    %2985 = vmatprep.subr.mxu0 0.0
    %2986 = vmatpush1.msra.mxu0 0.0
    %2987 = vmatprep.subr.mxu0 0.0
    %2988 = vmatpush1.msra.mxu0 0.0
    %2989 = vmatprep.subr.mxu0 0.0
    %2990 = vmatpush1.msra.mxu0 0.0
    %2991 = vmatprep.subr.mxu0 0.0
    %2992 = vmatpush1.msra.mxu0 0.0
    %2993 = vmatprep.subr.mxu0 0.0
    %2994 = vmatpush1.msra.mxu0 %v153
    %2995 = vmatprep.subr.mxu0 0.0
    %2996 = vmatpush1.msra.mxu0 %v152
    %2997 = vmatprep.subr.mxu0 0.0
    %2998 = vmatpush1.msra.mxu0 %v151
    %2999 = vmatprep.subr.mxu0 0.0
    %3000 = vmatpush1.msra.mxu0 %v150
    %3001 = vmatprep.subr.mxu0 0.0
    %3002 = vmatpush2.msra.mxu0 0.0
    %3003 = vmatprep.subr.mxu0 0.0
    %3004 = vmatpush2.msra.mxu0 0.0
    %3005 = vmatprep.subr.mxu0 0.0
    %3006 = vmatpush2.msra.mxu0 0.0
    %3007 = vmatprep.subr.mxu0 0.0
    %3008 = vmatpush2.msra.mxu0 0.0
    %3009 = vmatprep.subr.mxu0 0.0
    %3010 = vmatpush2.msra.mxu0 0.0
    %3011 = vmatprep.subr.mxu0 0.0
    %3012 = vmatpush2.msra.mxu0 0.0
    %3013 = vmatprep.subr.mxu0 0.0
    %3014 = vmatpush2.msra.mxu0 0.0
    %3015 = vmatprep.subr.mxu0 0.0
    %3016 = vmatpush2.msra.mxu0 0.0
    %3017 = vmatprep.subr.mxu0 0.0
    %3018 = vmatpush2.msra.mxu0 0.0
    %3019 = vmatprep.subr.mxu0 0.0
    %3020 = vmatpush2.msra.mxu0 0.0
    %3021 = vmatprep.subr.mxu0 0.0
    %3022 = vmatpush2.msra.mxu0 0.0
    %3023 = vmatprep.subr.mxu0 0.0
    %3024 = vmatpush2.msra.mxu0 0.0
    %3025 = vmatprep.subr.mxu0 0.0
    %3026 = vmatpush2.msra.mxu0 0.0
    %3027 = vmatprep.subr.mxu0 0.0
    %3028 = vmatpush2.msra.mxu0 0.0
    %3029 = vmatprep.subr.mxu0 0.0
    %3030 = vmatpush2.msra.mxu0 0.0
    %3031 = vmatprep.subr.mxu0 0.0
    %3032 = vmatpush2.msra.mxu0 0.0
    %3033 = vmatprep.mubr.f32.mxu0 0.0
    %3034 = vmatmul.mubr.f32.gmra.mxu0 %v2967
    %v3035 = vpop.f32.mrf.mxu0
    %v3036 = vadd.f32 %v2963, %v3035
    %v3037 = vpop.f32.mrf.mxu0
    %3038 = vdwg.mxu0
    %v3039 = vadd.f32 %v3036, %v158
    %v3040 = vxor.u32 %v3039, 2147483648
    %v3041 = vmul.f32 %v3040, 1.442695
    %v3042 = vpow.pop %v3041
    %v3043 = vadd.f32 %v3042, 1.0
    %v3044 = vrcp.pop %v3043
    %v3045 = vmul.f32 1.0, %v3044
    %v3046 = vtanh.pop %v3039
    %v3047 = vmul.f32 %v3045, %v2520
    %3049 = vrot.lane.b32.xlu0 %v3046, 64
    %v3050 = vpop.permute.xlu0 %3049
    %v3052 = vmul.f32 %v3045, %v3050
    %3054 = vrot.lane.b32.xlu0 %v3052, 32
    %v3055 = vpop.permute.xlu0 %3054
    %v3057 = vadd.f32 %v3047, %v3055
    %v3058 = vtanh.pop %v3057
    %3060 = vrot.lane.b32.xlu0 %v3058, 64
    %v3061 = vpop.permute.xlu0 %3060
    %v3063 = vmul.f32 %v3045, %v3061
    %3065 = vrot.lane.b32.xlu0 %v3063, 32
    %v3066 = vpop.permute.xlu0 %3065
    %v3067 = vsel %vm179, %v3066, 0
    %3069 = vmatprep.subr.mxu0 0.0
    %3070 = vmatpush1.msra.mxu0 0.0
    %3071 = vmatprep.subr.mxu0 0.0
    %3072 = vmatpush1.msra.mxu0 0.0
    %3073 = vmatprep.subr.mxu0 0.0
    %3074 = vmatpush1.msra.mxu0 0.0
    %3075 = vmatprep.subr.mxu0 0.0
    %3076 = vmatpush1.msra.mxu0 0.0
    %3077 = vmatprep.subr.mxu0 0.0
    %3078 = vmatpush1.msra.mxu0 0.0
    %3079 = vmatprep.subr.mxu0 0.0
    %3080 = vmatpush1.msra.mxu0 0.0
    %3081 = vmatprep.subr.mxu0 0.0
    %3082 = vmatpush1.msra.mxu0 0.0
    %3083 = vmatprep.subr.mxu0 0.0
    %3084 = vmatpush1.msra.mxu0 0.0
    %3085 = vmatprep.subr.mxu0 0.0
    %3086 = vmatpush1.msra.mxu0 0.0
    %3087 = vmatprep.subr.mxu0 0.0
    %3088 = vmatpush1.msra.mxu0 0.0
    %3089 = vmatprep.subr.mxu0 0.0
    %3090 = vmatpush1.msra.mxu0 0.0
    %3091 = vmatprep.subr.mxu0 0.0
    %3092 = vmatpush1.msra.mxu0 0.0
    %3093 = vmatprep.subr.mxu0 0.0
    %3094 = vmatpush1.msra.mxu0 %v162
    %3095 = vmatprep.subr.mxu0 0.0
    %3096 = vmatpush1.msra.mxu0 %v161
    %3097 = vmatprep.subr.mxu0 0.0
    %3098 = vmatpush1.msra.mxu0 %v160
    %3099 = vmatprep.subr.mxu0 0.0
    %3100 = vmatpush1.msra.mxu0 %v159
    %3101 = vmatprep.subr.mxu0 0.0
    %3102 = vmatpush2.msra.mxu0 0.0
    %3103 = vmatprep.subr.mxu0 0.0
    %3104 = vmatpush2.msra.mxu0 0.0
    %3105 = vmatprep.subr.mxu0 0.0
    %3106 = vmatpush2.msra.mxu0 0.0
    %3107 = vmatprep.subr.mxu0 0.0
    %3108 = vmatpush2.msra.mxu0 0.0
    %3109 = vmatprep.subr.mxu0 0.0
    %3110 = vmatpush2.msra.mxu0 0.0
    %3111 = vmatprep.subr.mxu0 0.0
    %3112 = vmatpush2.msra.mxu0 0.0
    %3113 = vmatprep.subr.mxu0 0.0
    %3114 = vmatpush2.msra.mxu0 0.0
    %3115 = vmatprep.subr.mxu0 0.0
    %3116 = vmatpush2.msra.mxu0 0.0
    %3117 = vmatprep.subr.mxu0 0.0
    %3118 = vmatpush2.msra.mxu0 0.0
    %3119 = vmatprep.subr.mxu0 0.0
    %3120 = vmatpush2.msra.mxu0 0.0
    %3121 = vmatprep.subr.mxu0 0.0
    %3122 = vmatpush2.msra.mxu0 0.0
    %3123 = vmatprep.subr.mxu0 0.0
    %3124 = vmatpush2.msra.mxu0 0.0
    %3125 = vmatprep.subr.mxu0 0.0
    %3126 = vmatpush2.msra.mxu0 0.0
    %3127 = vmatprep.subr.mxu0 0.0
    %3128 = vmatpush2.msra.mxu0 0.0
    %3129 = vmatprep.subr.mxu0 0.0
    %3130 = vmatpush2.msra.mxu0 0.0
    %3131 = vmatprep.subr.mxu0 0.0
    %3132 = vmatpush2.msra.mxu0 0.0
    %3133 = vmatprep.mubr.f32.mxu0 0.0
    %3134 = vmatmul.mubr.f32.gmra.mxu0 %v3067
    %v3135 = vpop.f32.mrf.mxu0
    %v3136 = vadd.f32 0.0, %v3135
    %v3137 = vpop.f32.mrf.mxu0
    %3138 = vdwg.mxu0
    %v3139 = vadd.f32 %v3136, %v163
    %v3140 = vsel %vm435, %v3139, -inf
    %3141 = vmax.xlane.f32.xlu0 %v3140
    %v3142 = vpop.xlane.xlu0 %3141
    %v3143 = vsub.f32 %v3139, %v3142
    %v3144 = vmul.f32 %v3143, 1.442695
    %v3145 = vpow.pop %v3144
    %v3146 = vsel %vm435, %v3145, 0.0
    %3147 = vadd.xlane.f32.xlu0 %v3146
    %v3148 = vpop.xlane.xlu0 %3147
    %v3149 = vrcp.pop %v3148
    %v3150 = vmul.f32 %v3145, %v3149
    %v3152 = vsel %vm447, %v3150, 0
    %3154 = vmatprep.subr.mxu0 0.0
    %3155 = vmatpush1.msra.mxu0 0.0
    %3156 = vmatprep.subr.mxu0 0.0
    %3157 = vmatpush1.msra.mxu0 0.0
    %3158 = vmatprep.subr.mxu0 0.0
    %3159 = vmatpush1.msra.mxu0 0.0
    %3160 = vmatprep.subr.mxu0 0.0
    %3161 = vmatpush1.msra.mxu0 0.0
    %3162 = vmatprep.subr.mxu0 0.0
    %3163 = vmatpush1.msra.mxu0 0.0
    %3164 = vmatprep.subr.mxu0 0.0
    %3165 = vmatpush1.msra.mxu0 0.0
    %3166 = vmatprep.subr.mxu0 0.0
    %3167 = vmatpush1.msra.mxu0 0.0
    %3168 = vmatprep.subr.mxu0 0.0
    %3169 = vmatpush1.msra.mxu0 0.0
    %3170 = vmatprep.subr.mxu0 0.0
    %3171 = vmatpush1.msra.mxu0 0.0
    %3172 = vmatprep.subr.mxu0 0.0
    %3173 = vmatpush1.msra.mxu0 0.0
    %3174 = vmatprep.subr.mxu0 0.0
    %3175 = vmatpush1.msra.mxu0 0.0
    %3176 = vmatprep.subr.mxu0 0.0
    %3177 = vmatpush1.msra.mxu0 0.0
    %3178 = vmatprep.subr.mxu0 0.0
    %3179 = vmatpush1.msra.mxu0 0.0
    %3180 = vmatprep.subr.mxu0 0.0
    %3181 = vmatpush1.msra.mxu0 0.0
    %3182 = vmatprep.subr.mxu0 0.0
    %3183 = vmatpush1.msra.mxu0 %v165
    %3184 = vmatprep.subr.mxu0 0.0
    %3185 = vmatpush1.msra.mxu0 %v164
    %3186 = vmatprep.subr.mxu0 0.0
    %3187 = vmatpush2.msra.mxu0 0.0
    %3188 = vmatprep.subr.mxu0 0.0
    %3189 = vmatpush2.msra.mxu0 0.0
    %3190 = vmatprep.subr.mxu0 0.0
    %3191 = vmatpush2.msra.mxu0 0.0
    %3192 = vmatprep.subr.mxu0 0.0
    %3193 = vmatpush2.msra.mxu0 0.0
    %3194 = vmatprep.subr.mxu0 0.0
    %3195 = vmatpush2.msra.mxu0 0.0
    %3196 = vmatprep.subr.mxu0 0.0
    %3197 = vmatpush2.msra.mxu0 0.0
    %3198 = vmatprep.subr.mxu0 0.0
    %3199 = vmatpush2.msra.mxu0 0.0
    %3200 = vmatprep.subr.mxu0 0.0
    %3201 = vmatpush2.msra.mxu0 0.0
    %3202 = vmatprep.subr.mxu0 0.0
    %3203 = vmatpush2.msra.mxu0 0.0
    %3204 = vmatprep.subr.mxu0 0.0
    %3205 = vmatpush2.msra.mxu0 0.0
    %3206 = vmatprep.subr.mxu0 0.0
    %3207 = vmatpush2.msra.mxu0 0.0
    %3208 = vmatprep.subr.mxu0 0.0
    %3209 = vmatpush2.msra.mxu0 0.0
    %3210 = vmatprep.subr.mxu0 0.0
    %3211 = vmatpush2.msra.mxu0 0.0
    %3212 = vmatprep.subr.mxu0 0.0
    %3213 = vmatpush2.msra.mxu0 0.0
    %3214 = vmatprep.subr.mxu0 0.0
    %3215 = vmatpush2.msra.mxu0 0.0
    %3216 = vmatprep.subr.mxu0 0.0
    %3217 = vmatpush2.msra.mxu0 0.0
    %3218 = vmatprep.mubr.f32.mxu0 0.0
    %3219 = vmatmul.mubr.f32.gmra.mxu0 %v3152
    %v3220 = vpop.f32.mrf.mxu0
    %v3221 = vadd.f32 0.0, %v3220
    %v3222 = vpop.f32.mrf.mxu0
    %3223 = vdwg.mxu0
    %v3225 = vsel %vm179, %v3221, 0
    %3227 = vmatprep.subr.mxu0 0.0
    %3228 = vmatpush1.msra.mxu0 0.0
    %3229 = vmatprep.subr.mxu0 0.0
    %3230 = vmatpush1.msra.mxu0 0.0
    %3231 = vmatprep.subr.mxu0 0.0
    %3232 = vmatpush1.msra.mxu0 0.0
    %3233 = vmatprep.subr.mxu0 0.0
    %3234 = vmatpush1.msra.mxu0 0.0
    %3235 = vmatprep.subr.mxu0 0.0
    %3236 = vmatpush1.msra.mxu0 0.0
    %3237 = vmatprep.subr.mxu0 0.0
    %3238 = vmatpush1.msra.mxu0 0.0
    %3239 = vmatprep.subr.mxu0 0.0
    %3240 = vmatpush1.msra.mxu0 0.0
    %3241 = vmatprep.subr.mxu0 0.0
    %3242 = vmatpush1.msra.mxu0 0.0
    %3243 = vmatprep.subr.mxu0 0.0
    %3244 = vmatpush1.msra.mxu0 0.0
    %3245 = vmatprep.subr.mxu0 0.0
    %3246 = vmatpush1.msra.mxu0 0.0
    %3247 = vmatprep.subr.mxu0 0.0
    %3248 = vmatpush1.msra.mxu0 0.0
    %3249 = vmatprep.subr.mxu0 0.0
    %3250 = vmatpush1.msra.mxu0 0.0
    %3251 = vmatprep.subr.mxu0 0.0
    %3252 = vmatpush1.msra.mxu0 %v169
    %3253 = vmatprep.subr.mxu0 0.0
    %3254 = vmatpush1.msra.mxu0 %v168
    %3255 = vmatprep.subr.mxu0 0.0
    %3256 = vmatpush1.msra.mxu0 %v167
    %3257 = vmatprep.subr.mxu0 0.0
    %3258 = vmatpush1.msra.mxu0 %v166
    %3259 = vmatprep.subr.mxu0 0.0
    %3260 = vmatpush2.msra.mxu0 0.0
    %3261 = vmatprep.subr.mxu0 0.0
    %3262 = vmatpush2.msra.mxu0 0.0
    %3263 = vmatprep.subr.mxu0 0.0
    %3264 = vmatpush2.msra.mxu0 0.0
    %3265 = vmatprep.subr.mxu0 0.0
    %3266 = vmatpush2.msra.mxu0 0.0
    %3267 = vmatprep.subr.mxu0 0.0
    %3268 = vmatpush2.msra.mxu0 0.0
    %3269 = vmatprep.subr.mxu0 0.0
    %3270 = vmatpush2.msra.mxu0 0.0
    %3271 = vmatprep.subr.mxu0 0.0
    %3272 = vmatpush2.msra.mxu0 0.0
    %3273 = vmatprep.subr.mxu0 0.0
    %3274 = vmatpush2.msra.mxu0 0.0
    %3275 = vmatprep.subr.mxu0 0.0
    %3276 = vmatpush2.msra.mxu0 0.0
    %3277 = vmatprep.subr.mxu0 0.0
    %3278 = vmatpush2.msra.mxu0 0.0
    %3279 = vmatprep.subr.mxu0 0.0
    %3280 = vmatpush2.msra.mxu0 0.0
    %3281 = vmatprep.subr.mxu0 0.0
    %3282 = vmatpush2.msra.mxu0 0.0
    %3283 = vmatprep.subr.mxu0 0.0
    %3284 = vmatpush2.msra.mxu0 0.0
    %3285 = vmatprep.subr.mxu0 0.0
    %3286 = vmatpush2.msra.mxu0 0.0
    %3287 = vmatprep.subr.mxu0 0.0
    %3288 = vmatpush2.msra.mxu0 0.0
    %3289 = vmatprep.subr.mxu0 0.0
    %3290 = vmatpush2.msra.mxu0 0.0
    %3291 = vmatprep.mubr.f32.mxu0 0.0
    %3292 = vmatmul.mubr.f32.gmra.mxu0 %v3225
    %v3293 = vpop.f32.mrf.mxu0
    %v3294 = vadd.f32 0.0, %v3293
    %v3295 = vpop.f32.mrf.mxu0
    %3296 = vdwg.mxu0
    %3298 = vrot.lane.b32.xlu0 %v3294, 16
    %v3299 = vpop.permute.xlu0 %3298
    %v3301 = vadd.f32 %v3136, %v3299
    %v3302 = vadd.f32 %v3301, %v605
    %v3303 = vmax.f32 %v3302, 0.0
    %3305 = vrot.lane.b32.xlu0 %v3303, 112
    %v3306 = vpop.permute.xlu0 %3305
    %v3307 = vsel %vm179, %v3306, 0
    %3309 = vmatprep.subr.mxu0 0.0
    %3310 = vmatpush1.msra.mxu0 0.0
    %3311 = vmatprep.subr.mxu0 0.0
    %3312 = vmatpush1.msra.mxu0 0.0
    %3313 = vmatprep.subr.mxu0 0.0
    %3314 = vmatpush1.msra.mxu0 0.0
    %3315 = vmatprep.subr.mxu0 0.0
    %3316 = vmatpush1.msra.mxu0 0.0
    %3317 = vmatprep.subr.mxu0 0.0
    %3318 = vmatpush1.msra.mxu0 0.0
    %3319 = vmatprep.subr.mxu0 0.0
    %3320 = vmatpush1.msra.mxu0 0.0
    %3321 = vmatprep.subr.mxu0 0.0
    %3322 = vmatpush1.msra.mxu0 0.0
    %3323 = vmatprep.subr.mxu0 0.0
    %3324 = vmatpush1.msra.mxu0 0.0
    %3325 = vmatprep.subr.mxu0 0.0
    %3326 = vmatpush1.msra.mxu0 0.0
    %3327 = vmatprep.subr.mxu0 0.0
    %3328 = vmatpush1.msra.mxu0 0.0
    %3329 = vmatprep.subr.mxu0 0.0
    %3330 = vmatpush1.msra.mxu0 0.0
    %3331 = vmatprep.subr.mxu0 0.0
    %3332 = vmatpush1.msra.mxu0 0.0
    %3333 = vmatprep.subr.mxu0 0.0
    %3334 = vmatpush1.msra.mxu0 %v174
    %3335 = vmatprep.subr.mxu0 0.0
    %3336 = vmatpush1.msra.mxu0 %v173
    %3337 = vmatprep.subr.mxu0 0.0
    %3338 = vmatpush1.msra.mxu0 %v172
    %3339 = vmatprep.subr.mxu0 0.0
    %3340 = vmatpush1.msra.mxu0 %v171
    %3341 = vmatprep.subr.mxu0 0.0
    %3342 = vmatpush2.msra.mxu0 0.0
    %3343 = vmatprep.subr.mxu0 0.0
    %3344 = vmatpush2.msra.mxu0 0.0
    %3345 = vmatprep.subr.mxu0 0.0
    %3346 = vmatpush2.msra.mxu0 0.0
    %3347 = vmatprep.subr.mxu0 0.0
    %3348 = vmatpush2.msra.mxu0 0.0
    %3349 = vmatprep.subr.mxu0 0.0
    %3350 = vmatpush2.msra.mxu0 0.0
    %3351 = vmatprep.subr.mxu0 0.0
    %3352 = vmatpush2.msra.mxu0 0.0
    %3353 = vmatprep.subr.mxu0 0.0
    %3354 = vmatpush2.msra.mxu0 0.0
    %3355 = vmatprep.subr.mxu0 0.0
    %3356 = vmatpush2.msra.mxu0 0.0
    %3357 = vmatprep.subr.mxu0 0.0
    %3358 = vmatpush2.msra.mxu0 0.0
    %3359 = vmatprep.subr.mxu0 0.0
    %3360 = vmatpush2.msra.mxu0 0.0
    %3361 = vmatprep.subr.mxu0 0.0
    %3362 = vmatpush2.msra.mxu0 0.0
    %3363 = vmatprep.subr.mxu0 0.0
    %3364 = vmatpush2.msra.mxu0 0.0
    %3365 = vmatprep.subr.mxu0 0.0
    %3366 = vmatpush2.msra.mxu0 0.0
    %3367 = vmatprep.subr.mxu0 0.0
    %3368 = vmatpush2.msra.mxu0 0.0
    %3369 = vmatprep.subr.mxu0 0.0
    %3370 = vmatpush2.msra.mxu0 0.0
    %3371 = vmatprep.subr.mxu0 0.0
    %3372 = vmatpush2.msra.mxu0 0.0
    %3373 = vmatprep.mubr.f32.mxu0 0.0
    %3374 = vmatmul.mubr.f32.gmra.mxu0 %v3307
    %v3375 = vpop.f32.mrf.mxu0
    %v3376 = vadd.f32 %v175, %v3375
    %v3377 = vpop.f32.mrf.mxu0
    %3378 = vdwg.mxu0
    %v3379 = vsel %vm684, %v3376, -inf
    %3380 = vmax.xlane.f32.xlu0 %v3379
    %v3381 = vpop.xlane.xlu0 %3380
    %v3382 = vsub.f32 %v3376, %v3381
    %v3383 = vmul.f32 %v3382, 1.442695
    %v3384 = vpow.pop %v3383
    %v3385 = vsel %vm684, %v3384, 0.0
    %3386 = vadd.xlane.f32.xlu0 %v3385
    %v3387 = vpop.xlane.xlu0 %3386
    %v3388 = vlog2.pop %v3387
    %v3389 = vmul.f32 %v3388, 0.6931472
    %v3390 = vsub.f32 %v3382, %v3389
    %s3391 = scalar_lea.vmem [#allocation14], 10
    %3392 = vst.msk [vmem:[%s3391] sm:$0x1] %vm698, %v3390
    %v3394 = vunpack.c.l.s4 1966171168
    %v3395 = vunpack.c.0.s8 %v3394
    %v3396 = vlaneseq
    %v3397 = vshrl.u32 %v3396, 7
    %v3398 = vsub.s32 %v3395, %v3397
    %v3399 = vrot.slane %v3063, %v3398
    %v3401 = vunpack.c.l.s4 1966171168
    %v3402 = vunpack.c.0.s8 %v3401
    %v3403 = vlaneseq
    %v3404 = vshrl.u32 %v3403, 7
    %v3405 = vsub.s32 %v3402, %v3404
    %v3406 = vrot.slane %v3399, %v3405
    %3407 = vrot.lane.b32.xlu0 %v3406, 96
    %v3408 = vpop.permute.xlu0 %3407
    %3410 = vst.msk [vmem:[%s3391] sm:$0x1] %vm719, %v3408
    %v3413 = vunpack.c.l.s4 1966171168
    %v3414 = vunpack.c.0.s8 %v3413
    %v3415 = vlaneseq
    %v3416 = vshrl.u32 %v3415, 7
    %v3417 = vsub.s32 %v3414, %v3416
    %v3418 = vrot.slane %v3057, %v3417
    %v3420 = vunpack.c.l.s4 1966171168
    %v3421 = vunpack.c.0.s8 %v3420
    %v3422 = vlaneseq
    %v3423 = vshrl.u32 %v3422, 7
    %v3424 = vsub.s32 %v3421, %v3423
    %v3425 = vrot.slane %v3418, %v3424
    %3426 = vrot.lane.b32.xlu0 %v3425, 64
    %v3427 = vpop.permute.xlu0 %3426
    %3429 = vst.msk [vmem:[%s3391] sm:$0x1] %vm741, %v3427
    %3430 = vst.msk [vmem:[%s3391 + $0x1] sm:$0x1] %vm744, %v3150
    // Predicated region
    $region82: #{tpu_custom_call.1} parent=1 // pred_check
      _
    $region83: #{tpu_custom_call.1} parent=1 // pred_check_branch
      %3432 = sbr.rel (0) target = $region85
    $region84: #{tpu_custom_call.1} parent=1 // pred_region
      %s3434 = ssub.s32 192, 192
      %3435 = vsyncadd [#allocation4], %s3434
      %s3436 = sshll.u32 [#allocation14], 4
      %s3437 = int_to_ptr.vmem [resolvable:$true] %s3436
      %3442 = dma.vmem_to_hbm [thread:$0]  %s3437, 192, %s13, [#allocation4], 32, 32, 2
    $region85: #{tpu_custom_call.1} parent=1 // pred_fallthru
      _
    // Predicated region
    $region86: #{tpu_custom_call.1} parent=1 // pred_check
      _
    $region87: #{tpu_custom_call.1} parent=1 // pred_check_branch
      %3444 = sbr.rel (0) target = $region89
    $region88: #{tpu_custom_call.1} parent=1 // pred_region
      %3445 = dma.done [#allocation4], 192
    $region89: #{tpu_custom_call.1} parent=1 // pred_fallthru
      _
    %3446 = vsyncpa [#allocation3], 1
    %3447 = vsyncpa [#allocation6], 1
    %3448 = vsyncpa [#allocation9], 1
    %3449 = vsyncpa [#allocation12], 1
    %3450 = vsyncpa [#allocation4], 1

</llo_original>
